<compile_context>
chip_gen: v5e
topology: v5e:2x2
jax: 0.10.0
libtpu: 0.0.40
codegen_flags: <defaults>
</compile_context>

<pallas_src>
import functools

import jax
import jax.numpy as jnp
from jax.experimental import pallas as pl
from jax.experimental.pallas import tpu as pltpu


# ----------------------------------------------------------------------------
# Pallas kernels:  out = act(x @ w + b)   (bf16 operands, f32 accumulation)
# grid = (N_blocks, K_blocks), K innermost.
# ----------------------------------------------------------------------------
def _activate(y, act):
    if act == "relu":
        return jnp.maximum(y, 0.0)
    if act == "leaky_relu":                 # nn.LeakyReLU(0.2) in the reference
        return jnp.where(y > 0, y, 0.2 * y)
    if act == "tanh":
        return jnp.tanh(y)
    return y


def _matmul_kernel_single(x_ref, w_ref, b_ref, o_ref, *, act):
    """Single K block: straight epilogue to o_ref, no scratch round trip."""
    y = jnp.dot(x_ref[...], w_ref[...], preferred_element_type=jnp.float32)
    o_ref[...] = _activate(y + b_ref[...], act).astype(o_ref.dtype)


def _matmul_kernel_ktiled(x_ref, w_ref, b_ref, o_ref, acc_ref, *, act, nk):
    """K-tiled: accumulate into an f32 VMEM scratch, epilogue at the last K."""
    k = pl.program_id(1)
    y = jnp.dot(x_ref[...], w_ref[...], preferred_element_type=jnp.float32)

    @pl.when(k == 0)
    def _():
        acc_ref[...] = y

    @pl.when(k > 0)
    def _():
        acc_ref[...] = acc_ref[...] + y

    @pl.when(k == nk - 1)
    def _():
        o_ref[...] = _activate(acc_ref[...] + b_ref[...], act).astype(o_ref.dtype)


def _weight_blockspec(bk, tn, n_bufs):
    """(bk, tn) weight spec, triple-buffered on the K-tiled path when supported."""
    index_map = lambda n, k: (k, n)
    if n_bufs > 2 and hasattr(pl, "Buffered"):
        try:
            return pl.BlockSpec((bk, tn), index_map,
                                pipeline_mode=pl.Buffered(n_bufs))
        except (TypeError, AttributeError):
            pass
    return pl.BlockSpec((bk, tn), index_map)


def fused_matmul(x, w, b, act="none", out_dtype=jnp.float32, *,
                 block_k=4096, max_weight_block_bytes=8 << 20,
                 weight_buffers=3, core_parallel_n=False, block_n=512):
    """act(x @ w + b) with bf16 operands on the MXU, f32 accumulation/epilogue."""
    M, K = x.shape
    Kw, N = w.shape
    assert K == Kw
    x = x.astype(jnp.bfloat16)
    w = w.astype(jnp.bfloat16)
    b = b.reshape(1, N).astype(jnp.float32)

    # ---- K tiling.  This workload is weight-DMA-bound: go single-block whenever
    # the *weight slab* (K*N*2 bytes bf16) is small; otherwise pick the largest
    # multiple-of-128 divisor of K <= block_k (no HBM zero-pad copies).
    if K * N * 2 <= max_weight_block_bytes or K <= block_k:
        bk = K
    else:
        bk = None
        for cand in range(min(block_k, K), 127, -128):
            if K % cand == 0:
                bk = cand
                break
        if bk is None:
            # Fallback (not hit by this model): minimal zero-pad to 128.
            Kp = ((K + 127) // 128) * 128
            x = jnp.pad(x, ((0, 0), (0, Kp - K)))
            w = jnp.pad(w, ((0, Kp - K), (0, 0)))
            K = Kp
            bk = min(block_k, K)
            while K % bk != 0:
                bk -= 128
    nk = K // bk

    # ---- N tiling.  v5e/v6e are single-TC: nn=1 (no duplicated x DMA, bigger
    # weight slabs, fewer steps).  v7x callers can opt into a CORE_PARALLEL split.
    if core_parallel_n and N > block_n and N % block_n == 0:
        tn = block_n
        dim_sems = (pltpu.CORE_PARALLEL, pltpu.ARBITRARY)
    else:
        tn = N
        dim_sems = ("arbitrary", "arbitrary")
    nn = N // tn

    # ---- Explicit VMEM budget (v5e scoped default is only 16 MiB; v7x physical
    # VMEM is 64 MiB).  Size to the actual blocks + 25% headroom, cap at 48 MiB.
    out_bytes = 2 if out_dtype == jnp.bfloat16 else 4
    n_w_bufs = weight_buffers if nk > 1 else 2
    need = (bk * tn * 2 * n_w_bufs            # weight blocks (bf16, buffered)
            + M * bk * 2 * 2                  # x blocks (bf16, double buffered)
            + M * tn * out_bytes * 2          # out blocks
            + tn * 4 * 2                      # bias
            + (M * tn * 4 if nk > 1 else 0))  # f32 scratch accumulator
    vmem_limit = int(min(max(need * 5 // 4, 32 << 20), 48 << 20))

    cost = pl.CostEstimate(
        flops=2 * M * N * K,
        transcendentals=M * N if act == "tanh" else 0,
        bytes_accessed=M * K * 2 + K * N * 2 + M * N * out_bytes + N * 4,
    )

    in_specs = [
        pl.BlockSpec((M, bk), lambda n, k: (0, k)),
        _weight_blockspec(bk, tn, n_w_bufs),
        pl.BlockSpec((1, tn), lambda n, k: (0, n)),
    ]
    out_spec = pl.BlockSpec((M, tn), lambda n, k: (0, n))

    if nk == 1:
        kernel = functools.partial(_matmul_kernel_single, act=act)
        scratch = []
    else:
        kernel = functools.partial(_matmul_kernel_ktiled, act=act, nk=nk)
        scratch = [pltpu.VMEM((M, tn), jnp.float32)]

    return pl.pallas_call(
        kernel,
        out_shape=jax.ShapeDtypeStruct((M, N), out_dtype),
        grid_spec=pltpu.PrefetchScalarGridSpec(
            num_scalar_prefetch=0,
            grid=(nn, nk),
            in_specs=in_specs,
            out_specs=out_spec,
            scratch_shapes=scratch,
        ),
        compiler_params=pltpu.CompilerParams(
            dimension_semantics=dim_sems,
            vmem_limit_bytes=vmem_limit),
        cost_estimate=cost,
    )(x, w, b)


# ----------------------------------------------------------------------------
# Conv helpers: NHWC im2col glue in plain JAX, matmul hot path in Pallas.
# ----------------------------------------------------------------------------
def _im2col_nhwc(x, kh, kw, sh, sw, ph, pw):
    B, H, W, C = x.shape
    xp = jnp.pad(x, ((0, 0), (ph, ph), (pw, pw), (0, 0)))
    Ho = (H + 2 * ph - kh) // sh + 1
    Wo = (W + 2 * pw - kw) // sw + 1
    cols = []
    for i in range(kh):
        for j in range(kw):
            cols.append(xp[:, i:i + sh * Ho:sh, j:j + sw * Wo:sw, :])
    col = jnp.stack(cols, axis=3)                      # (B, Ho, Wo, kh*kw, C)
    col = col.reshape(B * Ho * Wo, kh * kw * C)        # K ordered (kh, kw, C)
    return col, Ho, Wo


def conv2d_nhwc(x, w_mat, bias, kh, kw, stride, padding, act="none",
                out_dtype=jnp.bfloat16):
    """x: NHWC.  w_mat: (kh*kw*Cin, Cout) pre-reordered.  Returns NHWC."""
    B = x.shape[0]
    col, Ho, Wo = _im2col_nhwc(x, kh, kw, stride[0], stride[1],
                               padding[0], padding[1])
    Cout = w_mat.shape[1]
    out = fused_matmul(col, w_mat, bias, act=act, out_dtype=out_dtype)
    return out.reshape(B, Ho, Wo, Cout)


def conv_transpose2d_nhwc(x, w_mat, bias, kh, kw, stride, padding, act="none",
                          out_dtype=jnp.bfloat16):
    """ConvTranspose2d == zero-insert (dilate) by stride, then a normal conv
    with the (pre-flipped, pre-transposed) kernel and padding (k-1-p)."""
    B, H, W, C = x.shape
    sh, sw = stride
    ph, pw = padding
    if sh == 1 and sw == 1:
        xd = x
    else:
        xd = jnp.zeros((B, (H - 1) * sh + 1, (W - 1) * sw + 1, C), x.dtype)
        xd = xd.at[:, ::sh, ::sw, :].set(x)
    return conv2d_nhwc(xd, w_mat, bias, kh, kw, (1, 1),
                       (kh - 1 - ph, kw - 1 - pw), act, out_dtype=out_dtype)


# ----------------------------------------------------------------------------
# Parameters: PyTorch-layout init, then a one-time "prepare" pass that folds
# eval-mode BatchNorm, reorders conv weights to im2col layout and casts bf16.
# ----------------------------------------------------------------------------
EMB_DIM = 50
BN_EPS = 1e-5


def init_params(key, n_features, n_classes, ksp_h, ksp_w):
    H0, W0 = ksp_h['input'], ksp_w['input']
    HL, WL = ksp_h['height'], ksp_w['width']
    keys = iter(jax.random.split(key, 64))

    def nrm(shape, s=0.05):
        return jax.random.normal(next(keys), shape, jnp.float32) * s

    def bn(c):
        return (1.0 + nrm((c,)), nrm((c,)), nrm((c,)), 1.0 + jnp.abs(nrm((c,))))

    p = {}
    # --- encoder ---
    p['enc_emb'] = nrm((n_classes, EMB_DIM), 1.0)
    p['enc_emb_lin_w'] = nrm((EMB_DIM, H0 * W0))
    p['enc_emb_lin_b'] = nrm((H0 * W0,))
    p['enc_lin_w'] = nrm((n_features, H0 * W0))
    p['enc_lin_b'] = nrm((H0 * W0,))
    p['enc_ct1_w'] = nrm((2, 512, ksp_h['k1'], ksp_w['k1']))          # (Cin,Cout,kh,kw)
    p['enc_ct1_b'] = nrm((512,))
    p['enc_bn1'] = bn(512)
    p['enc_ct2_w'] = nrm((512, 1, ksp_h['k2'], ksp_w['k2']))
    p['enc_ct2_b'] = nrm((1,))
    # --- decoder ---
    p['dec_emb'] = nrm((n_classes, EMB_DIM), 1.0)
    p['dec_emb_lin_w'] = nrm((EMB_DIM, HL * WL))
    p['dec_emb_lin_b'] = nrm((HL * WL,))
    p['dec_c1_w'] = nrm((1024, 2, ksp_h['k2'], ksp_w['k2']))          # (Cout,Cin,kh,kw)
    p['dec_c1_b'] = nrm((1024,))
    p['dec_bn1'] = bn(1024)
    p['dec_c2_w'] = nrm((1024, 1024, ksp_h['k1'], ksp_w['k1']), 0.01)
    p['dec_c2_b'] = nrm((1024,))
    p['dec_bn2'] = bn(1024)
    p['dec_lin_w'] = nrm((1024 * H0 * W0, n_features), 0.01)          # (C*H*W, F) row order
    p['dec_lin_b'] = nrm((n_features,))
    return p


def _fold_bn(w_mat, bias, bn):
    gamma, beta, mean, var = bn
    scale = gamma / jnp.sqrt(var + BN_EPS)
    shift = beta - mean * scale
    return w_mat * scale[None, :], bias * scale + shift


def _conv_w_to_mat(w):          # (Cout, Cin, kh, kw) -> (kh*kw*Cin, Cout)
    Cout, Cin, kh, kw = w.shape
    return w.transpose(2, 3, 1, 0).reshape(kh * kw * Cin, Cout)


def _convT_w_to_mat(w):         # (Cin, Cout, kh, kw) -> equivalent conv matrix
    w_conv = jnp.flip(w, axis=(2, 3)).transpose(1, 0, 2, 3)   # (Cout,Cin,kh,kw)
    return _conv_w_to_mat(w_conv)


def prepare_params(p, ksp_h, ksp_w, n_features):
    """One-time prep: fold BN, reorder conv weights to im2col layout, cast bf16."""
    H0, W0 = ksp_h['input'], ksp_w['input']
    q = {}
    # Tiny linears / embeddings stay f32 (run in plain jnp — see encode/decode).
    for k in ('enc_emb', 'enc_emb_lin_w', 'enc_emb_lin_b',
              'enc_lin_w', 'enc_lin_b',
              'dec_emb', 'dec_emb_lin_w', 'dec_emb_lin_b'):
        q[k] = p[k]

    # encoder ConvTranspose2d(2->512) + BN + LeakyReLU(0.2)
    w, b = _fold_bn(_convT_w_to_mat(p['enc_ct1_w']), p['enc_ct1_b'], p['enc_bn1'])
    q['enc_ct1_w'], q['enc_ct1_b'] = w.astype(jnp.bfloat16), b
    # encoder ConvTranspose2d(512->1) + Tanh
    # TODO(synk): N=1 output uses 1/256 of the MXU columns; a VPU multiply +
    #             XLU reduction epilogue is a possible (secondary) improvement.
    q['enc_ct2_w'] = _convT_w_to_mat(p['enc_ct2_w']).astype(jnp.bfloat16)
    q['enc_ct2_b'] = p['enc_ct2_b']

    # decoder Conv2d(2->1024) + BN + LeakyReLU(0.2)
    w, b = _fold_bn(_conv_w_to_mat(p['dec_c1_w']), p['dec_c1_b'], p['dec_bn1'])
    q['dec_c1_w'], q['dec_c1_b'] = w.astype(jnp.bfloat16), b
    # decoder Conv2d(1024->1024) + BN + LeakyReLU(0.2)
    w, b = _fold_bn(_conv_w_to_mat(p['dec_c2_w']), p['dec_c2_b'], p['dec_bn2'])
    q['dec_c2_w'], q['dec_c2_b'] = w.astype(jnp.bfloat16), b

    # decoder Linear: PyTorch flattens NCHW (C,H,W); our activations flatten as
    # NHWC (H,W,C) — reorder the weight rows once to match.
    in_feats = p['dec_lin_w'].shape[0]
    C = in_feats // (H0 * W0)
    wl = p['dec_lin_w'].reshape(C, H0, W0, n_features)
    wl = wl.transpose(1, 2, 0, 3).reshape(H0 * W0 * C, n_features)
    q['dec_lin_w'] = wl.astype(jnp.bfloat16)
    q['dec_lin_b'] = p['dec_lin_b']
    return q


# ----------------------------------------------------------------------------
# Forward pass (== IGTD_CAE.forward): decode(encode(x, labels), labels)
# ----------------------------------------------------------------------------
def encode(q, x, labels, ksp_h, ksp_w):
    B = x.shape[0]
    H0, W0 = ksp_h['input'], ksp_w['input']
    # Tiny M=B, K<=50 GEMMs: plain jnp (a Pallas launch is pure overhead here).
    emb = jnp.take(q['enc_emb'], labels, axis=0)                       # (B, 50)
    lab = (emb @ q['enc_emb_lin_w'] + q['enc_emb_lin_b']).reshape(B, H0, W0, 1)
    h = jnp.maximum(x @ q['enc_lin_w'] + q['enc_lin_b'], 0.0).reshape(B, H0, W0, 1)
    z = jnp.concatenate([h, lab], axis=-1).astype(jnp.bfloat16)        # NHWC (B,H0,W0,2)
    z = conv_transpose2d_nhwc(z, q['enc_ct1_w'], q['enc_ct1_b'],
                              ksp_h['k1'], ksp_w['k1'],
                              (ksp_h['s1'], ksp_w['s1']),
                              (ksp_h['p1'], ksp_w['p1']),
                              act="leaky_relu")                        # (B,HL,WL,512) bf16
    z = conv_transpose2d_nhwc(z, q['enc_ct2_w'], q['enc_ct2_b'],
                              ksp_h['k2'], ksp_w['k2'],
                              (ksp_h['s2'], ksp_w['s2']),
                              (ksp_h['p2'], ksp_w['p2']),
                              act="tanh")                              # (B,HL,WL,1) bf16
    return z.transpose(0, 3, 1, 2)                                     # NCHW (B,1,HL,WL)


def decode(q, x, labels, ksp_h, ksp_w):
    B = x.shape[0]
    HL, WL = ksp_h['height'], ksp_w['width']
    x = x.transpose(0, 2, 3, 1).astype(jnp.bfloat16)                   # NCHW -> NHWC (C=1)
    emb = jnp.take(q['dec_emb'], labels, axis=0)                       # (B, 50)
    lab = (emb @ q['dec_emb_lin_w'] + q['dec_emb_lin_b']).reshape(B, HL, WL, 1)
    z = jnp.concatenate([x, lab.astype(jnp.bfloat16)], axis=-1)        # (B,HL,WL,2) bf16
    z = conv2d_nhwc(z, q['dec_c1_w'], q['dec_c1_b'],
                    ksp_h['k2'], ksp_w['k2'],
                    (ksp_h['s2'], ksp_w['s2']), (ksp_h['p2'], ksp_w['p2']),
                    act="leaky_relu")                                  # (B,HL,WL,1024) bf16
    # TODO(synk): cross-pallas_call prefetch of dec_c2's 32 MiB weight behind
    #             the earlier layers (P10) and in-kernel im2col are not done.
    z = conv2d_nhwc(z, q['dec_c2_w'], q['dec_c2_b'],
                    ksp_h['k1'], ksp_w['k1'],
                    (ksp_h['s1'], ksp_w['s1']), (ksp_h['p1'], ksp_w['p1']),
                    act="leaky_relu")                                  # (B,H0,W0,1024) bf16
    z = z.reshape(B, -1)                                               # Flatten (H,W,C)
    # Dropout(0.2): eval-mode identity.  Final output stays f32.
    return fused_matmul(z, q['dec_lin_w'], q['dec_lin_b'],
                        out_dtype=jnp.float32)                         # (B, n_features)


def igtd_cae_forward(q, x, labels, ksp_h, ksp_w):
    return decode(q, encode(q, x, labels, ksp_h, ksp_w), labels, ksp_h, ksp_w)


# ----------------------------------------------------------------------------
if __name__ == "__main__":
    n_features, n_classes, batch = 32, 4, 2
    ksp_h = {'input': 4, 'k1': 4, 's1': 2, 'p1': 1,
             'k2': 3, 's2': 1, 'p2': 1, 'height': 8, 'width': 8}
    ksp_w = dict(ksp_h)

    key = jax.random.PRNGKey(0)
    kp, kx, kl, ka, kb = jax.random.split(key, 5)
    params = init_params(kp, n_features, n_classes, ksp_h, ksp_w)
    prep = prepare_params(params, ksp_h, ksp_w, n_features)
    x = jax.random.normal(kx, (batch, n_features), jnp.float32)
    labels = jax.random.randint(kl, (batch,), 0, n_classes, jnp.int32)

    # --- sanity check of the Pallas fused-matmul kernel vs a bf16 jnp reference ---
    xa = jax.random.normal(ka, (16, 4096), jnp.float32)
    wa = jax.random.normal(kb, (4096, 256), jnp.float32) * 0.05
    ba = jnp.arange(256, dtype=jnp.float32) * 1e-3
    ref_acc = jnp.dot(xa.astype(jnp.bfloat16), wa.astype(jnp.bfloat16),
                      preferred_element_type=jnp.float32) + ba[None, :]
    # single K block path (f32 out)
    got1 = fused_matmul(xa, wa, ba, act="leaky_relu", out_dtype=jnp.float32)
    ref1 = jnp.where(ref_acc > 0, ref_acc, 0.2 * ref_acc)
    assert jnp.allclose(got1, ref1, rtol=1e-2, atol=1e-2), "single-block mismatch"
    # K-tiled path (nk=4, f32 scratch accumulator, bf16 out, Buffered weights)
    got2 = fused_matmul(xa, wa, ba, act="none", out_dtype=jnp.bfloat16,
                        block_k=1024, max_weight_block_bytes=1 << 20)
    assert jnp.allclose(got2.astype(jnp.float32), ref_acc,
                        rtol=2e-2, atol=2e-2), "tiled-path mismatch"

    # --- full IGTD_CAE forward (jit the whole graph; ksp dicts are static) ---
    enc_fn = jax.jit(lambda q, xx, ll: encode(q, xx, ll, ksp_h, ksp_w))
    fwd_fn = jax.jit(lambda q, xx, ll: igtd_cae_forward(q, xx, ll, ksp_h, ksp_w))

    lat = jax.block_until_ready(enc_fn(prep, x, labels))
    assert lat.shape == (batch, 1, ksp_h['height'], ksp_w['width'])
    out = jax.block_until_ready(fwd_fn(prep, x, labels))
    assert out.shape == (batch, n_features)
    assert bool(jnp.all(jnp.isfinite(out)))
    print("KERNEL_OK")
</pallas_src>

<mosaic_0001>
module attributes {stable_mosaic.version = 11 : i64} {
  func.func @_matmul_kernel_single(%arg0: i32, %arg1: i32, %arg2: memref<16x4096xbf16, #tpu.memory_space<vmem>>, %arg3: memref<4096x256xbf16, #tpu.memory_space<vmem>>, %arg4: memref<1x256xf32, #tpu.memory_space<vmem>>, %arg5: memref<16x256xf32, #tpu.memory_space<vmem>>) attributes {dimension_semantics = [#tpu.dimension_semantics<arbitrary>, #tpu.dimension_semantics<arbitrary>], iteration_bounds = array<i64: 1, 1>, scalar_prefetch = 0 : i64, scratch_operands = 0 : i64, tpu.core_type = #tpu.core_type<tc>, window_params = [{transform_indices = @transform_0, window_bounds = array<i64: 16, 4096>}, {transform_indices = @transform_1, window_bounds = array<i64: 4096, 256>}, {transform_indices = @transform_2, window_bounds = array<i64: 1, 256>}, {transform_indices = @transform_3, window_bounds = array<i64: 16, 256>}]} {
    %c0 = arith.constant 0 : index
    %c0_0 = arith.constant 0 : index
    %0 = vector.load %arg2[%c0, %c0_0] : memref<16x4096xbf16, #tpu.memory_space<vmem>>, vector<16x4096xbf16>
    %c0_1 = arith.constant 0 : index
    %c0_2 = arith.constant 0 : index
    %1 = vector.load %arg3[%c0_1, %c0_2] : memref<4096x256xbf16, #tpu.memory_space<vmem>>, vector<4096x256xbf16>
    %cst = arith.constant dense<0.000000e+00> : vector<16x256xf32>
    %2 = tpu.matmul %0, %1, %cst {dimension_numbers = #tpu.dot_dimension_numbers<[1], [0], [0], [1], [0, 0, 1, 1], [], []>} : vector<16x4096xbf16>, vector<4096x256xbf16>, vector<16x256xf32> -> vector<16x256xf32>
    %c0_3 = arith.constant 0 : index
    %c0_4 = arith.constant 0 : index
    %3 = vector.load %arg4[%c0_3, %c0_4] : memref<1x256xf32, #tpu.memory_space<vmem>>, vector<1x256xf32>
    %4 = vector.broadcast %3 : vector<1x256xf32> to vector<16x256xf32>
    %5 = arith.addf %2, %4 : vector<16x256xf32>
    %cst_5 = arith.constant 0.000000e+00 : f32
    %6 = vector.broadcast %cst_5 : f32 to vector<16x256xf32>
    %7 = arith.cmpf ogt, %5, %6 : vector<16x256xf32>
    %cst_6 = arith.constant 2.000000e-01 : f32
    %8 = vector.broadcast %cst_6 : f32 to vector<16x256xf32>
    %9 = arith.mulf %8, %5 : vector<16x256xf32>
    %10 = arith.select %7, %5, %9 : vector<16x256xi1>, vector<16x256xf32>
    %c0_7 = arith.constant 0 : index
    %c0_8 = arith.constant 0 : index
    %11 = vector.load %arg5[%c0_7, %c0_8] : memref<16x256xf32, #tpu.memory_space<vmem>>, vector<16x256xf32>
    tpu.vector_store %arg5[%c0_7, %c0_8], %10 {strides = array<i32>} : memref<16x256xf32, #tpu.memory_space<vmem>>, vector<16x256xf32>,
    return
  }
  func.func @transform_0(%arg0: i32, %arg1: i32) -> (i32, i32) {
    %c0_i32 = arith.constant 0 : i32
    %c0_i32_0 = arith.constant 0 : i32
    return %c0_i32, %arg1 : i32, i32
  }
  func.func @transform_1(%arg0: i32, %arg1: i32) -> (i32, i32) {
    %c0_i32 = arith.constant 0 : i32
    return %arg1, %arg0 : i32, i32
  }
  func.func @transform_2(%arg0: i32, %arg1: i32) -> (i32, i32) {
    %c0_i32 = arith.constant 0 : i32
    %c0_i32_0 = arith.constant 0 : i32
    return %c0_i32, %arg0 : i32, i32
  }
  func.func @transform_3(%arg0: i32, %arg1: i32) -> (i32, i32) {
    %c0_i32 = arith.constant 0 : i32
    %c0_i32_0 = arith.constant 0 : i32
    return %c0_i32, %arg0 : i32, i32
  }
}

</mosaic_0001>

<llo_original>
// kernel: tpu_custom_call.1
$region0: #{tpu_custom_call.1}
  #allocation0 [shape = 'u32[]', space=smem, size = 0x4, offset = 0x4, fixed_abs, tag = 'smem constant byte address 0x4 - core index']
  #allocation1 [shape = 'u32[72,128]{1,0:T(1,128)}', space=vmem, size = 0x9000, scoped, tag = 'internal scratch']
  %s0 = inlined_call_operand.hbm [shape: bf16[16,4096], index: 0, kind: input, shape index: {}]
  %s1 = inlined_call_operand.hbm [shape: bf16[4096,256], index: 1, kind: input, shape index: {}]
  %s2 = inlined_call_operand.hbm [shape: f32[1,256], index: 2, kind: input, shape index: {}]
  %s3 = inlined_call_operand.hbm [shape: f32[16,256], index: 3, kind: output, shape index: {}]
  %s4 = sld [smem:[#allocation0]]
  $region34: #{tpu_custom_call.1} parent=0
    _
  %s6 = ssub.s32 1, %s4
  %s7 = scalar_select 0, %s6, %s4
  $region1: #{tpu_custom_call.1} parent=0
    #allocation2 [shape = 'u8[131072]{0}', space=vmem, size = 0x20000, scoped, tag = 'input window, operand 0, single buffered']
    #allocation3 [shape = 's32[1]{0}', space=sflag, size = 0x4, scoped, tag = 'scoped memory for tpu_custom_call.1']
    #allocation4 [shape = 's32[1]{0}', space=sflag, size = 0x4, scoped, tag = 'scoped memory for tpu_custom_call.1']
    #allocation5 [shape = 'u8[2097152]{0}', space=vmem, size = 0x200000, scoped, tag = 'input window, operand 1, single buffered']
    #allocation6 [shape = 's32[1]{0}', space=sflag, size = 0x4, scoped, tag = 'scoped memory for tpu_custom_call.1']
    #allocation7 [shape = 'u8[1024]{0}', space=vmem, size = 0x400, scoped, tag = 'input window, operand 2, single buffered']
    #allocation8 [shape = 'u8[16384]{0}', space=vmem, size = 0x4000, scoped, tag = 'output window, operand 0, single buffered']
    %8 = vsyncpa [#allocation3], 0
    %9 = vsyncpa [#allocation6], 0
    %10 = vsyncpa [#allocation4], 0
    // Predicated region
    $region2: #{tpu_custom_call.1} parent=1 // pred_check
      _
    $region3: #{tpu_custom_call.1} parent=1 // pred_check_branch
      %12 = sbr.rel (0) target = $region5
    $region4: #{tpu_custom_call.1} parent=1 // pred_region
      %14 = vsyncadd [#allocation3], 0
      %s15 = sshll.u32 %s0, 4
      %s16 = int_to_ptr.hbm [resolvable:$true] %s15
      %s17 = sshll.u32 [#allocation2], 4
      %s18 = int_to_ptr.vmem [resolvable:$true] %s17
      %23 = dma.hbm_to_vmem [thread:$0]  %s16, 4096, %s18, [#allocation3], 2048, 2048, 128
    $region5: #{tpu_custom_call.1} parent=1 // pred_fallthru
      _
    // Predicated region
    $region6: #{tpu_custom_call.1} parent=1 // pred_check
      _
    $region7: #{tpu_custom_call.1} parent=1 // pred_check_branch
      %25 = sbr.rel (0) target = $region9
    $region8: #{tpu_custom_call.1} parent=1 // pred_region
      %27 = vsyncadd [#allocation6], 0
      %s28 = sshll.u32 %s1, 4
      %s29 = int_to_ptr.hbm [resolvable:$true] %s28
      %s30 = sshll.u32 [#allocation5], 4
      %s31 = int_to_ptr.vmem [resolvable:$true] %s30
      %36 = dma.hbm_to_vmem [thread:$0]  %s29, 65536, %s31, [#allocation6], 128, 128, 8
    $region9: #{tpu_custom_call.1} parent=1 // pred_fallthru
      _
    // Predicated region
    $region10: #{tpu_custom_call.1} parent=1 // pred_check
      _
    $region11: #{tpu_custom_call.1} parent=1 // pred_check_branch
      %38 = sbr.rel (0) target = $region13
    $region12: #{tpu_custom_call.1} parent=1 // pred_region
      %40 = vsyncadd [#allocation6], 0
      %s42 = sshll.u32 %s2, 4
      %s43 = int_to_ptr.hbm [resolvable:$true] %s42
      %s44 = sshll.u32 [#allocation7], 4
      %s45 = int_to_ptr.vmem [resolvable:$true] %s44
      %47 = dma.hbm_to_vmem [thread:$0]  %s43, 32, %s45, [#allocation6]
    $region13: #{tpu_custom_call.1} parent=1 // pred_fallthru
      _
    // Predicated region
    $region14: #{tpu_custom_call.1} parent=1 // pred_check
      _
    $region15: #{tpu_custom_call.1} parent=1 // pred_check_branch
      %49 = sbr.rel (0) target = $region17
    $region16: #{tpu_custom_call.1} parent=1 // pred_region
      %51 = dma.done [#allocation3], 4096
    $region17: #{tpu_custom_call.1} parent=1 // pred_fallthru
      _
    // Predicated region
    $region18: #{tpu_custom_call.1} parent=1 // pred_check
      _
    $region19: #{tpu_custom_call.1} parent=1 // pred_check_branch
      %53 = sbr.rel (0) target = $region21
    $region20: #{tpu_custom_call.1} parent=1 // pred_region
      %55 = dma.done [#allocation6], 65536
    $region21: #{tpu_custom_call.1} parent=1 // pred_fallthru
      _
    // Predicated region
    $region22: #{tpu_custom_call.1} parent=1 // pred_check
      _
    $region23: #{tpu_custom_call.1} parent=1 // pred_check_branch
      %57 = sbr.rel (0) target = $region25
    $region24: #{tpu_custom_call.1} parent=1 // pred_region
      %59 = dma.done [#allocation6], 32
    $region25: #{tpu_custom_call.1} parent=1 // pred_fallthru
      _
    %v60 = vld [vmem:[#allocation2] sm:$0xff]
    %v61 = vld [vmem:[#allocation2 + $0x8] sm:$0xff]
    %v62 = vld [vmem:[#allocation2 + $0x10] sm:$0xff]
    %v63 = vld [vmem:[#allocation2 + $0x18] sm:$0xff]
    %v64 = vld [vmem:[#allocation2 + $0x20] sm:$0xff]
    %v65 = vld [vmem:[#allocation2 + $0x28] sm:$0xff]
    %v66 = vld [vmem:[#allocation2 + $0x30] sm:$0xff]
    %v67 = vld [vmem:[#allocation2 + $0x38] sm:$0xff]
    %v68 = vld [vmem:[#allocation2 + $0x40] sm:$0xff]
    %v69 = vld [vmem:[#allocation2 + $0x48] sm:$0xff]
    %v70 = vld [vmem:[#allocation2 + $0x50] sm:$0xff]
    %v71 = vld [vmem:[#allocation2 + $0x58] sm:$0xff]
    %v72 = vld [vmem:[#allocation2 + $0x60] sm:$0xff]
    %v73 = vld [vmem:[#allocation2 + $0x68] sm:$0xff]
    %v74 = vld [vmem:[#allocation2 + $0x70] sm:$0xff]
    %v75 = vld [vmem:[#allocation2 + $0x78] sm:$0xff]
    %v76 = vld [vmem:[#allocation2 + $0x80] sm:$0xff]
    %v77 = vld [vmem:[#allocation2 + $0x88] sm:$0xff]
    %v78 = vld [vmem:[#allocation2 + $0x90] sm:$0xff]
    %v79 = vld [vmem:[#allocation2 + $0x98] sm:$0xff]
    %v80 = vld [vmem:[#allocation2 + $0xa0] sm:$0xff]
    %v81 = vld [vmem:[#allocation2 + $0xa8] sm:$0xff]
    %v82 = vld [vmem:[#allocation2 + $0xb0] sm:$0xff]
    %v83 = vld [vmem:[#allocation2 + $0xb8] sm:$0xff]
    %v84 = vld [vmem:[#allocation2 + $0xc0] sm:$0xff]
    %v85 = vld [vmem:[#allocation2 + $0xc8] sm:$0xff]
    %v86 = vld [vmem:[#allocation2 + $0xd0] sm:$0xff]
    %v87 = vld [vmem:[#allocation2 + $0xd8] sm:$0xff]
    %v88 = vld [vmem:[#allocation2 + $0xe0] sm:$0xff]
    %v89 = vld [vmem:[#allocation2 + $0xe8] sm:$0xff]
    %v90 = vld [vmem:[#allocation2 + $0xf0] sm:$0xff]
    %v91 = vld [vmem:[#allocation2 + $0xf8] sm:$0xff]
    %v92 = vld [vmem:[#allocation5] sm:$0xff]
    %v93 = vld [vmem:[#allocation5 + $0x8] sm:$0xff]
    %v94 = vld [vmem:[#allocation5 + $0x10] sm:$0xff]
    %v95 = vld [vmem:[#allocation5 + $0x18] sm:$0xff]
    %v96 = vld [vmem:[#allocation5 + $0x20] sm:$0xff]
    %v97 = vld [vmem:[#allocation5 + $0x28] sm:$0xff]
    %v98 = vld [vmem:[#allocation5 + $0x30] sm:$0xff]
    %v99 = vld [vmem:[#allocation5 + $0x38] sm:$0xff]
    %v100 = vld [vmem:[#allocation5 + $0x40] sm:$0xff]
    %v101 = vld [vmem:[#allocation5 + $0x48] sm:$0xff]
    %v102 = vld [vmem:[#allocation5 + $0x50] sm:$0xff]
    %v103 = vld [vmem:[#allocation5 + $0x58] sm:$0xff]
    %v104 = vld [vmem:[#allocation5 + $0x60] sm:$0xff]
    %v105 = vld [vmem:[#allocation5 + $0x68] sm:$0xff]
    %v106 = vld [vmem:[#allocation5 + $0x70] sm:$0xff]
    %v107 = vld [vmem:[#allocation5 + $0x78] sm:$0xff]
    %v108 = vld [vmem:[#allocation5 + $0x80] sm:$0xff]
    %v109 = vld [vmem:[#allocation5 + $0x88] sm:$0xff]
    %v110 = vld [vmem:[#allocation5 + $0x90] sm:$0xff]
    %v111 = vld [vmem:[#allocation5 + $0x98] sm:$0xff]
    %v112 = vld [vmem:[#allocation5 + $0xa0] sm:$0xff]
    %v113 = vld [vmem:[#allocation5 + $0xa8] sm:$0xff]
    %v114 = vld [vmem:[#allocation5 + $0xb0] sm:$0xff]
    %v115 = vld [vmem:[#allocation5 + $0xb8] sm:$0xff]
    %v116 = vld [vmem:[#allocation5 + $0xc0] sm:$0xff]
    %v117 = vld [vmem:[#allocation5 + $0xc8] sm:$0xff]
    %v118 = vld [vmem:[#allocation5 + $0xd0] sm:$0xff]
    %v119 = vld [vmem:[#allocation5 + $0xd8] sm:$0xff]
    %v120 = vld [vmem:[#allocation5 + $0xe0] sm:$0xff]
    %v121 = vld [vmem:[#allocation5 + $0xe8] sm:$0xff]
    %v122 = vld [vmem:[#allocation5 + $0xf0] sm:$0xff]
    %v123 = vld [vmem:[#allocation5 + $0xf8] sm:$0xff]
    %v124 = vld [vmem:[#allocation5 + $0x100] sm:$0xff]
    %v125 = vld [vmem:[#allocation5 + $0x108] sm:$0xff]
    %v126 = vld [vmem:[#allocation5 + $0x110] sm:$0xff]
    %v127 = vld [vmem:[#allocation5 + $0x118] sm:$0xff]
    %v128 = vld [vmem:[#allocation5 + $0x120] sm:$0xff]
    %v129 = vld [vmem:[#allocation5 + $0x128] sm:$0xff]
    %v130 = vld [vmem:[#allocation5 + $0x130] sm:$0xff]
    %v131 = vld [vmem:[#allocation5 + $0x138] sm:$0xff]
    %v132 = vld [vmem:[#allocation5 + $0x140] sm:$0xff]
    %v133 = vld [vmem:[#allocation5 + $0x148] sm:$0xff]
    %v134 = vld [vmem:[#allocation5 + $0x150] sm:$0xff]
    %v135 = vld [vmem:[#allocation5 + $0x158] sm:$0xff]
    %v136 = vld [vmem:[#allocation5 + $0x160] sm:$0xff]
    %v137 = vld [vmem:[#allocation5 + $0x168] sm:$0xff]
    %v138 = vld [vmem:[#allocation5 + $0x170] sm:$0xff]
    %v139 = vld [vmem:[#allocation5 + $0x178] sm:$0xff]
    %v140 = vld [vmem:[#allocation5 + $0x180] sm:$0xff]
    %v141 = vld [vmem:[#allocation5 + $0x188] sm:$0xff]
    %v142 = vld [vmem:[#allocation5 + $0x190] sm:$0xff]
    %v143 = vld [vmem:[#allocation5 + $0x198] sm:$0xff]
    %v144 = vld [vmem:[#allocation5 + $0x1a0] sm:$0xff]
    %v145 = vld [vmem:[#allocation5 + $0x1a8] sm:$0xff]
    %v146 = vld [vmem:[#allocation5 + $0x1b0] sm:$0xff]
    %v147 = vld [vmem:[#allocation5 + $0x1b8] sm:$0xff]
    %v148 = vld [vmem:[#allocation5 + $0x1c0] sm:$0xff]
    %v149 = vld [vmem:[#allocation5 + $0x1c8] sm:$0xff]
    %v150 = vld [vmem:[#allocation5 + $0x1d0] sm:$0xff]
    %v151 = vld [vmem:[#allocation5 + $0x1d8] sm:$0xff]
    %v152 = vld [vmem:[#allocation5 + $0x1e0] sm:$0xff]
    %v153 = vld [vmem:[#allocation5 + $0x1e8] sm:$0xff]
    %v154 = vld [vmem:[#allocation5 + $0x1f0] sm:$0xff]
    %v155 = vld [vmem:[#allocation5 + $0x1f8] sm:$0xff]
    %v156 = vld [vmem:[#allocation5 + $0x200] sm:$0xff]
    %v157 = vld [vmem:[#allocation5 + $0x208] sm:$0xff]
    %v158 = vld [vmem:[#allocation5 + $0x210] sm:$0xff]
    %v159 = vld [vmem:[#allocation5 + $0x218] sm:$0xff]
    %v160 = vld [vmem:[#allocation5 + $0x220] sm:$0xff]
    %v161 = vld [vmem:[#allocation5 + $0x228] sm:$0xff]
    %v162 = vld [vmem:[#allocation5 + $0x230] sm:$0xff]
    %v163 = vld [vmem:[#allocation5 + $0x238] sm:$0xff]
    %v164 = vld [vmem:[#allocation5 + $0x240] sm:$0xff]
    %v165 = vld [vmem:[#allocation5 + $0x248] sm:$0xff]
    %v166 = vld [vmem:[#allocation5 + $0x250] sm:$0xff]
    %v167 = vld [vmem:[#allocation5 + $0x258] sm:$0xff]
    %v168 = vld [vmem:[#allocation5 + $0x260] sm:$0xff]
    %v169 = vld [vmem:[#allocation5 + $0x268] sm:$0xff]
    %v170 = vld [vmem:[#allocation5 + $0x270] sm:$0xff]
    %v171 = vld [vmem:[#allocation5 + $0x278] sm:$0xff]
    %v172 = vld [vmem:[#allocation5 + $0x280] sm:$0xff]
    %v173 = vld [vmem:[#allocation5 + $0x288] sm:$0xff]
    %v174 = vld [vmem:[#allocation5 + $0x290] sm:$0xff]
    %v175 = vld [vmem:[#allocation5 + $0x298] sm:$0xff]
    %v176 = vld [vmem:[#allocation5 + $0x2a0] sm:$0xff]
    %v177 = vld [vmem:[#allocation5 + $0x2a8] sm:$0xff]
    %v178 = vld [vmem:[#allocation5 + $0x2b0] sm:$0xff]
    %v179 = vld [vmem:[#allocation5 + $0x2b8] sm:$0xff]
    %v180 = vld [vmem:[#allocation5 + $0x2c0] sm:$0xff]
    %v181 = vld [vmem:[#allocation5 + $0x2c8] sm:$0xff]
    %v182 = vld [vmem:[#allocation5 + $0x2d0] sm:$0xff]
    %v183 = vld [vmem:[#allocation5 + $0x2d8] sm:$0xff]
    %v184 = vld [vmem:[#allocation5 + $0x2e0] sm:$0xff]
    %v185 = vld [vmem:[#allocation5 + $0x2e8] sm:$0xff]
    %v186 = vld [vmem:[#allocation5 + $0x2f0] sm:$0xff]
    %v187 = vld [vmem:[#allocation5 + $0x2f8] sm:$0xff]
    %v188 = vld [vmem:[#allocation5 + $0x300] sm:$0xff]
    %v189 = vld [vmem:[#allocation5 + $0x308] sm:$0xff]
    %v190 = vld [vmem:[#allocation5 + $0x310] sm:$0xff]
    %v191 = vld [vmem:[#allocation5 + $0x318] sm:$0xff]
    %v192 = vld [vmem:[#allocation5 + $0x320] sm:$0xff]
    %v193 = vld [vmem:[#allocation5 + $0x328] sm:$0xff]
    %v194 = vld [vmem:[#allocation5 + $0x330] sm:$0xff]
    %v195 = vld [vmem:[#allocation5 + $0x338] sm:$0xff]
    %v196 = vld [vmem:[#allocation5 + $0x340] sm:$0xff]
    %v197 = vld [vmem:[#allocation5 + $0x348] sm:$0xff]
    %v198 = vld [vmem:[#allocation5 + $0x350] sm:$0xff]
    %v199 = vld [vmem:[#allocation5 + $0x358] sm:$0xff]
    %v200 = vld [vmem:[#allocation5 + $0x360] sm:$0xff]
    %v201 = vld [vmem:[#allocation5 + $0x368] sm:$0xff]
    %v202 = vld [vmem:[#allocation5 + $0x370] sm:$0xff]
    %v203 = vld [vmem:[#allocation5 + $0x378] sm:$0xff]
    %v204 = vld [vmem:[#allocation5 + $0x380] sm:$0xff]
    %v205 = vld [vmem:[#allocation5 + $0x388] sm:$0xff]
    %v206 = vld [vmem:[#allocation5 + $0x390] sm:$0xff]
    %v207 = vld [vmem:[#allocation5 + $0x398] sm:$0xff]
    %v208 = vld [vmem:[#allocation5 + $0x3a0] sm:$0xff]
    %v209 = vld [vmem:[#allocation5 + $0x3a8] sm:$0xff]
    %v210 = vld [vmem:[#allocation5 + $0x3b0] sm:$0xff]
    %v211 = vld [vmem:[#allocation5 + $0x3b8] sm:$0xff]
    %v212 = vld [vmem:[#allocation5 + $0x3c0] sm:$0xff]
    %v213 = vld [vmem:[#allocation5 + $0x3c8] sm:$0xff]
    %v214 = vld [vmem:[#allocation5 + $0x3d0] sm:$0xff]
    %v215 = vld [vmem:[#allocation5 + $0x3d8] sm:$0xff]
    %v216 = vld [vmem:[#allocation5 + $0x3e0] sm:$0xff]
    %v217 = vld [vmem:[#allocation5 + $0x3e8] sm:$0xff]
    %v218 = vld [vmem:[#allocation5 + $0x3f0] sm:$0xff]
    %v219 = vld [vmem:[#allocation5 + $0x3f8] sm:$0xff]
    %v220 = vld [vmem:[#allocation5 + $0x400] sm:$0xff]
    %v221 = vld [vmem:[#allocation5 + $0x408] sm:$0xff]
    %v222 = vld [vmem:[#allocation5 + $0x410] sm:$0xff]
    %v223 = vld [vmem:[#allocation5 + $0x418] sm:$0xff]
    %v224 = vld [vmem:[#allocation5 + $0x420] sm:$0xff]
    %v225 = vld [vmem:[#allocation5 + $0x428] sm:$0xff]
    %v226 = vld [vmem:[#allocation5 + $0x430] sm:$0xff]
    %v227 = vld [vmem:[#allocation5 + $0x438] sm:$0xff]
    %v228 = vld [vmem:[#allocation5 + $0x440] sm:$0xff]
    %v229 = vld [vmem:[#allocation5 + $0x448] sm:$0xff]
    %v230 = vld [vmem:[#allocation5 + $0x450] sm:$0xff]
    %v231 = vld [vmem:[#allocation5 + $0x458] sm:$0xff]
    %v232 = vld [vmem:[#allocation5 + $0x460] sm:$0xff]
    %v233 = vld [vmem:[#allocation5 + $0x468] sm:$0xff]
    %v234 = vld [vmem:[#allocation5 + $0x470] sm:$0xff]
    %v235 = vld [vmem:[#allocation5 + $0x478] sm:$0xff]
    %v236 = vld [vmem:[#allocation5 + $0x480] sm:$0xff]
    %v237 = vld [vmem:[#allocation5 + $0x488] sm:$0xff]
    %v238 = vld [vmem:[#allocation5 + $0x490] sm:$0xff]
    %v239 = vld [vmem:[#allocation5 + $0x498] sm:$0xff]
    %v240 = vld [vmem:[#allocation5 + $0x4a0] sm:$0xff]
    %v241 = vld [vmem:[#allocation5 + $0x4a8] sm:$0xff]
    %v242 = vld [vmem:[#allocation5 + $0x4b0] sm:$0xff]
    %v243 = vld [vmem:[#allocation5 + $0x4b8] sm:$0xff]
    %v244 = vld [vmem:[#allocation5 + $0x4c0] sm:$0xff]
    %v245 = vld [vmem:[#allocation5 + $0x4c8] sm:$0xff]
    %v246 = vld [vmem:[#allocation5 + $0x4d0] sm:$0xff]
    %v247 = vld [vmem:[#allocation5 + $0x4d8] sm:$0xff]
    %v248 = vld [vmem:[#allocation5 + $0x4e0] sm:$0xff]
    %v249 = vld [vmem:[#allocation5 + $0x4e8] sm:$0xff]
    %v250 = vld [vmem:[#allocation5 + $0x4f0] sm:$0xff]
    %v251 = vld [vmem:[#allocation5 + $0x4f8] sm:$0xff]
    %v252 = vld [vmem:[#allocation5 + $0x500] sm:$0xff]
    %v253 = vld [vmem:[#allocation5 + $0x508] sm:$0xff]
    %v254 = vld [vmem:[#allocation5 + $0x510] sm:$0xff]
    %v255 = vld [vmem:[#allocation5 + $0x518] sm:$0xff]
    %v256 = vld [vmem:[#allocation5 + $0x520] sm:$0xff]
    %v257 = vld [vmem:[#allocation5 + $0x528] sm:$0xff]
    %v258 = vld [vmem:[#allocation5 + $0x530] sm:$0xff]
    %v259 = vld [vmem:[#allocation5 + $0x538] sm:$0xff]
    %v260 = vld [vmem:[#allocation5 + $0x540] sm:$0xff]
    %v261 = vld [vmem:[#allocation5 + $0x548] sm:$0xff]
    %v262 = vld [vmem:[#allocation5 + $0x550] sm:$0xff]
    %v263 = vld [vmem:[#allocation5 + $0x558] sm:$0xff]
    %v264 = vld [vmem:[#allocation5 + $0x560] sm:$0xff]
    %v265 = vld [vmem:[#allocation5 + $0x568] sm:$0xff]
    %v266 = vld [vmem:[#allocation5 + $0x570] sm:$0xff]
    %v267 = vld [vmem:[#allocation5 + $0x578] sm:$0xff]
    %v268 = vld [vmem:[#allocation5 + $0x580] sm:$0xff]
    %v269 = vld [vmem:[#allocation5 + $0x588] sm:$0xff]
    %v270 = vld [vmem:[#allocation5 + $0x590] sm:$0xff]
    %v271 = vld [vmem:[#allocation5 + $0x598] sm:$0xff]
    %v272 = vld [vmem:[#allocation5 + $0x5a0] sm:$0xff]
    %v273 = vld [vmem:[#allocation5 + $0x5a8] sm:$0xff]
    %v274 = vld [vmem:[#allocation5 + $0x5b0] sm:$0xff]
    %v275 = vld [vmem:[#allocation5 + $0x5b8] sm:$0xff]
    %v276 = vld [vmem:[#allocation5 + $0x5c0] sm:$0xff]
    %v277 = vld [vmem:[#allocation5 + $0x5c8] sm:$0xff]
    %v278 = vld [vmem:[#allocation5 + $0x5d0] sm:$0xff]
    %v279 = vld [vmem:[#allocation5 + $0x5d8] sm:$0xff]
    %v280 = vld [vmem:[#allocation5 + $0x5e0] sm:$0xff]
    %v281 = vld [vmem:[#allocation5 + $0x5e8] sm:$0xff]
    %v282 = vld [vmem:[#allocation5 + $0x5f0] sm:$0xff]
    %v283 = vld [vmem:[#allocation5 + $0x5f8] sm:$0xff]
    %v284 = vld [vmem:[#allocation5 + $0x600] sm:$0xff]
    %v285 = vld [vmem:[#allocation5 + $0x608] sm:$0xff]
    %v286 = vld [vmem:[#allocation5 + $0x610] sm:$0xff]
    %v287 = vld [vmem:[#allocation5 + $0x618] sm:$0xff]
    %v288 = vld [vmem:[#allocation5 + $0x620] sm:$0xff]
    %v289 = vld [vmem:[#allocation5 + $0x628] sm:$0xff]
    %v290 = vld [vmem:[#allocation5 + $0x630] sm:$0xff]
    %v291 = vld [vmem:[#allocation5 + $0x638] sm:$0xff]
    %v292 = vld [vmem:[#allocation5 + $0x640] sm:$0xff]
    %v293 = vld [vmem:[#allocation5 + $0x648] sm:$0xff]
    %v294 = vld [vmem:[#allocation5 + $0x650] sm:$0xff]
    %v295 = vld [vmem:[#allocation5 + $0x658] sm:$0xff]
    %v296 = vld [vmem:[#allocation5 + $0x660] sm:$0xff]
    %v297 = vld [vmem:[#allocation5 + $0x668] sm:$0xff]
    %v298 = vld [vmem:[#allocation5 + $0x670] sm:$0xff]
    %v299 = vld [vmem:[#allocation5 + $0x678] sm:$0xff]
    %v300 = vld [vmem:[#allocation5 + $0x680] sm:$0xff]
    %v301 = vld [vmem:[#allocation5 + $0x688] sm:$0xff]
    %v302 = vld [vmem:[#allocation5 + $0x690] sm:$0xff]
    %v303 = vld [vmem:[#allocation5 + $0x698] sm:$0xff]
    %v304 = vld [vmem:[#allocation5 + $0x6a0] sm:$0xff]
    %v305 = vld [vmem:[#allocation5 + $0x6a8] sm:$0xff]
    %v306 = vld [vmem:[#allocation5 + $0x6b0] sm:$0xff]
    %v307 = vld [vmem:[#allocation5 + $0x6b8] sm:$0xff]
    %v308 = vld [vmem:[#allocation5 + $0x6c0] sm:$0xff]
    %v309 = vld [vmem:[#allocation5 + $0x6c8] sm:$0xff]
    %v310 = vld [vmem:[#allocation5 + $0x6d0] sm:$0xff]
    %v311 = vld [vmem:[#allocation5 + $0x6d8] sm:$0xff]
    %v312 = vld [vmem:[#allocation5 + $0x6e0] sm:$0xff]
    %v313 = vld [vmem:[#allocation5 + $0x6e8] sm:$0xff]
    %v314 = vld [vmem:[#allocation5 + $0x6f0] sm:$0xff]
    %v315 = vld [vmem:[#allocation5 + $0x6f8] sm:$0xff]
    %v316 = vld [vmem:[#allocation5 + $0x700] sm:$0xff]
    %v317 = vld [vmem:[#allocation5 + $0x708] sm:$0xff]
    %v318 = vld [vmem:[#allocation5 + $0x710] sm:$0xff]
    %v319 = vld [vmem:[#allocation5 + $0x718] sm:$0xff]
    %v320 = vld [vmem:[#allocation5 + $0x720] sm:$0xff]
    %v321 = vld [vmem:[#allocation5 + $0x728] sm:$0xff]
    %v322 = vld [vmem:[#allocation5 + $0x730] sm:$0xff]
    %v323 = vld [vmem:[#allocation5 + $0x738] sm:$0xff]
    %v324 = vld [vmem:[#allocation5 + $0x740] sm:$0xff]
    %v325 = vld [vmem:[#allocation5 + $0x748] sm:$0xff]
    %v326 = vld [vmem:[#allocation5 + $0x750] sm:$0xff]
    %v327 = vld [vmem:[#allocation5 + $0x758] sm:$0xff]
    %v328 = vld [vmem:[#allocation5 + $0x760] sm:$0xff]
    %v329 = vld [vmem:[#allocation5 + $0x768] sm:$0xff]
    %v330 = vld [vmem:[#allocation5 + $0x770] sm:$0xff]
    %v331 = vld [vmem:[#allocation5 + $0x778] sm:$0xff]
    %v332 = vld [vmem:[#allocation5 + $0x780] sm:$0xff]
    %v333 = vld [vmem:[#allocation5 + $0x788] sm:$0xff]
    %v334 = vld [vmem:[#allocation5 + $0x790] sm:$0xff]
    %v335 = vld [vmem:[#allocation5 + $0x798] sm:$0xff]
    %v336 = vld [vmem:[#allocation5 + $0x7a0] sm:$0xff]
    %v337 = vld [vmem:[#allocation5 + $0x7a8] sm:$0xff]
    %v338 = vld [vmem:[#allocation5 + $0x7b0] sm:$0xff]
    %v339 = vld [vmem:[#allocation5 + $0x7b8] sm:$0xff]
    %v340 = vld [vmem:[#allocation5 + $0x7c0] sm:$0xff]
    %v341 = vld [vmem:[#allocation5 + $0x7c8] sm:$0xff]
    %v342 = vld [vmem:[#allocation5 + $0x7d0] sm:$0xff]
    %v343 = vld [vmem:[#allocation5 + $0x7d8] sm:$0xff]
    %v344 = vld [vmem:[#allocation5 + $0x7e0] sm:$0xff]
    %v345 = vld [vmem:[#allocation5 + $0x7e8] sm:$0xff]
    %v346 = vld [vmem:[#allocation5 + $0x7f0] sm:$0xff]
    %v347 = vld [vmem:[#allocation5 + $0x7f8] sm:$0xff]
    %v348 = vld [vmem:[#allocation5 + $0x800] sm:$0xff]
    %v349 = vld [vmem:[#allocation5 + $0x808] sm:$0xff]
    %v350 = vld [vmem:[#allocation5 + $0x810] sm:$0xff]
    %v351 = vld [vmem:[#allocation5 + $0x818] sm:$0xff]
    %v352 = vld [vmem:[#allocation5 + $0x820] sm:$0xff]
    %v353 = vld [vmem:[#allocation5 + $0x828] sm:$0xff]
    %v354 = vld [vmem:[#allocation5 + $0x830] sm:$0xff]
    %v355 = vld [vmem:[#allocation5 + $0x838] sm:$0xff]
    %v356 = vld [vmem:[#allocation5 + $0x840] sm:$0xff]
    %v357 = vld [vmem:[#allocation5 + $0x848] sm:$0xff]
    %v358 = vld [vmem:[#allocation5 + $0x850] sm:$0xff]
    %v359 = vld [vmem:[#allocation5 + $0x858] sm:$0xff]
    %v360 = vld [vmem:[#allocation5 + $0x860] sm:$0xff]
    %v361 = vld [vmem:[#allocation5 + $0x868] sm:$0xff]
    %v362 = vld [vmem:[#allocation5 + $0x870] sm:$0xff]
    %v363 = vld [vmem:[#allocation5 + $0x878] sm:$0xff]
    %v364 = vld [vmem:[#allocation5 + $0x880] sm:$0xff]
    %v365 = vld [vmem:[#allocation5 + $0x888] sm:$0xff]
    %v366 = vld [vmem:[#allocation5 + $0x890] sm:$0xff]
    %v367 = vld [vmem:[#allocation5 + $0x898] sm:$0xff]
    %v368 = vld [vmem:[#allocation5 + $0x8a0] sm:$0xff]
    %v369 = vld [vmem:[#allocation5 + $0x8a8] sm:$0xff]
    %v370 = vld [vmem:[#allocation5 + $0x8b0] sm:$0xff]
    %v371 = vld [vmem:[#allocation5 + $0x8b8] sm:$0xff]
    %v372 = vld [vmem:[#allocation5 + $0x8c0] sm:$0xff]
    %v373 = vld [vmem:[#allocation5 + $0x8c8] sm:$0xff]
    %v374 = vld [vmem:[#allocation5 + $0x8d0] sm:$0xff]
    %v375 = vld [vmem:[#allocation5 + $0x8d8] sm:$0xff]
    %v376 = vld [vmem:[#allocation5 + $0x8e0] sm:$0xff]
    %v377 = vld [vmem:[#allocation5 + $0x8e8] sm:$0xff]
    %v378 = vld [vmem:[#allocation5 + $0x8f0] sm:$0xff]
    %v379 = vld [vmem:[#allocation5 + $0x8f8] sm:$0xff]
    %v380 = vld [vmem:[#allocation5 + $0x900] sm:$0xff]
    %v381 = vld [vmem:[#allocation5 + $0x908] sm:$0xff]
    %v382 = vld [vmem:[#allocation5 + $0x910] sm:$0xff]
    %v383 = vld [vmem:[#allocation5 + $0x918] sm:$0xff]
    %v384 = vld [vmem:[#allocation5 + $0x920] sm:$0xff]
    %v385 = vld [vmem:[#allocation5 + $0x928] sm:$0xff]
    %v386 = vld [vmem:[#allocation5 + $0x930] sm:$0xff]
    %v387 = vld [vmem:[#allocation5 + $0x938] sm:$0xff]
    %v388 = vld [vmem:[#allocation5 + $0x940] sm:$0xff]
    %v389 = vld [vmem:[#allocation5 + $0x948] sm:$0xff]
    %v390 = vld [vmem:[#allocation5 + $0x950] sm:$0xff]
    %v391 = vld [vmem:[#allocation5 + $0x958] sm:$0xff]
    %v392 = vld [vmem:[#allocation5 + $0x960] sm:$0xff]
    %v393 = vld [vmem:[#allocation5 + $0x968] sm:$0xff]
    %v394 = vld [vmem:[#allocation5 + $0x970] sm:$0xff]
    %v395 = vld [vmem:[#allocation5 + $0x978] sm:$0xff]
    %v396 = vld [vmem:[#allocation5 + $0x980] sm:$0xff]
    %v397 = vld [vmem:[#allocation5 + $0x988] sm:$0xff]
    %v398 = vld [vmem:[#allocation5 + $0x990] sm:$0xff]
    %v399 = vld [vmem:[#allocation5 + $0x998] sm:$0xff]
    %v400 = vld [vmem:[#allocation5 + $0x9a0] sm:$0xff]
    %v401 = vld [vmem:[#allocation5 + $0x9a8] sm:$0xff]
    %v402 = vld [vmem:[#allocation5 + $0x9b0] sm:$0xff]
    %v403 = vld [vmem:[#allocation5 + $0x9b8] sm:$0xff]
    %v404 = vld [vmem:[#allocation5 + $0x9c0] sm:$0xff]
    %v405 = vld [vmem:[#allocation5 + $0x9c8] sm:$0xff]
    %v406 = vld [vmem:[#allocation5 + $0x9d0] sm:$0xff]
    %v407 = vld [vmem:[#allocation5 + $0x9d8] sm:$0xff]
    %v408 = vld [vmem:[#allocation5 + $0x9e0] sm:$0xff]
    %v409 = vld [vmem:[#allocation5 + $0x9e8] sm:$0xff]
    %v410 = vld [vmem:[#allocation5 + $0x9f0] sm:$0xff]
    %v411 = vld [vmem:[#allocation5 + $0x9f8] sm:$0xff]
    %v412 = vld [vmem:[#allocation5 + $0xa00] sm:$0xff]
    %v413 = vld [vmem:[#allocation5 + $0xa08] sm:$0xff]
    %v414 = vld [vmem:[#allocation5 + $0xa10] sm:$0xff]
    %v415 = vld [vmem:[#allocation5 + $0xa18] sm:$0xff]
    %v416 = vld [vmem:[#allocation5 + $0xa20] sm:$0xff]
    %v417 = vld [vmem:[#allocation5 + $0xa28] sm:$0xff]
    %v418 = vld [vmem:[#allocation5 + $0xa30] sm:$0xff]
    %v419 = vld [vmem:[#allocation5 + $0xa38] sm:$0xff]
    %v420 = vld [vmem:[#allocation5 + $0xa40] sm:$0xff]
    %v421 = vld [vmem:[#allocation5 + $0xa48] sm:$0xff]
    %v422 = vld [vmem:[#allocation5 + $0xa50] sm:$0xff]
    %v423 = vld [vmem:[#allocation5 + $0xa58] sm:$0xff]
    %v424 = vld [vmem:[#allocation5 + $0xa60] sm:$0xff]
    %v425 = vld [vmem:[#allocation5 + $0xa68] sm:$0xff]
    %v426 = vld [vmem:[#allocation5 + $0xa70] sm:$0xff]
    %v427 = vld [vmem:[#allocation5 + $0xa78] sm:$0xff]
    %v428 = vld [vmem:[#allocation5 + $0xa80] sm:$0xff]
    %v429 = vld [vmem:[#allocation5 + $0xa88] sm:$0xff]
    %v430 = vld [vmem:[#allocation5 + $0xa90] sm:$0xff]
    %v431 = vld [vmem:[#allocation5 + $0xa98] sm:$0xff]
    %v432 = vld [vmem:[#allocation5 + $0xaa0] sm:$0xff]
    %v433 = vld [vmem:[#allocation5 + $0xaa8] sm:$0xff]
    %v434 = vld [vmem:[#allocation5 + $0xab0] sm:$0xff]
    %v435 = vld [vmem:[#allocation5 + $0xab8] sm:$0xff]
    %v436 = vld [vmem:[#allocation5 + $0xac0] sm:$0xff]
    %v437 = vld [vmem:[#allocation5 + $0xac8] sm:$0xff]
    %v438 = vld [vmem:[#allocation5 + $0xad0] sm:$0xff]
    %v439 = vld [vmem:[#allocation5 + $0xad8] sm:$0xff]
    %v440 = vld [vmem:[#allocation5 + $0xae0] sm:$0xff]
    %v441 = vld [vmem:[#allocation5 + $0xae8] sm:$0xff]
    %v442 = vld [vmem:[#allocation5 + $0xaf0] sm:$0xff]
    %v443 = vld [vmem:[#allocation5 + $0xaf8] sm:$0xff]
    %v444 = vld [vmem:[#allocation5 + $0xb00] sm:$0xff]
    %v445 = vld [vmem:[#allocation5 + $0xb08] sm:$0xff]
    %v446 = vld [vmem:[#allocation5 + $0xb10] sm:$0xff]
    %v447 = vld [vmem:[#allocation5 + $0xb18] sm:$0xff]
    %v448 = vld [vmem:[#allocation5 + $0xb20] sm:$0xff]
    %v449 = vld [vmem:[#allocation5 + $0xb28] sm:$0xff]
    %v450 = vld [vmem:[#allocation5 + $0xb30] sm:$0xff]
    %v451 = vld [vmem:[#allocation5 + $0xb38] sm:$0xff]
    %v452 = vld [vmem:[#allocation5 + $0xb40] sm:$0xff]
    %v453 = vld [vmem:[#allocation5 + $0xb48] sm:$0xff]
    %v454 = vld [vmem:[#allocation5 + $0xb50] sm:$0xff]
    %v455 = vld [vmem:[#allocation5 + $0xb58] sm:$0xff]
    %v456 = vld [vmem:[#allocation5 + $0xb60] sm:$0xff]
    %v457 = vld [vmem:[#allocation5 + $0xb68] sm:$0xff]
    %v458 = vld [vmem:[#allocation5 + $0xb70] sm:$0xff]
    %v459 = vld [vmem:[#allocation5 + $0xb78] sm:$0xff]
    %v460 = vld [vmem:[#allocation5 + $0xb80] sm:$0xff]
    %v461 = vld [vmem:[#allocation5 + $0xb88] sm:$0xff]
    %v462 = vld [vmem:[#allocation5 + $0xb90] sm:$0xff]
    %v463 = vld [vmem:[#allocation5 + $0xb98] sm:$0xff]
    %v464 = vld [vmem:[#allocation5 + $0xba0] sm:$0xff]
    %v465 = vld [vmem:[#allocation5 + $0xba8] sm:$0xff]
    %v466 = vld [vmem:[#allocation5 + $0xbb0] sm:$0xff]
    %v467 = vld [vmem:[#allocation5 + $0xbb8] sm:$0xff]
    %v468 = vld [vmem:[#allocation5 + $0xbc0] sm:$0xff]
    %v469 = vld [vmem:[#allocation5 + $0xbc8] sm:$0xff]
    %v470 = vld [vmem:[#allocation5 + $0xbd0] sm:$0xff]
    %v471 = vld [vmem:[#allocation5 + $0xbd8] sm:$0xff]
    %v472 = vld [vmem:[#allocation5 + $0xbe0] sm:$0xff]
    %v473 = vld [vmem:[#allocation5 + $0xbe8] sm:$0xff]
    %v474 = vld [vmem:[#allocation5 + $0xbf0] sm:$0xff]
    %v475 = vld [vmem:[#allocation5 + $0xbf8] sm:$0xff]
    %v476 = vld [vmem:[#allocation5 + $0xc00] sm:$0xff]
    %v477 = vld [vmem:[#allocation5 + $0xc08] sm:$0xff]
    %v478 = vld [vmem:[#allocation5 + $0xc10] sm:$0xff]
    %v479 = vld [vmem:[#allocation5 + $0xc18] sm:$0xff]
    %v480 = vld [vmem:[#allocation5 + $0xc20] sm:$0xff]
    %v481 = vld [vmem:[#allocation5 + $0xc28] sm:$0xff]
    %v482 = vld [vmem:[#allocation5 + $0xc30] sm:$0xff]
    %v483 = vld [vmem:[#allocation5 + $0xc38] sm:$0xff]
    %v484 = vld [vmem:[#allocation5 + $0xc40] sm:$0xff]
    %v485 = vld [vmem:[#allocation5 + $0xc48] sm:$0xff]
    %v486 = vld [vmem:[#allocation5 + $0xc50] sm:$0xff]
    %v487 = vld [vmem:[#allocation5 + $0xc58] sm:$0xff]
    %v488 = vld [vmem:[#allocation5 + $0xc60] sm:$0xff]
    %v489 = vld [vmem:[#allocation5 + $0xc68] sm:$0xff]
    %v490 = vld [vmem:[#allocation5 + $0xc70] sm:$0xff]
    %v491 = vld [vmem:[#allocation5 + $0xc78] sm:$0xff]
    %v492 = vld [vmem:[#allocation5 + $0xc80] sm:$0xff]
    %v493 = vld [vmem:[#allocation5 + $0xc88] sm:$0xff]
    %v494 = vld [vmem:[#allocation5 + $0xc90] sm:$0xff]
    %v495 = vld [vmem:[#allocation5 + $0xc98] sm:$0xff]
    %v496 = vld [vmem:[#allocation5 + $0xca0] sm:$0xff]
    %v497 = vld [vmem:[#allocation5 + $0xca8] sm:$0xff]
    %v498 = vld [vmem:[#allocation5 + $0xcb0] sm:$0xff]
    %v499 = vld [vmem:[#allocation5 + $0xcb8] sm:$0xff]
    %v500 = vld [vmem:[#allocation5 + $0xcc0] sm:$0xff]
    %v501 = vld [vmem:[#allocation5 + $0xcc8] sm:$0xff]
    %v502 = vld [vmem:[#allocation5 + $0xcd0] sm:$0xff]
    %v503 = vld [vmem:[#allocation5 + $0xcd8] sm:$0xff]
    %v504 = vld [vmem:[#allocation5 + $0xce0] sm:$0xff]
    %v505 = vld [vmem:[#allocation5 + $0xce8] sm:$0xff]
    %v506 = vld [vmem:[#allocation5 + $0xcf0] sm:$0xff]
    %v507 = vld [vmem:[#allocation5 + $0xcf8] sm:$0xff]
    %v508 = vld [vmem:[#allocation5 + $0xd00] sm:$0xff]
    %v509 = vld [vmem:[#allocation5 + $0xd08] sm:$0xff]
    %v510 = vld [vmem:[#allocation5 + $0xd10] sm:$0xff]
    %v511 = vld [vmem:[#allocation5 + $0xd18] sm:$0xff]
    %v512 = vld [vmem:[#allocation5 + $0xd20] sm:$0xff]
    %v513 = vld [vmem:[#allocation5 + $0xd28] sm:$0xff]
    %v514 = vld [vmem:[#allocation5 + $0xd30] sm:$0xff]
    %v515 = vld [vmem:[#allocation5 + $0xd38] sm:$0xff]
    %v516 = vld [vmem:[#allocation5 + $0xd40] sm:$0xff]
    %v517 = vld [vmem:[#allocation5 + $0xd48] sm:$0xff]
    %v518 = vld [vmem:[#allocation5 + $0xd50] sm:$0xff]
    %v519 = vld [vmem:[#allocation5 + $0xd58] sm:$0xff]
    %v520 = vld [vmem:[#allocation5 + $0xd60] sm:$0xff]
    %v521 = vld [vmem:[#allocation5 + $0xd68] sm:$0xff]
    %v522 = vld [vmem:[#allocation5 + $0xd70] sm:$0xff]
    %v523 = vld [vmem:[#allocation5 + $0xd78] sm:$0xff]
    %v524 = vld [vmem:[#allocation5 + $0xd80] sm:$0xff]
    %v525 = vld [vmem:[#allocation5 + $0xd88] sm:$0xff]
    %v526 = vld [vmem:[#allocation5 + $0xd90] sm:$0xff]
    %v527 = vld [vmem:[#allocation5 + $0xd98] sm:$0xff]
    %v528 = vld [vmem:[#allocation5 + $0xda0] sm:$0xff]
    %v529 = vld [vmem:[#allocation5 + $0xda8] sm:$0xff]
    %v530 = vld [vmem:[#allocation5 + $0xdb0] sm:$0xff]
    %v531 = vld [vmem:[#allocation5 + $0xdb8] sm:$0xff]
    %v532 = vld [vmem:[#allocation5 + $0xdc0] sm:$0xff]
    %v533 = vld [vmem:[#allocation5 + $0xdc8] sm:$0xff]
    %v534 = vld [vmem:[#allocation5 + $0xdd0] sm:$0xff]
    %v535 = vld [vmem:[#allocation5 + $0xdd8] sm:$0xff]
    %v536 = vld [vmem:[#allocation5 + $0xde0] sm:$0xff]
    %v537 = vld [vmem:[#allocation5 + $0xde8] sm:$0xff]
    %v538 = vld [vmem:[#allocation5 + $0xdf0] sm:$0xff]
    %v539 = vld [vmem:[#allocation5 + $0xdf8] sm:$0xff]
    %v540 = vld [vmem:[#allocation5 + $0xe00] sm:$0xff]
    %v541 = vld [vmem:[#allocation5 + $0xe08] sm:$0xff]
    %v542 = vld [vmem:[#allocation5 + $0xe10] sm:$0xff]
    %v543 = vld [vmem:[#allocation5 + $0xe18] sm:$0xff]
    %v544 = vld [vmem:[#allocation5 + $0xe20] sm:$0xff]
    %v545 = vld [vmem:[#allocation5 + $0xe28] sm:$0xff]
    %v546 = vld [vmem:[#allocation5 + $0xe30] sm:$0xff]
    %v547 = vld [vmem:[#allocation5 + $0xe38] sm:$0xff]
    %v548 = vld [vmem:[#allocation5 + $0xe40] sm:$0xff]
    %v549 = vld [vmem:[#allocation5 + $0xe48] sm:$0xff]
    %v550 = vld [vmem:[#allocation5 + $0xe50] sm:$0xff]
    %v551 = vld [vmem:[#allocation5 + $0xe58] sm:$0xff]
    %v552 = vld [vmem:[#allocation5 + $0xe60] sm:$0xff]
    %v553 = vld [vmem:[#allocation5 + $0xe68] sm:$0xff]
    %v554 = vld [vmem:[#allocation5 + $0xe70] sm:$0xff]
    %v555 = vld [vmem:[#allocation5 + $0xe78] sm:$0xff]
    %v556 = vld [vmem:[#allocation5 + $0xe80] sm:$0xff]
    %v557 = vld [vmem:[#allocation5 + $0xe88] sm:$0xff]
    %v558 = vld [vmem:[#allocation5 + $0xe90] sm:$0xff]
    %v559 = vld [vmem:[#allocation5 + $0xe98] sm:$0xff]
    %v560 = vld [vmem:[#allocation5 + $0xea0] sm:$0xff]
    %v561 = vld [vmem:[#allocation5 + $0xea8] sm:$0xff]
    %v562 = vld [vmem:[#allocation5 + $0xeb0] sm:$0xff]
    %v563 = vld [vmem:[#allocation5 + $0xeb8] sm:$0xff]
    %v564 = vld [vmem:[#allocation5 + $0xec0] sm:$0xff]
    %v565 = vld [vmem:[#allocation5 + $0xec8] sm:$0xff]
    %v566 = vld [vmem:[#allocation5 + $0xed0] sm:$0xff]
    %v567 = vld [vmem:[#allocation5 + $0xed8] sm:$0xff]
    %v568 = vld [vmem:[#allocation5 + $0xee0] sm:$0xff]
    %v569 = vld [vmem:[#allocation5 + $0xee8] sm:$0xff]
    %v570 = vld [vmem:[#allocation5 + $0xef0] sm:$0xff]
    %v571 = vld [vmem:[#allocation5 + $0xef8] sm:$0xff]
    %v572 = vld [vmem:[#allocation5 + $0xf00] sm:$0xff]
    %v573 = vld [vmem:[#allocation5 + $0xf08] sm:$0xff]
    %v574 = vld [vmem:[#allocation5 + $0xf10] sm:$0xff]
    %v575 = vld [vmem:[#allocation5 + $0xf18] sm:$0xff]
    %v576 = vld [vmem:[#allocation5 + $0xf20] sm:$0xff]
    %v577 = vld [vmem:[#allocation5 + $0xf28] sm:$0xff]
    %v578 = vld [vmem:[#allocation5 + $0xf30] sm:$0xff]
    %v579 = vld [vmem:[#allocation5 + $0xf38] sm:$0xff]
    %v580 = vld [vmem:[#allocation5 + $0xf40] sm:$0xff]
    %v581 = vld [vmem:[#allocation5 + $0xf48] sm:$0xff]
    %v582 = vld [vmem:[#allocation5 + $0xf50] sm:$0xff]
    %v583 = vld [vmem:[#allocation5 + $0xf58] sm:$0xff]
    %v584 = vld [vmem:[#allocation5 + $0xf60] sm:$0xff]
    %v585 = vld [vmem:[#allocation5 + $0xf68] sm:$0xff]
    %v586 = vld [vmem:[#allocation5 + $0xf70] sm:$0xff]
    %v587 = vld [vmem:[#allocation5 + $0xf78] sm:$0xff]
    %v588 = vld [vmem:[#allocation5 + $0xf80] sm:$0xff]
    %v589 = vld [vmem:[#allocation5 + $0xf88] sm:$0xff]
    %v590 = vld [vmem:[#allocation5 + $0xf90] sm:$0xff]
    %v591 = vld [vmem:[#allocation5 + $0xf98] sm:$0xff]
    %v592 = vld [vmem:[#allocation5 + $0xfa0] sm:$0xff]
    %v593 = vld [vmem:[#allocation5 + $0xfa8] sm:$0xff]
    %v594 = vld [vmem:[#allocation5 + $0xfb0] sm:$0xff]
    %v595 = vld [vmem:[#allocation5 + $0xfb8] sm:$0xff]
    %v596 = vld [vmem:[#allocation5 + $0xfc0] sm:$0xff]
    %v597 = vld [vmem:[#allocation5 + $0xfc8] sm:$0xff]
    %v598 = vld [vmem:[#allocation5 + $0xfd0] sm:$0xff]
    %v599 = vld [vmem:[#allocation5 + $0xfd8] sm:$0xff]
    %v600 = vld [vmem:[#allocation5 + $0xfe0] sm:$0xff]
    %v601 = vld [vmem:[#allocation5 + $0xfe8] sm:$0xff]
    %v602 = vld [vmem:[#allocation5 + $0xff0] sm:$0xff]
    %v603 = vld [vmem:[#allocation5 + $0xff8] sm:$0xff]
    %v604 = vld [vmem:[#allocation7] sm:$0x3]
    %v606 = vperm.slane %v604, 0
    %v607 = vperm.slane %v604, 1
    %v642 = vunpack.c.l.b16 %v60
    %v643 = vunpack.c.h.b16 %v60
    %v644 = vunpack.c.l.b16 %v61
    %v645 = vunpack.c.h.b16 %v61
    %v646 = vunpack.c.l.b16 %v62
    %v647 = vunpack.c.h.b16 %v62
    %v648 = vunpack.c.l.b16 %v63
    %v649 = vunpack.c.h.b16 %v63
    %v650 = vunpack.c.l.b16 %v64
    %v651 = vunpack.c.h.b16 %v64
    %v652 = vunpack.c.l.b16 %v65
    %v653 = vunpack.c.h.b16 %v65
    %v654 = vunpack.c.l.b16 %v66
    %v655 = vunpack.c.h.b16 %v66
    %v656 = vunpack.c.l.b16 %v67
    %v657 = vunpack.c.h.b16 %v67
    %v658 = vunpack.c.l.b16 %v68
    %v659 = vunpack.c.h.b16 %v68
    %v660 = vunpack.c.l.b16 %v69
    %v661 = vunpack.c.h.b16 %v69
    %v662 = vunpack.c.l.b16 %v70
    %v663 = vunpack.c.h.b16 %v70
    %v664 = vunpack.c.l.b16 %v71
    %v665 = vunpack.c.h.b16 %v71
    %v666 = vunpack.c.l.b16 %v72
    %v667 = vunpack.c.h.b16 %v72
    %v668 = vunpack.c.l.b16 %v73
    %v669 = vunpack.c.h.b16 %v73
    %v670 = vunpack.c.l.b16 %v74
    %v671 = vunpack.c.h.b16 %v74
    %v672 = vunpack.c.l.b16 %v75
    %v673 = vunpack.c.h.b16 %v75
    %v674 = vunpack.c.l.b16 %v76
    %v675 = vunpack.c.h.b16 %v76
    %v676 = vunpack.c.l.b16 %v77
    %v677 = vunpack.c.h.b16 %v77
    %v678 = vunpack.c.l.b16 %v78
    %v679 = vunpack.c.h.b16 %v78
    %v680 = vunpack.c.l.b16 %v79
    %v681 = vunpack.c.h.b16 %v79
    %v682 = vunpack.c.l.b16 %v80
    %v683 = vunpack.c.h.b16 %v80
    %v684 = vunpack.c.l.b16 %v81
    %v685 = vunpack.c.h.b16 %v81
    %v686 = vunpack.c.l.b16 %v82
    %v687 = vunpack.c.h.b16 %v82
    %v688 = vunpack.c.l.b16 %v83
    %v689 = vunpack.c.h.b16 %v83
    %v690 = vunpack.c.l.b16 %v84
    %v691 = vunpack.c.h.b16 %v84
    %v692 = vunpack.c.l.b16 %v85
    %v693 = vunpack.c.h.b16 %v85
    %v694 = vunpack.c.l.b16 %v86
    %v695 = vunpack.c.h.b16 %v86
    %v696 = vunpack.c.l.b16 %v87
    %v697 = vunpack.c.h.b16 %v87
    %v698 = vunpack.c.l.b16 %v88
    %v699 = vunpack.c.h.b16 %v88
    %v700 = vunpack.c.l.b16 %v89
    %v701 = vunpack.c.h.b16 %v89
    %v702 = vunpack.c.l.b16 %v90
    %v703 = vunpack.c.h.b16 %v90
    %v704 = vunpack.c.l.b16 %v91
    %v705 = vunpack.c.h.b16 %v91
    %v706 = vpack.c.b16 %v674, %v642
    %v707 = vpack.c.b16 %v675, %v643
    %v708 = vpack.c.b16 %v676, %v644
    %v709 = vpack.c.b16 %v677, %v645
    %v710 = vpack.c.b16 %v678, %v646
    %v711 = vpack.c.b16 %v679, %v647
    %v712 = vpack.c.b16 %v680, %v648
    %v713 = vpack.c.b16 %v681, %v649
    %v714 = vpack.c.b16 %v682, %v650
    %v715 = vpack.c.b16 %v683, %v651
    %v716 = vpack.c.b16 %v684, %v652
    %v717 = vpack.c.b16 %v685, %v653
    %v718 = vpack.c.b16 %v686, %v654
    %v719 = vpack.c.b16 %v687, %v655
    %v720 = vpack.c.b16 %v688, %v656
    %v721 = vpack.c.b16 %v689, %v657
    %v722 = vpack.c.b16 %v690, %v658
    %v723 = vpack.c.b16 %v691, %v659
    %v724 = vpack.c.b16 %v692, %v660
    %v725 = vpack.c.b16 %v693, %v661
    %v726 = vpack.c.b16 %v694, %v662
    %v727 = vpack.c.b16 %v695, %v663
    %v728 = vpack.c.b16 %v696, %v664
    %v729 = vpack.c.b16 %v697, %v665
    %v730 = vpack.c.b16 %v698, %v666
    %v731 = vpack.c.b16 %v699, %v667
    %v732 = vpack.c.b16 %v700, %v668
    %v733 = vpack.c.b16 %v701, %v669
    %v734 = vpack.c.b16 %v702, %v670
    %v735 = vpack.c.b16 %v703, %v671
    %v736 = vpack.c.b16 %v704, %v672
    %v737 = vpack.c.b16 %v705, %v673
    %v1282 = vunpack.c.l.b16 %v92
    %v1283 = vunpack.c.h.b16 %v92
    %v1284 = vunpack.c.l.b16 %v93
    %v1285 = vunpack.c.h.b16 %v93
    %v1286 = vunpack.c.l.b16 %v94
    %v1287 = vunpack.c.h.b16 %v94
    %v1288 = vunpack.c.l.b16 %v95
    %v1289 = vunpack.c.h.b16 %v95
    %v1290 = vunpack.c.l.b16 %v96
    %v1291 = vunpack.c.h.b16 %v96
    %v1292 = vunpack.c.l.b16 %v97
    %v1293 = vunpack.c.h.b16 %v97
    %v1294 = vunpack.c.l.b16 %v98
    %v1295 = vunpack.c.h.b16 %v98
    %v1296 = vunpack.c.l.b16 %v99
    %v1297 = vunpack.c.h.b16 %v99
    %v1298 = vunpack.c.l.b16 %v100
    %v1299 = vunpack.c.h.b16 %v100
    %v1300 = vunpack.c.l.b16 %v101
    %v1301 = vunpack.c.h.b16 %v101
    %v1302 = vunpack.c.l.b16 %v102
    %v1303 = vunpack.c.h.b16 %v102
    %v1304 = vunpack.c.l.b16 %v103
    %v1305 = vunpack.c.h.b16 %v103
    %v1306 = vunpack.c.l.b16 %v104
    %v1307 = vunpack.c.h.b16 %v104
    %v1308 = vunpack.c.l.b16 %v105
    %v1309 = vunpack.c.h.b16 %v105
    %v1310 = vunpack.c.l.b16 %v106
    %v1311 = vunpack.c.h.b16 %v106
    %v1312 = vunpack.c.l.b16 %v107
    %v1313 = vunpack.c.h.b16 %v107
    %v1314 = vunpack.c.l.b16 %v108
    %v1315 = vunpack.c.h.b16 %v108
    %v1316 = vunpack.c.l.b16 %v109
    %v1317 = vunpack.c.h.b16 %v109
    %v1318 = vunpack.c.l.b16 %v110
    %v1319 = vunpack.c.h.b16 %v110
    %v1320 = vunpack.c.l.b16 %v111
    %v1321 = vunpack.c.h.b16 %v111
    %v1322 = vunpack.c.l.b16 %v112
    %v1323 = vunpack.c.h.b16 %v112
    %v1324 = vunpack.c.l.b16 %v113
    %v1325 = vunpack.c.h.b16 %v113
    %v1326 = vunpack.c.l.b16 %v114
    %v1327 = vunpack.c.h.b16 %v114
    %v1328 = vunpack.c.l.b16 %v115
    %v1329 = vunpack.c.h.b16 %v115
    %v1330 = vunpack.c.l.b16 %v116
    %v1331 = vunpack.c.h.b16 %v116
    %v1332 = vunpack.c.l.b16 %v117
    %v1333 = vunpack.c.h.b16 %v117
    %v1334 = vunpack.c.l.b16 %v118
    %v1335 = vunpack.c.h.b16 %v118
    %v1336 = vunpack.c.l.b16 %v119
    %v1337 = vunpack.c.h.b16 %v119
    %v1338 = vunpack.c.l.b16 %v120
    %v1339 = vunpack.c.h.b16 %v120
    %v1340 = vunpack.c.l.b16 %v121
    %v1341 = vunpack.c.h.b16 %v121
    %v1342 = vunpack.c.l.b16 %v122
    %v1343 = vunpack.c.h.b16 %v122
    %v1344 = vunpack.c.l.b16 %v123
    %v1345 = vunpack.c.h.b16 %v123
    %v1346 = vunpack.c.l.b16 %v124
    %v1347 = vunpack.c.h.b16 %v124
    %v1348 = vunpack.c.l.b16 %v125
    %v1349 = vunpack.c.h.b16 %v125
    %v1350 = vunpack.c.l.b16 %v126
    %v1351 = vunpack.c.h.b16 %v126
    %v1352 = vunpack.c.l.b16 %v127
    %v1353 = vunpack.c.h.b16 %v127
    %v1354 = vunpack.c.l.b16 %v128
    %v1355 = vunpack.c.h.b16 %v128
    %v1356 = vunpack.c.l.b16 %v129
    %v1357 = vunpack.c.h.b16 %v129
    %v1358 = vunpack.c.l.b16 %v130
    %v1359 = vunpack.c.h.b16 %v130
    %v1360 = vunpack.c.l.b16 %v131
    %v1361 = vunpack.c.h.b16 %v131
    %v1362 = vunpack.c.l.b16 %v132
    %v1363 = vunpack.c.h.b16 %v132
    %v1364 = vunpack.c.l.b16 %v133
    %v1365 = vunpack.c.h.b16 %v133
    %v1366 = vunpack.c.l.b16 %v134
    %v1367 = vunpack.c.h.b16 %v134
    %v1368 = vunpack.c.l.b16 %v135
    %v1369 = vunpack.c.h.b16 %v135
    %v1370 = vunpack.c.l.b16 %v136
    %v1371 = vunpack.c.h.b16 %v136
    %v1372 = vunpack.c.l.b16 %v137
    %v1373 = vunpack.c.h.b16 %v137
    %v1374 = vunpack.c.l.b16 %v138
    %v1375 = vunpack.c.h.b16 %v138
    %v1376 = vunpack.c.l.b16 %v139
    %v1377 = vunpack.c.h.b16 %v139
    %v1378 = vunpack.c.l.b16 %v140
    %v1379 = vunpack.c.h.b16 %v140
    %v1380 = vunpack.c.l.b16 %v141
    %v1381 = vunpack.c.h.b16 %v141
    %v1382 = vunpack.c.l.b16 %v142
    %v1383 = vunpack.c.h.b16 %v142
    %v1384 = vunpack.c.l.b16 %v143
    %v1385 = vunpack.c.h.b16 %v143
    %v1386 = vunpack.c.l.b16 %v144
    %v1387 = vunpack.c.h.b16 %v144
    %v1388 = vunpack.c.l.b16 %v145
    %v1389 = vunpack.c.h.b16 %v145
    %v1390 = vunpack.c.l.b16 %v146
    %v1391 = vunpack.c.h.b16 %v146
    %v1392 = vunpack.c.l.b16 %v147
    %v1393 = vunpack.c.h.b16 %v147
    %v1394 = vunpack.c.l.b16 %v148
    %v1395 = vunpack.c.h.b16 %v148
    %v1396 = vunpack.c.l.b16 %v149
    %v1397 = vunpack.c.h.b16 %v149
    %v1398 = vunpack.c.l.b16 %v150
    %v1399 = vunpack.c.h.b16 %v150
    %v1400 = vunpack.c.l.b16 %v151
    %v1401 = vunpack.c.h.b16 %v151
    %v1402 = vunpack.c.l.b16 %v152
    %v1403 = vunpack.c.h.b16 %v152
    %v1404 = vunpack.c.l.b16 %v153
    %v1405 = vunpack.c.h.b16 %v153
    %v1406 = vunpack.c.l.b16 %v154
    %v1407 = vunpack.c.h.b16 %v154
    %v1408 = vunpack.c.l.b16 %v155
    %v1409 = vunpack.c.h.b16 %v155
    %v1410 = vunpack.c.l.b16 %v156
    %v1411 = vunpack.c.h.b16 %v156
    %v1412 = vunpack.c.l.b16 %v157
    %v1413 = vunpack.c.h.b16 %v157
    %v1414 = vunpack.c.l.b16 %v158
    %v1415 = vunpack.c.h.b16 %v158
    %v1416 = vunpack.c.l.b16 %v159
    %v1417 = vunpack.c.h.b16 %v159
    %v1418 = vunpack.c.l.b16 %v160
    %v1419 = vunpack.c.h.b16 %v160
    %v1420 = vunpack.c.l.b16 %v161
    %v1421 = vunpack.c.h.b16 %v161
    %v1422 = vunpack.c.l.b16 %v162
    %v1423 = vunpack.c.h.b16 %v162
    %v1424 = vunpack.c.l.b16 %v163
    %v1425 = vunpack.c.h.b16 %v163
    %v1426 = vunpack.c.l.b16 %v164
    %v1427 = vunpack.c.h.b16 %v164
    %v1428 = vunpack.c.l.b16 %v165
    %v1429 = vunpack.c.h.b16 %v165
    %v1430 = vunpack.c.l.b16 %v166
    %v1431 = vunpack.c.h.b16 %v166
    %v1432 = vunpack.c.l.b16 %v167
    %v1433 = vunpack.c.h.b16 %v167
    %v1434 = vunpack.c.l.b16 %v168
    %v1435 = vunpack.c.h.b16 %v168
    %v1436 = vunpack.c.l.b16 %v169
    %v1437 = vunpack.c.h.b16 %v169
    %v1438 = vunpack.c.l.b16 %v170
    %v1439 = vunpack.c.h.b16 %v170
    %v1440 = vunpack.c.l.b16 %v171
    %v1441 = vunpack.c.h.b16 %v171
    %v1442 = vunpack.c.l.b16 %v172
    %v1443 = vunpack.c.h.b16 %v172
    %v1444 = vunpack.c.l.b16 %v173
    %v1445 = vunpack.c.h.b16 %v173
    %v1446 = vunpack.c.l.b16 %v174
    %v1447 = vunpack.c.h.b16 %v174
    %v1448 = vunpack.c.l.b16 %v175
    %v1449 = vunpack.c.h.b16 %v175
    %v1450 = vunpack.c.l.b16 %v176
    %v1451 = vunpack.c.h.b16 %v176
    %v1452 = vunpack.c.l.b16 %v177
    %v1453 = vunpack.c.h.b16 %v177
    %v1454 = vunpack.c.l.b16 %v178
    %v1455 = vunpack.c.h.b16 %v178
    %v1456 = vunpack.c.l.b16 %v179
    %v1457 = vunpack.c.h.b16 %v179
    %v1458 = vunpack.c.l.b16 %v180
    %v1459 = vunpack.c.h.b16 %v180
    %v1460 = vunpack.c.l.b16 %v181
    %v1461 = vunpack.c.h.b16 %v181
    %v1462 = vunpack.c.l.b16 %v182
    %v1463 = vunpack.c.h.b16 %v182
    %v1464 = vunpack.c.l.b16 %v183
    %v1465 = vunpack.c.h.b16 %v183
    %v1466 = vunpack.c.l.b16 %v184
    %v1467 = vunpack.c.h.b16 %v184
    %v1468 = vunpack.c.l.b16 %v185
    %v1469 = vunpack.c.h.b16 %v185
    %v1470 = vunpack.c.l.b16 %v186
    %v1471 = vunpack.c.h.b16 %v186
    %v1472 = vunpack.c.l.b16 %v187
    %v1473 = vunpack.c.h.b16 %v187
    %v1474 = vunpack.c.l.b16 %v188
    %v1475 = vunpack.c.h.b16 %v188
    %v1476 = vunpack.c.l.b16 %v189
    %v1477 = vunpack.c.h.b16 %v189
    %v1478 = vunpack.c.l.b16 %v190
    %v1479 = vunpack.c.h.b16 %v190
    %v1480 = vunpack.c.l.b16 %v191
    %v1481 = vunpack.c.h.b16 %v191
    %v1482 = vunpack.c.l.b16 %v192
    %v1483 = vunpack.c.h.b16 %v192
    %v1484 = vunpack.c.l.b16 %v193
    %v1485 = vunpack.c.h.b16 %v193
    %v1486 = vunpack.c.l.b16 %v194
    %v1487 = vunpack.c.h.b16 %v194
    %v1488 = vunpack.c.l.b16 %v195
    %v1489 = vunpack.c.h.b16 %v195
    %v1490 = vunpack.c.l.b16 %v196
    %v1491 = vunpack.c.h.b16 %v196
    %v1492 = vunpack.c.l.b16 %v197
    %v1493 = vunpack.c.h.b16 %v197
    %v1494 = vunpack.c.l.b16 %v198
    %v1495 = vunpack.c.h.b16 %v198
    %v1496 = vunpack.c.l.b16 %v199
    %v1497 = vunpack.c.h.b16 %v199
    %v1498 = vunpack.c.l.b16 %v200
    %v1499 = vunpack.c.h.b16 %v200
    %v1500 = vunpack.c.l.b16 %v201
    %v1501 = vunpack.c.h.b16 %v201
    %v1502 = vunpack.c.l.b16 %v202
    %v1503 = vunpack.c.h.b16 %v202
    %v1504 = vunpack.c.l.b16 %v203
    %v1505 = vunpack.c.h.b16 %v203
    %v1506 = vunpack.c.l.b16 %v204
    %v1507 = vunpack.c.h.b16 %v204
    %v1508 = vunpack.c.l.b16 %v205
    %v1509 = vunpack.c.h.b16 %v205
    %v1510 = vunpack.c.l.b16 %v206
    %v1511 = vunpack.c.h.b16 %v206
    %v1512 = vunpack.c.l.b16 %v207
    %v1513 = vunpack.c.h.b16 %v207
    %v1514 = vunpack.c.l.b16 %v208
    %v1515 = vunpack.c.h.b16 %v208
    %v1516 = vunpack.c.l.b16 %v209
    %v1517 = vunpack.c.h.b16 %v209
    %v1518 = vunpack.c.l.b16 %v210
    %v1519 = vunpack.c.h.b16 %v210
    %v1520 = vunpack.c.l.b16 %v211
    %v1521 = vunpack.c.h.b16 %v211
    %v1522 = vunpack.c.l.b16 %v212
    %v1523 = vunpack.c.h.b16 %v212
    %v1524 = vunpack.c.l.b16 %v213
    %v1525 = vunpack.c.h.b16 %v213
    %v1526 = vunpack.c.l.b16 %v214
    %v1527 = vunpack.c.h.b16 %v214
    %v1528 = vunpack.c.l.b16 %v215
    %v1529 = vunpack.c.h.b16 %v215
    %v1530 = vunpack.c.l.b16 %v216
    %v1531 = vunpack.c.h.b16 %v216
    %v1532 = vunpack.c.l.b16 %v217
    %v1533 = vunpack.c.h.b16 %v217
    %v1534 = vunpack.c.l.b16 %v218
    %v1535 = vunpack.c.h.b16 %v218
    %v1536 = vunpack.c.l.b16 %v219
    %v1537 = vunpack.c.h.b16 %v219
    %v1538 = vunpack.c.l.b16 %v220
    %v1539 = vunpack.c.h.b16 %v220
    %v1540 = vunpack.c.l.b16 %v221
    %v1541 = vunpack.c.h.b16 %v221
    %v1542 = vunpack.c.l.b16 %v222
    %v1543 = vunpack.c.h.b16 %v222
    %v1544 = vunpack.c.l.b16 %v223
    %v1545 = vunpack.c.h.b16 %v223
    %v1546 = vunpack.c.l.b16 %v224
    %v1547 = vunpack.c.h.b16 %v224
    %v1548 = vunpack.c.l.b16 %v225
    %v1549 = vunpack.c.h.b16 %v225
    %v1550 = vunpack.c.l.b16 %v226
    %v1551 = vunpack.c.h.b16 %v226
    %v1552 = vunpack.c.l.b16 %v227
    %v1553 = vunpack.c.h.b16 %v227
    %v1554 = vunpack.c.l.b16 %v228
    %v1555 = vunpack.c.h.b16 %v228
    %v1556 = vunpack.c.l.b16 %v229
    %v1557 = vunpack.c.h.b16 %v229
    %v1558 = vunpack.c.l.b16 %v230
    %v1559 = vunpack.c.h.b16 %v230
    %v1560 = vunpack.c.l.b16 %v231
    %v1561 = vunpack.c.h.b16 %v231
    %v1562 = vunpack.c.l.b16 %v232
    %v1563 = vunpack.c.h.b16 %v232
    %v1564 = vunpack.c.l.b16 %v233
    %v1565 = vunpack.c.h.b16 %v233
    %v1566 = vunpack.c.l.b16 %v234
    %v1567 = vunpack.c.h.b16 %v234
    %v1568 = vunpack.c.l.b16 %v235
    %v1569 = vunpack.c.h.b16 %v235
    %v1570 = vunpack.c.l.b16 %v236
    %v1571 = vunpack.c.h.b16 %v236
    %v1572 = vunpack.c.l.b16 %v237
    %v1573 = vunpack.c.h.b16 %v237
    %v1574 = vunpack.c.l.b16 %v238
    %v1575 = vunpack.c.h.b16 %v238
    %v1576 = vunpack.c.l.b16 %v239
    %v1577 = vunpack.c.h.b16 %v239
    %v1578 = vunpack.c.l.b16 %v240
    %v1579 = vunpack.c.h.b16 %v240
    %v1580 = vunpack.c.l.b16 %v241
    %v1581 = vunpack.c.h.b16 %v241
    %v1582 = vunpack.c.l.b16 %v242
    %v1583 = vunpack.c.h.b16 %v242
    %v1584 = vunpack.c.l.b16 %v243
    %v1585 = vunpack.c.h.b16 %v243
    %v1586 = vunpack.c.l.b16 %v244
    %v1587 = vunpack.c.h.b16 %v244
    %v1588 = vunpack.c.l.b16 %v245
    %v1589 = vunpack.c.h.b16 %v245
    %v1590 = vunpack.c.l.b16 %v246
    %v1591 = vunpack.c.h.b16 %v246
    %v1592 = vunpack.c.l.b16 %v247
    %v1593 = vunpack.c.h.b16 %v247
    %v1594 = vunpack.c.l.b16 %v248
    %v1595 = vunpack.c.h.b16 %v248
    %v1596 = vunpack.c.l.b16 %v249
    %v1597 = vunpack.c.h.b16 %v249
    %v1598 = vunpack.c.l.b16 %v250
    %v1599 = vunpack.c.h.b16 %v250
    %v1600 = vunpack.c.l.b16 %v251
    %v1601 = vunpack.c.h.b16 %v251
    %v1602 = vunpack.c.l.b16 %v252
    %v1603 = vunpack.c.h.b16 %v252
    %v1604 = vunpack.c.l.b16 %v253
    %v1605 = vunpack.c.h.b16 %v253
    %v1606 = vunpack.c.l.b16 %v254
    %v1607 = vunpack.c.h.b16 %v254
    %v1608 = vunpack.c.l.b16 %v255
    %v1609 = vunpack.c.h.b16 %v255
    %v1610 = vunpack.c.l.b16 %v256
    %v1611 = vunpack.c.h.b16 %v256
    %v1612 = vunpack.c.l.b16 %v257
    %v1613 = vunpack.c.h.b16 %v257
    %v1614 = vunpack.c.l.b16 %v258
    %v1615 = vunpack.c.h.b16 %v258
    %v1616 = vunpack.c.l.b16 %v259
    %v1617 = vunpack.c.h.b16 %v259
    %v1618 = vunpack.c.l.b16 %v260
    %v1619 = vunpack.c.h.b16 %v260
    %v1620 = vunpack.c.l.b16 %v261
    %v1621 = vunpack.c.h.b16 %v261
    %v1622 = vunpack.c.l.b16 %v262
    %v1623 = vunpack.c.h.b16 %v262
    %v1624 = vunpack.c.l.b16 %v263
    %v1625 = vunpack.c.h.b16 %v263
    %v1626 = vunpack.c.l.b16 %v264
    %v1627 = vunpack.c.h.b16 %v264
    %v1628 = vunpack.c.l.b16 %v265
    %v1629 = vunpack.c.h.b16 %v265
    %v1630 = vunpack.c.l.b16 %v266
    %v1631 = vunpack.c.h.b16 %v266
    %v1632 = vunpack.c.l.b16 %v267
    %v1633 = vunpack.c.h.b16 %v267
    %v1634 = vunpack.c.l.b16 %v268
    %v1635 = vunpack.c.h.b16 %v268
    %v1636 = vunpack.c.l.b16 %v269
    %v1637 = vunpack.c.h.b16 %v269
    %v1638 = vunpack.c.l.b16 %v270
    %v1639 = vunpack.c.h.b16 %v270
    %v1640 = vunpack.c.l.b16 %v271
    %v1641 = vunpack.c.h.b16 %v271
    %v1642 = vunpack.c.l.b16 %v272
    %v1643 = vunpack.c.h.b16 %v272
    %v1644 = vunpack.c.l.b16 %v273
    %v1645 = vunpack.c.h.b16 %v273
    %v1646 = vunpack.c.l.b16 %v274
    %v1647 = vunpack.c.h.b16 %v274
    %v1648 = vunpack.c.l.b16 %v275
    %v1649 = vunpack.c.h.b16 %v275
    %v1650 = vunpack.c.l.b16 %v276
    %v1651 = vunpack.c.h.b16 %v276
    %v1652 = vunpack.c.l.b16 %v277
    %v1653 = vunpack.c.h.b16 %v277
    %v1654 = vunpack.c.l.b16 %v278
    %v1655 = vunpack.c.h.b16 %v278
    %v1656 = vunpack.c.l.b16 %v279
    %v1657 = vunpack.c.h.b16 %v279
    %v1658 = vunpack.c.l.b16 %v280
    %v1659 = vunpack.c.h.b16 %v280
    %v1660 = vunpack.c.l.b16 %v281
    %v1661 = vunpack.c.h.b16 %v281
    %v1662 = vunpack.c.l.b16 %v282
    %v1663 = vunpack.c.h.b16 %v282
    %v1664 = vunpack.c.l.b16 %v283
    %v1665 = vunpack.c.h.b16 %v283
    %v1666 = vunpack.c.l.b16 %v284
    %v1667 = vunpack.c.h.b16 %v284
    %v1668 = vunpack.c.l.b16 %v285
    %v1669 = vunpack.c.h.b16 %v285
    %v1670 = vunpack.c.l.b16 %v286
    %v1671 = vunpack.c.h.b16 %v286
    %v1672 = vunpack.c.l.b16 %v287
    %v1673 = vunpack.c.h.b16 %v287
    %v1674 = vunpack.c.l.b16 %v288
    %v1675 = vunpack.c.h.b16 %v288
    %v1676 = vunpack.c.l.b16 %v289
    %v1677 = vunpack.c.h.b16 %v289
    %v1678 = vunpack.c.l.b16 %v290
    %v1679 = vunpack.c.h.b16 %v290
    %v1680 = vunpack.c.l.b16 %v291
    %v1681 = vunpack.c.h.b16 %v291
    %v1682 = vunpack.c.l.b16 %v292
    %v1683 = vunpack.c.h.b16 %v292
    %v1684 = vunpack.c.l.b16 %v293
    %v1685 = vunpack.c.h.b16 %v293
    %v1686 = vunpack.c.l.b16 %v294
    %v1687 = vunpack.c.h.b16 %v294
    %v1688 = vunpack.c.l.b16 %v295
    %v1689 = vunpack.c.h.b16 %v295
    %v1690 = vunpack.c.l.b16 %v296
    %v1691 = vunpack.c.h.b16 %v296
    %v1692 = vunpack.c.l.b16 %v297
    %v1693 = vunpack.c.h.b16 %v297
    %v1694 = vunpack.c.l.b16 %v298
    %v1695 = vunpack.c.h.b16 %v298
    %v1696 = vunpack.c.l.b16 %v299
    %v1697 = vunpack.c.h.b16 %v299
    %v1698 = vunpack.c.l.b16 %v300
    %v1699 = vunpack.c.h.b16 %v300
    %v1700 = vunpack.c.l.b16 %v301
    %v1701 = vunpack.c.h.b16 %v301
    %v1702 = vunpack.c.l.b16 %v302
    %v1703 = vunpack.c.h.b16 %v302
    %v1704 = vunpack.c.l.b16 %v303
    %v1705 = vunpack.c.h.b16 %v303
    %v1706 = vunpack.c.l.b16 %v304
    %v1707 = vunpack.c.h.b16 %v304
    %v1708 = vunpack.c.l.b16 %v305
    %v1709 = vunpack.c.h.b16 %v305
    %v1710 = vunpack.c.l.b16 %v306
    %v1711 = vunpack.c.h.b16 %v306
    %v1712 = vunpack.c.l.b16 %v307
    %v1713 = vunpack.c.h.b16 %v307
    %v1714 = vunpack.c.l.b16 %v308
    %v1715 = vunpack.c.h.b16 %v308
    %v1716 = vunpack.c.l.b16 %v309
    %v1717 = vunpack.c.h.b16 %v309
    %v1718 = vunpack.c.l.b16 %v310
    %v1719 = vunpack.c.h.b16 %v310
    %v1720 = vunpack.c.l.b16 %v311
    %v1721 = vunpack.c.h.b16 %v311
    %v1722 = vunpack.c.l.b16 %v312
    %v1723 = vunpack.c.h.b16 %v312
    %v1724 = vunpack.c.l.b16 %v313
    %v1725 = vunpack.c.h.b16 %v313
    %v1726 = vunpack.c.l.b16 %v314
    %v1727 = vunpack.c.h.b16 %v314
    %v1728 = vunpack.c.l.b16 %v315
    %v1729 = vunpack.c.h.b16 %v315
    %v1730 = vunpack.c.l.b16 %v316
    %v1731 = vunpack.c.h.b16 %v316
    %v1732 = vunpack.c.l.b16 %v317
    %v1733 = vunpack.c.h.b16 %v317
    %v1734 = vunpack.c.l.b16 %v318
    %v1735 = vunpack.c.h.b16 %v318
    %v1736 = vunpack.c.l.b16 %v319
    %v1737 = vunpack.c.h.b16 %v319
    %v1738 = vunpack.c.l.b16 %v320
    %v1739 = vunpack.c.h.b16 %v320
    %v1740 = vunpack.c.l.b16 %v321
    %v1741 = vunpack.c.h.b16 %v321
    %v1742 = vunpack.c.l.b16 %v322
    %v1743 = vunpack.c.h.b16 %v322
    %v1744 = vunpack.c.l.b16 %v323
    %v1745 = vunpack.c.h.b16 %v323
    %v1746 = vunpack.c.l.b16 %v324
    %v1747 = vunpack.c.h.b16 %v324
    %v1748 = vunpack.c.l.b16 %v325
    %v1749 = vunpack.c.h.b16 %v325
    %v1750 = vunpack.c.l.b16 %v326
    %v1751 = vunpack.c.h.b16 %v326
    %v1752 = vunpack.c.l.b16 %v327
    %v1753 = vunpack.c.h.b16 %v327
    %v1754 = vunpack.c.l.b16 %v328
    %v1755 = vunpack.c.h.b16 %v328
    %v1756 = vunpack.c.l.b16 %v329
    %v1757 = vunpack.c.h.b16 %v329
    %v1758 = vunpack.c.l.b16 %v330
    %v1759 = vunpack.c.h.b16 %v330
    %v1760 = vunpack.c.l.b16 %v331
    %v1761 = vunpack.c.h.b16 %v331
    %v1762 = vunpack.c.l.b16 %v332
    %v1763 = vunpack.c.h.b16 %v332
    %v1764 = vunpack.c.l.b16 %v333
    %v1765 = vunpack.c.h.b16 %v333
    %v1766 = vunpack.c.l.b16 %v334
    %v1767 = vunpack.c.h.b16 %v334
    %v1768 = vunpack.c.l.b16 %v335
    %v1769 = vunpack.c.h.b16 %v335
    %v1770 = vunpack.c.l.b16 %v336
    %v1771 = vunpack.c.h.b16 %v336
    %v1772 = vunpack.c.l.b16 %v337
    %v1773 = vunpack.c.h.b16 %v337
    %v1774 = vunpack.c.l.b16 %v338
    %v1775 = vunpack.c.h.b16 %v338
    %v1776 = vunpack.c.l.b16 %v339
    %v1777 = vunpack.c.h.b16 %v339
    %v1778 = vunpack.c.l.b16 %v340
    %v1779 = vunpack.c.h.b16 %v340
    %v1780 = vunpack.c.l.b16 %v341
    %v1781 = vunpack.c.h.b16 %v341
    %v1782 = vunpack.c.l.b16 %v342
    %v1783 = vunpack.c.h.b16 %v342
    %v1784 = vunpack.c.l.b16 %v343
    %v1785 = vunpack.c.h.b16 %v343
    %v1786 = vunpack.c.l.b16 %v344
    %v1787 = vunpack.c.h.b16 %v344
    %v1788 = vunpack.c.l.b16 %v345
    %v1789 = vunpack.c.h.b16 %v345
    %v1790 = vunpack.c.l.b16 %v346
    %v1791 = vunpack.c.h.b16 %v346
    %v1792 = vunpack.c.l.b16 %v347
    %v1793 = vunpack.c.h.b16 %v347
    %v1794 = vunpack.c.l.b16 %v348
    %v1795 = vunpack.c.h.b16 %v348
    %v1796 = vunpack.c.l.b16 %v349
    %v1797 = vunpack.c.h.b16 %v349
    %v1798 = vunpack.c.l.b16 %v350
    %v1799 = vunpack.c.h.b16 %v350
    %v1800 = vunpack.c.l.b16 %v351
    %v1801 = vunpack.c.h.b16 %v351
    %v1802 = vunpack.c.l.b16 %v352
    %v1803 = vunpack.c.h.b16 %v352
    %v1804 = vunpack.c.l.b16 %v353
    %v1805 = vunpack.c.h.b16 %v353
    %v1806 = vunpack.c.l.b16 %v354
    %v1807 = vunpack.c.h.b16 %v354
    %v1808 = vunpack.c.l.b16 %v355
    %v1809 = vunpack.c.h.b16 %v355
    %v1810 = vunpack.c.l.b16 %v356
    %v1811 = vunpack.c.h.b16 %v356
    %v1812 = vunpack.c.l.b16 %v357
    %v1813 = vunpack.c.h.b16 %v357
    %v1814 = vunpack.c.l.b16 %v358
    %v1815 = vunpack.c.h.b16 %v358
    %v1816 = vunpack.c.l.b16 %v359
    %v1817 = vunpack.c.h.b16 %v359
    %v1818 = vunpack.c.l.b16 %v360
    %v1819 = vunpack.c.h.b16 %v360
    %v1820 = vunpack.c.l.b16 %v361
    %v1821 = vunpack.c.h.b16 %v361
    %v1822 = vunpack.c.l.b16 %v362
    %v1823 = vunpack.c.h.b16 %v362
    %v1824 = vunpack.c.l.b16 %v363
    %v1825 = vunpack.c.h.b16 %v363
    %v1826 = vunpack.c.l.b16 %v364
    %v1827 = vunpack.c.h.b16 %v364
    %v1828 = vunpack.c.l.b16 %v365
    %v1829 = vunpack.c.h.b16 %v365
    %v1830 = vunpack.c.l.b16 %v366
    %v1831 = vunpack.c.h.b16 %v366
    %v1832 = vunpack.c.l.b16 %v367
    %v1833 = vunpack.c.h.b16 %v367
    %v1834 = vunpack.c.l.b16 %v368
    %v1835 = vunpack.c.h.b16 %v368
    %v1836 = vunpack.c.l.b16 %v369
    %v1837 = vunpack.c.h.b16 %v369
    %v1838 = vunpack.c.l.b16 %v370
    %v1839 = vunpack.c.h.b16 %v370
    %v1840 = vunpack.c.l.b16 %v371
    %v1841 = vunpack.c.h.b16 %v371
    %v1842 = vunpack.c.l.b16 %v372
    %v1843 = vunpack.c.h.b16 %v372
    %v1844 = vunpack.c.l.b16 %v373
    %v1845 = vunpack.c.h.b16 %v373
    %v1846 = vunpack.c.l.b16 %v374
    %v1847 = vunpack.c.h.b16 %v374
    %v1848 = vunpack.c.l.b16 %v375
    %v1849 = vunpack.c.h.b16 %v375
    %v1850 = vunpack.c.l.b16 %v376
    %v1851 = vunpack.c.h.b16 %v376
    %v1852 = vunpack.c.l.b16 %v377
    %v1853 = vunpack.c.h.b16 %v377
    %v1854 = vunpack.c.l.b16 %v378
    %v1855 = vunpack.c.h.b16 %v378
    %v1856 = vunpack.c.l.b16 %v379
    %v1857 = vunpack.c.h.b16 %v379
    %v1858 = vunpack.c.l.b16 %v380
    %v1859 = vunpack.c.h.b16 %v380
    %v1860 = vunpack.c.l.b16 %v381
    %v1861 = vunpack.c.h.b16 %v381
    %v1862 = vunpack.c.l.b16 %v382
    %v1863 = vunpack.c.h.b16 %v382
    %v1864 = vunpack.c.l.b16 %v383
    %v1865 = vunpack.c.h.b16 %v383
    %v1866 = vunpack.c.l.b16 %v384
    %v1867 = vunpack.c.h.b16 %v384
    %v1868 = vunpack.c.l.b16 %v385
    %v1869 = vunpack.c.h.b16 %v385
    %v1870 = vunpack.c.l.b16 %v386
    %v1871 = vunpack.c.h.b16 %v386
    %v1872 = vunpack.c.l.b16 %v387
    %v1873 = vunpack.c.h.b16 %v387
    %v1874 = vunpack.c.l.b16 %v388
    %v1875 = vunpack.c.h.b16 %v388
    %v1876 = vunpack.c.l.b16 %v389
    %v1877 = vunpack.c.h.b16 %v389
    %v1878 = vunpack.c.l.b16 %v390
    %v1879 = vunpack.c.h.b16 %v390
    %v1880 = vunpack.c.l.b16 %v391
    %v1881 = vunpack.c.h.b16 %v391
    %v1882 = vunpack.c.l.b16 %v392
    %v1883 = vunpack.c.h.b16 %v392
    %v1884 = vunpack.c.l.b16 %v393
    %v1885 = vunpack.c.h.b16 %v393
    %v1886 = vunpack.c.l.b16 %v394
    %v1887 = vunpack.c.h.b16 %v394
    %v1888 = vunpack.c.l.b16 %v395
    %v1889 = vunpack.c.h.b16 %v395
    %v1890 = vunpack.c.l.b16 %v396
    %v1891 = vunpack.c.h.b16 %v396
    %v1892 = vunpack.c.l.b16 %v397
    %v1893 = vunpack.c.h.b16 %v397
    %v1894 = vunpack.c.l.b16 %v398
    %v1895 = vunpack.c.h.b16 %v398
    %v1896 = vunpack.c.l.b16 %v399
    %v1897 = vunpack.c.h.b16 %v399
    %v1898 = vunpack.c.l.b16 %v400
    %v1899 = vunpack.c.h.b16 %v400
    %v1900 = vunpack.c.l.b16 %v401
    %v1901 = vunpack.c.h.b16 %v401
    %v1902 = vunpack.c.l.b16 %v402
    %v1903 = vunpack.c.h.b16 %v402
    %v1904 = vunpack.c.l.b16 %v403
    %v1905 = vunpack.c.h.b16 %v403
    %v1906 = vunpack.c.l.b16 %v404
    %v1907 = vunpack.c.h.b16 %v404
    %v1908 = vunpack.c.l.b16 %v405
    %v1909 = vunpack.c.h.b16 %v405
    %v1910 = vunpack.c.l.b16 %v406
    %v1911 = vunpack.c.h.b16 %v406
    %v1912 = vunpack.c.l.b16 %v407
    %v1913 = vunpack.c.h.b16 %v407
    %v1914 = vunpack.c.l.b16 %v408
    %v1915 = vunpack.c.h.b16 %v408
    %v1916 = vunpack.c.l.b16 %v409
    %v1917 = vunpack.c.h.b16 %v409
    %v1918 = vunpack.c.l.b16 %v410
    %v1919 = vunpack.c.h.b16 %v410
    %v1920 = vunpack.c.l.b16 %v411
    %v1921 = vunpack.c.h.b16 %v411
    %v1922 = vunpack.c.l.b16 %v412
    %v1923 = vunpack.c.h.b16 %v412
    %v1924 = vunpack.c.l.b16 %v413
    %v1925 = vunpack.c.h.b16 %v413
    %v1926 = vunpack.c.l.b16 %v414
    %v1927 = vunpack.c.h.b16 %v414
    %v1928 = vunpack.c.l.b16 %v415
    %v1929 = vunpack.c.h.b16 %v415
    %v1930 = vunpack.c.l.b16 %v416
    %v1931 = vunpack.c.h.b16 %v416
    %v1932 = vunpack.c.l.b16 %v417
    %v1933 = vunpack.c.h.b16 %v417
    %v1934 = vunpack.c.l.b16 %v418
    %v1935 = vunpack.c.h.b16 %v418
    %v1936 = vunpack.c.l.b16 %v419
    %v1937 = vunpack.c.h.b16 %v419
    %v1938 = vunpack.c.l.b16 %v420
    %v1939 = vunpack.c.h.b16 %v420
    %v1940 = vunpack.c.l.b16 %v421
    %v1941 = vunpack.c.h.b16 %v421
    %v1942 = vunpack.c.l.b16 %v422
    %v1943 = vunpack.c.h.b16 %v422
    %v1944 = vunpack.c.l.b16 %v423
    %v1945 = vunpack.c.h.b16 %v423
    %v1946 = vunpack.c.l.b16 %v424
    %v1947 = vunpack.c.h.b16 %v424
    %v1948 = vunpack.c.l.b16 %v425
    %v1949 = vunpack.c.h.b16 %v425
    %v1950 = vunpack.c.l.b16 %v426
    %v1951 = vunpack.c.h.b16 %v426
    %v1952 = vunpack.c.l.b16 %v427
    %v1953 = vunpack.c.h.b16 %v427
    %v1954 = vunpack.c.l.b16 %v428
    %v1955 = vunpack.c.h.b16 %v428
    %v1956 = vunpack.c.l.b16 %v429
    %v1957 = vunpack.c.h.b16 %v429
    %v1958 = vunpack.c.l.b16 %v430
    %v1959 = vunpack.c.h.b16 %v430
    %v1960 = vunpack.c.l.b16 %v431
    %v1961 = vunpack.c.h.b16 %v431
    %v1962 = vunpack.c.l.b16 %v432
    %v1963 = vunpack.c.h.b16 %v432
    %v1964 = vunpack.c.l.b16 %v433
    %v1965 = vunpack.c.h.b16 %v433
    %v1966 = vunpack.c.l.b16 %v434
    %v1967 = vunpack.c.h.b16 %v434
    %v1968 = vunpack.c.l.b16 %v435
    %v1969 = vunpack.c.h.b16 %v435
    %v1970 = vunpack.c.l.b16 %v436
    %v1971 = vunpack.c.h.b16 %v436
    %v1972 = vunpack.c.l.b16 %v437
    %v1973 = vunpack.c.h.b16 %v437
    %v1974 = vunpack.c.l.b16 %v438
    %v1975 = vunpack.c.h.b16 %v438
    %v1976 = vunpack.c.l.b16 %v439
    %v1977 = vunpack.c.h.b16 %v439
    %v1978 = vunpack.c.l.b16 %v440
    %v1979 = vunpack.c.h.b16 %v440
    %v1980 = vunpack.c.l.b16 %v441
    %v1981 = vunpack.c.h.b16 %v441
    %v1982 = vunpack.c.l.b16 %v442
    %v1983 = vunpack.c.h.b16 %v442
    %v1984 = vunpack.c.l.b16 %v443
    %v1985 = vunpack.c.h.b16 %v443
    %v1986 = vunpack.c.l.b16 %v444
    %v1987 = vunpack.c.h.b16 %v444
    %v1988 = vunpack.c.l.b16 %v445
    %v1989 = vunpack.c.h.b16 %v445
    %v1990 = vunpack.c.l.b16 %v446
    %v1991 = vunpack.c.h.b16 %v446
    %v1992 = vunpack.c.l.b16 %v447
    %v1993 = vunpack.c.h.b16 %v447
    %v1994 = vunpack.c.l.b16 %v448
    %v1995 = vunpack.c.h.b16 %v448
    %v1996 = vunpack.c.l.b16 %v449
    %v1997 = vunpack.c.h.b16 %v449
    %v1998 = vunpack.c.l.b16 %v450
    %v1999 = vunpack.c.h.b16 %v450
    %v2000 = vunpack.c.l.b16 %v451
    %v2001 = vunpack.c.h.b16 %v451
    %v2002 = vunpack.c.l.b16 %v452
    %v2003 = vunpack.c.h.b16 %v452
    %v2004 = vunpack.c.l.b16 %v453
    %v2005 = vunpack.c.h.b16 %v453
    %v2006 = vunpack.c.l.b16 %v454
    %v2007 = vunpack.c.h.b16 %v454
    %v2008 = vunpack.c.l.b16 %v455
    %v2009 = vunpack.c.h.b16 %v455
    %v2010 = vunpack.c.l.b16 %v456
    %v2011 = vunpack.c.h.b16 %v456
    %v2012 = vunpack.c.l.b16 %v457
    %v2013 = vunpack.c.h.b16 %v457
    %v2014 = vunpack.c.l.b16 %v458
    %v2015 = vunpack.c.h.b16 %v458
    %v2016 = vunpack.c.l.b16 %v459
    %v2017 = vunpack.c.h.b16 %v459
    %v2018 = vunpack.c.l.b16 %v460
    %v2019 = vunpack.c.h.b16 %v460
    %v2020 = vunpack.c.l.b16 %v461
    %v2021 = vunpack.c.h.b16 %v461
    %v2022 = vunpack.c.l.b16 %v462
    %v2023 = vunpack.c.h.b16 %v462
    %v2024 = vunpack.c.l.b16 %v463
    %v2025 = vunpack.c.h.b16 %v463
    %v2026 = vunpack.c.l.b16 %v464
    %v2027 = vunpack.c.h.b16 %v464
    %v2028 = vunpack.c.l.b16 %v465
    %v2029 = vunpack.c.h.b16 %v465
    %v2030 = vunpack.c.l.b16 %v466
    %v2031 = vunpack.c.h.b16 %v466
    %v2032 = vunpack.c.l.b16 %v467
    %v2033 = vunpack.c.h.b16 %v467
    %v2034 = vunpack.c.l.b16 %v468
    %v2035 = vunpack.c.h.b16 %v468
    %v2036 = vunpack.c.l.b16 %v469
    %v2037 = vunpack.c.h.b16 %v469
    %v2038 = vunpack.c.l.b16 %v470
    %v2039 = vunpack.c.h.b16 %v470
    %v2040 = vunpack.c.l.b16 %v471
    %v2041 = vunpack.c.h.b16 %v471
    %v2042 = vunpack.c.l.b16 %v472
    %v2043 = vunpack.c.h.b16 %v472
    %v2044 = vunpack.c.l.b16 %v473
    %v2045 = vunpack.c.h.b16 %v473
    %v2046 = vunpack.c.l.b16 %v474
    %v2047 = vunpack.c.h.b16 %v474
    %v2048 = vunpack.c.l.b16 %v475
    %v2049 = vunpack.c.h.b16 %v475
    %v2050 = vunpack.c.l.b16 %v476
    %v2051 = vunpack.c.h.b16 %v476
    %v2052 = vunpack.c.l.b16 %v477
    %v2053 = vunpack.c.h.b16 %v477
    %v2054 = vunpack.c.l.b16 %v478
    %v2055 = vunpack.c.h.b16 %v478
    %v2056 = vunpack.c.l.b16 %v479
    %v2057 = vunpack.c.h.b16 %v479
    %v2058 = vunpack.c.l.b16 %v480
    %v2059 = vunpack.c.h.b16 %v480
    %v2060 = vunpack.c.l.b16 %v481
    %v2061 = vunpack.c.h.b16 %v481
    %v2062 = vunpack.c.l.b16 %v482
    %v2063 = vunpack.c.h.b16 %v482
    %v2064 = vunpack.c.l.b16 %v483
    %v2065 = vunpack.c.h.b16 %v483
    %v2066 = vunpack.c.l.b16 %v484
    %v2067 = vunpack.c.h.b16 %v484
    %v2068 = vunpack.c.l.b16 %v485
    %v2069 = vunpack.c.h.b16 %v485
    %v2070 = vunpack.c.l.b16 %v486
    %v2071 = vunpack.c.h.b16 %v486
    %v2072 = vunpack.c.l.b16 %v487
    %v2073 = vunpack.c.h.b16 %v487
    %v2074 = vunpack.c.l.b16 %v488
    %v2075 = vunpack.c.h.b16 %v488
    %v2076 = vunpack.c.l.b16 %v489
    %v2077 = vunpack.c.h.b16 %v489
    %v2078 = vunpack.c.l.b16 %v490
    %v2079 = vunpack.c.h.b16 %v490
    %v2080 = vunpack.c.l.b16 %v491
    %v2081 = vunpack.c.h.b16 %v491
    %v2082 = vunpack.c.l.b16 %v492
    %v2083 = vunpack.c.h.b16 %v492
    %v2084 = vunpack.c.l.b16 %v493
    %v2085 = vunpack.c.h.b16 %v493
    %v2086 = vunpack.c.l.b16 %v494
    %v2087 = vunpack.c.h.b16 %v494
    %v2088 = vunpack.c.l.b16 %v495
    %v2089 = vunpack.c.h.b16 %v495
    %v2090 = vunpack.c.l.b16 %v496
    %v2091 = vunpack.c.h.b16 %v496
    %v2092 = vunpack.c.l.b16 %v497
    %v2093 = vunpack.c.h.b16 %v497
    %v2094 = vunpack.c.l.b16 %v498
    %v2095 = vunpack.c.h.b16 %v498
    %v2096 = vunpack.c.l.b16 %v499
    %v2097 = vunpack.c.h.b16 %v499
    %v2098 = vunpack.c.l.b16 %v500
    %v2099 = vunpack.c.h.b16 %v500
    %v2100 = vunpack.c.l.b16 %v501
    %v2101 = vunpack.c.h.b16 %v501
    %v2102 = vunpack.c.l.b16 %v502
    %v2103 = vunpack.c.h.b16 %v502
    %v2104 = vunpack.c.l.b16 %v503
    %v2105 = vunpack.c.h.b16 %v503
    %v2106 = vunpack.c.l.b16 %v504
    %v2107 = vunpack.c.h.b16 %v504
    %v2108 = vunpack.c.l.b16 %v505
    %v2109 = vunpack.c.h.b16 %v505
    %v2110 = vunpack.c.l.b16 %v506
    %v2111 = vunpack.c.h.b16 %v506
    %v2112 = vunpack.c.l.b16 %v507
    %v2113 = vunpack.c.h.b16 %v507
    %v2114 = vunpack.c.l.b16 %v508
    %v2115 = vunpack.c.h.b16 %v508
    %v2116 = vunpack.c.l.b16 %v509
    %v2117 = vunpack.c.h.b16 %v509
    %v2118 = vunpack.c.l.b16 %v510
    %v2119 = vunpack.c.h.b16 %v510
    %v2120 = vunpack.c.l.b16 %v511
    %v2121 = vunpack.c.h.b16 %v511
    %v2122 = vunpack.c.l.b16 %v512
    %v2123 = vunpack.c.h.b16 %v512
    %v2124 = vunpack.c.l.b16 %v513
    %v2125 = vunpack.c.h.b16 %v513
    %v2126 = vunpack.c.l.b16 %v514
    %v2127 = vunpack.c.h.b16 %v514
    %v2128 = vunpack.c.l.b16 %v515
    %v2129 = vunpack.c.h.b16 %v515
    %v2130 = vunpack.c.l.b16 %v516
    %v2131 = vunpack.c.h.b16 %v516
    %v2132 = vunpack.c.l.b16 %v517
    %v2133 = vunpack.c.h.b16 %v517
    %v2134 = vunpack.c.l.b16 %v518
    %v2135 = vunpack.c.h.b16 %v518
    %v2136 = vunpack.c.l.b16 %v519
    %v2137 = vunpack.c.h.b16 %v519
    %v2138 = vunpack.c.l.b16 %v520
    %v2139 = vunpack.c.h.b16 %v520
    %v2140 = vunpack.c.l.b16 %v521
    %v2141 = vunpack.c.h.b16 %v521
    %v2142 = vunpack.c.l.b16 %v522
    %v2143 = vunpack.c.h.b16 %v522
    %v2144 = vunpack.c.l.b16 %v523
    %v2145 = vunpack.c.h.b16 %v523
    %v2146 = vunpack.c.l.b16 %v524
    %v2147 = vunpack.c.h.b16 %v524
    %v2148 = vunpack.c.l.b16 %v525
    %v2149 = vunpack.c.h.b16 %v525
    %v2150 = vunpack.c.l.b16 %v526
    %v2151 = vunpack.c.h.b16 %v526
    %v2152 = vunpack.c.l.b16 %v527
    %v2153 = vunpack.c.h.b16 %v527
    %v2154 = vunpack.c.l.b16 %v528
    %v2155 = vunpack.c.h.b16 %v528
    %v2156 = vunpack.c.l.b16 %v529
    %v2157 = vunpack.c.h.b16 %v529
    %v2158 = vunpack.c.l.b16 %v530
    %v2159 = vunpack.c.h.b16 %v530
    %v2160 = vunpack.c.l.b16 %v531
    %v2161 = vunpack.c.h.b16 %v531
    %v2162 = vunpack.c.l.b16 %v532
    %v2163 = vunpack.c.h.b16 %v532
    %v2164 = vunpack.c.l.b16 %v533
    %v2165 = vunpack.c.h.b16 %v533
    %v2166 = vunpack.c.l.b16 %v534
    %v2167 = vunpack.c.h.b16 %v534
    %v2168 = vunpack.c.l.b16 %v535
    %v2169 = vunpack.c.h.b16 %v535
    %v2170 = vunpack.c.l.b16 %v536
    %v2171 = vunpack.c.h.b16 %v536
    %v2172 = vunpack.c.l.b16 %v537
    %v2173 = vunpack.c.h.b16 %v537
    %v2174 = vunpack.c.l.b16 %v538
    %v2175 = vunpack.c.h.b16 %v538
    %v2176 = vunpack.c.l.b16 %v539
    %v2177 = vunpack.c.h.b16 %v539
    %v2178 = vunpack.c.l.b16 %v540
    %v2179 = vunpack.c.h.b16 %v540
    %v2180 = vunpack.c.l.b16 %v541
    %v2181 = vunpack.c.h.b16 %v541
    %v2182 = vunpack.c.l.b16 %v542
    %v2183 = vunpack.c.h.b16 %v542
    %v2184 = vunpack.c.l.b16 %v543
    %v2185 = vunpack.c.h.b16 %v543
    %v2186 = vunpack.c.l.b16 %v544
    %v2187 = vunpack.c.h.b16 %v544
    %v2188 = vunpack.c.l.b16 %v545
    %v2189 = vunpack.c.h.b16 %v545
    %v2190 = vunpack.c.l.b16 %v546
    %v2191 = vunpack.c.h.b16 %v546
    %v2192 = vunpack.c.l.b16 %v547
    %v2193 = vunpack.c.h.b16 %v547
    %v2194 = vunpack.c.l.b16 %v548
    %v2195 = vunpack.c.h.b16 %v548
    %v2196 = vunpack.c.l.b16 %v549
    %v2197 = vunpack.c.h.b16 %v549
    %v2198 = vunpack.c.l.b16 %v550
    %v2199 = vunpack.c.h.b16 %v550
    %v2200 = vunpack.c.l.b16 %v551
    %v2201 = vunpack.c.h.b16 %v551
    %v2202 = vunpack.c.l.b16 %v552
    %v2203 = vunpack.c.h.b16 %v552
    %v2204 = vunpack.c.l.b16 %v553
    %v2205 = vunpack.c.h.b16 %v553
    %v2206 = vunpack.c.l.b16 %v554
    %v2207 = vunpack.c.h.b16 %v554
    %v2208 = vunpack.c.l.b16 %v555
    %v2209 = vunpack.c.h.b16 %v555
    %v2210 = vunpack.c.l.b16 %v556
    %v2211 = vunpack.c.h.b16 %v556
    %v2212 = vunpack.c.l.b16 %v557
    %v2213 = vunpack.c.h.b16 %v557
    %v2214 = vunpack.c.l.b16 %v558
    %v2215 = vunpack.c.h.b16 %v558
    %v2216 = vunpack.c.l.b16 %v559
    %v2217 = vunpack.c.h.b16 %v559
    %v2218 = vunpack.c.l.b16 %v560
    %v2219 = vunpack.c.h.b16 %v560
    %v2220 = vunpack.c.l.b16 %v561
    %v2221 = vunpack.c.h.b16 %v561
    %v2222 = vunpack.c.l.b16 %v562
    %v2223 = vunpack.c.h.b16 %v562
    %v2224 = vunpack.c.l.b16 %v563
    %v2225 = vunpack.c.h.b16 %v563
    %v2226 = vunpack.c.l.b16 %v564
    %v2227 = vunpack.c.h.b16 %v564
    %v2228 = vunpack.c.l.b16 %v565
    %v2229 = vunpack.c.h.b16 %v565
    %v2230 = vunpack.c.l.b16 %v566
    %v2231 = vunpack.c.h.b16 %v566
    %v2232 = vunpack.c.l.b16 %v567
    %v2233 = vunpack.c.h.b16 %v567
    %v2234 = vunpack.c.l.b16 %v568
    %v2235 = vunpack.c.h.b16 %v568
    %v2236 = vunpack.c.l.b16 %v569
    %v2237 = vunpack.c.h.b16 %v569
    %v2238 = vunpack.c.l.b16 %v570
    %v2239 = vunpack.c.h.b16 %v570
    %v2240 = vunpack.c.l.b16 %v571
    %v2241 = vunpack.c.h.b16 %v571
    %v2242 = vunpack.c.l.b16 %v572
    %v2243 = vunpack.c.h.b16 %v572
    %v2244 = vunpack.c.l.b16 %v573
    %v2245 = vunpack.c.h.b16 %v573
    %v2246 = vunpack.c.l.b16 %v574
    %v2247 = vunpack.c.h.b16 %v574
    %v2248 = vunpack.c.l.b16 %v575
    %v2249 = vunpack.c.h.b16 %v575
    %v2250 = vunpack.c.l.b16 %v576
    %v2251 = vunpack.c.h.b16 %v576
    %v2252 = vunpack.c.l.b16 %v577
    %v2253 = vunpack.c.h.b16 %v577
    %v2254 = vunpack.c.l.b16 %v578
    %v2255 = vunpack.c.h.b16 %v578
    %v2256 = vunpack.c.l.b16 %v579
    %v2257 = vunpack.c.h.b16 %v579
    %v2258 = vunpack.c.l.b16 %v580
    %v2259 = vunpack.c.h.b16 %v580
    %v2260 = vunpack.c.l.b16 %v581
    %v2261 = vunpack.c.h.b16 %v581
    %v2262 = vunpack.c.l.b16 %v582
    %v2263 = vunpack.c.h.b16 %v582
    %v2264 = vunpack.c.l.b16 %v583
    %v2265 = vunpack.c.h.b16 %v583
    %v2266 = vunpack.c.l.b16 %v584
    %v2267 = vunpack.c.h.b16 %v584
    %v2268 = vunpack.c.l.b16 %v585
    %v2269 = vunpack.c.h.b16 %v585
    %v2270 = vunpack.c.l.b16 %v586
    %v2271 = vunpack.c.h.b16 %v586
    %v2272 = vunpack.c.l.b16 %v587
    %v2273 = vunpack.c.h.b16 %v587
    %v2274 = vunpack.c.l.b16 %v588
    %v2275 = vunpack.c.h.b16 %v588
    %v2276 = vunpack.c.l.b16 %v589
    %v2277 = vunpack.c.h.b16 %v589
    %v2278 = vunpack.c.l.b16 %v590
    %v2279 = vunpack.c.h.b16 %v590
    %v2280 = vunpack.c.l.b16 %v591
    %v2281 = vunpack.c.h.b16 %v591
    %v2282 = vunpack.c.l.b16 %v592
    %v2283 = vunpack.c.h.b16 %v592
    %v2284 = vunpack.c.l.b16 %v593
    %v2285 = vunpack.c.h.b16 %v593
    %v2286 = vunpack.c.l.b16 %v594
    %v2287 = vunpack.c.h.b16 %v594
    %v2288 = vunpack.c.l.b16 %v595
    %v2289 = vunpack.c.h.b16 %v595
    %v2290 = vunpack.c.l.b16 %v596
    %v2291 = vunpack.c.h.b16 %v596
    %v2292 = vunpack.c.l.b16 %v597
    %v2293 = vunpack.c.h.b16 %v597
    %v2294 = vunpack.c.l.b16 %v598
    %v2295 = vunpack.c.h.b16 %v598
    %v2296 = vunpack.c.l.b16 %v599
    %v2297 = vunpack.c.h.b16 %v599
    %v2298 = vunpack.c.l.b16 %v600
    %v2299 = vunpack.c.h.b16 %v600
    %v2300 = vunpack.c.l.b16 %v601
    %v2301 = vunpack.c.h.b16 %v601
    %v2302 = vunpack.c.l.b16 %v602
    %v2303 = vunpack.c.h.b16 %v602
    %v2304 = vunpack.c.l.b16 %v603
    %v2305 = vunpack.c.h.b16 %v603
    %v2306 = vpack.c.b16 %v1284, %v1282
    %v2307 = vpack.c.b16 %v1285, %v1283
    %v2308 = vpack.c.b16 %v1288, %v1286
    %v2309 = vpack.c.b16 %v1289, %v1287
    %v2310 = vpack.c.b16 %v1292, %v1290
    %v2311 = vpack.c.b16 %v1293, %v1291
    %v2312 = vpack.c.b16 %v1296, %v1294
    %v2313 = vpack.c.b16 %v1297, %v1295
    %v2314 = vpack.c.b16 %v1300, %v1298
    %v2315 = vpack.c.b16 %v1301, %v1299
    %v2316 = vpack.c.b16 %v1304, %v1302
    %v2317 = vpack.c.b16 %v1305, %v1303
    %v2318 = vpack.c.b16 %v1308, %v1306
    %v2319 = vpack.c.b16 %v1309, %v1307
    %v2320 = vpack.c.b16 %v1312, %v1310
    %v2321 = vpack.c.b16 %v1313, %v1311
    %v2322 = vpack.c.b16 %v1316, %v1314
    %v2323 = vpack.c.b16 %v1317, %v1315
    %v2324 = vpack.c.b16 %v1320, %v1318
    %v2325 = vpack.c.b16 %v1321, %v1319
    %v2326 = vpack.c.b16 %v1324, %v1322
    %v2327 = vpack.c.b16 %v1325, %v1323
    %v2328 = vpack.c.b16 %v1328, %v1326
    %v2329 = vpack.c.b16 %v1329, %v1327
    %v2330 = vpack.c.b16 %v1332, %v1330
    %v2331 = vpack.c.b16 %v1333, %v1331
    %v2332 = vpack.c.b16 %v1336, %v1334
    %v2333 = vpack.c.b16 %v1337, %v1335
    %v2334 = vpack.c.b16 %v1340, %v1338
    %v2335 = vpack.c.b16 %v1341, %v1339
    %v2336 = vpack.c.b16 %v1344, %v1342
    %v2337 = vpack.c.b16 %v1345, %v1343
    %v2338 = vpack.c.b16 %v1348, %v1346
    %v2339 = vpack.c.b16 %v1349, %v1347
    %v2340 = vpack.c.b16 %v1352, %v1350
    %v2341 = vpack.c.b16 %v1353, %v1351
    %v2342 = vpack.c.b16 %v1356, %v1354
    %v2343 = vpack.c.b16 %v1357, %v1355
    %v2344 = vpack.c.b16 %v1360, %v1358
    %v2345 = vpack.c.b16 %v1361, %v1359
    %v2346 = vpack.c.b16 %v1364, %v1362
    %v2347 = vpack.c.b16 %v1365, %v1363
    %v2348 = vpack.c.b16 %v1368, %v1366
    %v2349 = vpack.c.b16 %v1369, %v1367
    %v2350 = vpack.c.b16 %v1372, %v1370
    %v2351 = vpack.c.b16 %v1373, %v1371
    %v2352 = vpack.c.b16 %v1376, %v1374
    %v2353 = vpack.c.b16 %v1377, %v1375
    %v2354 = vpack.c.b16 %v1380, %v1378
    %v2355 = vpack.c.b16 %v1381, %v1379
    %v2356 = vpack.c.b16 %v1384, %v1382
    %v2357 = vpack.c.b16 %v1385, %v1383
    %v2358 = vpack.c.b16 %v1388, %v1386
    %v2359 = vpack.c.b16 %v1389, %v1387
    %v2360 = vpack.c.b16 %v1392, %v1390
    %v2361 = vpack.c.b16 %v1393, %v1391
    %v2362 = vpack.c.b16 %v1396, %v1394
    %v2363 = vpack.c.b16 %v1397, %v1395
    %v2364 = vpack.c.b16 %v1400, %v1398
    %v2365 = vpack.c.b16 %v1401, %v1399
    %v2366 = vpack.c.b16 %v1404, %v1402
    %v2367 = vpack.c.b16 %v1405, %v1403
    %v2368 = vpack.c.b16 %v1408, %v1406
    %v2369 = vpack.c.b16 %v1409, %v1407
    %v2370 = vpack.c.b16 %v1412, %v1410
    %v2371 = vpack.c.b16 %v1413, %v1411
    %v2372 = vpack.c.b16 %v1416, %v1414
    %v2373 = vpack.c.b16 %v1417, %v1415
    %v2374 = vpack.c.b16 %v1420, %v1418
    %v2375 = vpack.c.b16 %v1421, %v1419
    %v2376 = vpack.c.b16 %v1424, %v1422
    %v2377 = vpack.c.b16 %v1425, %v1423
    %v2378 = vpack.c.b16 %v1428, %v1426
    %v2379 = vpack.c.b16 %v1429, %v1427
    %v2380 = vpack.c.b16 %v1432, %v1430
    %v2381 = vpack.c.b16 %v1433, %v1431
    %v2382 = vpack.c.b16 %v1436, %v1434
    %v2383 = vpack.c.b16 %v1437, %v1435
    %v2384 = vpack.c.b16 %v1440, %v1438
    %v2385 = vpack.c.b16 %v1441, %v1439
    %v2386 = vpack.c.b16 %v1444, %v1442
    %v2387 = vpack.c.b16 %v1445, %v1443
    %v2388 = vpack.c.b16 %v1448, %v1446
    %v2389 = vpack.c.b16 %v1449, %v1447
    %v2390 = vpack.c.b16 %v1452, %v1450
    %v2391 = vpack.c.b16 %v1453, %v1451
    %v2392 = vpack.c.b16 %v1456, %v1454
    %v2393 = vpack.c.b16 %v1457, %v1455
    %v2394 = vpack.c.b16 %v1460, %v1458
    %v2395 = vpack.c.b16 %v1461, %v1459
    %v2396 = vpack.c.b16 %v1464, %v1462
    %v2397 = vpack.c.b16 %v1465, %v1463
    %v2398 = vpack.c.b16 %v1468, %v1466
    %v2399 = vpack.c.b16 %v1469, %v1467
    %v2400 = vpack.c.b16 %v1472, %v1470
    %v2401 = vpack.c.b16 %v1473, %v1471
    %v2402 = vpack.c.b16 %v1476, %v1474
    %v2403 = vpack.c.b16 %v1477, %v1475
    %v2404 = vpack.c.b16 %v1480, %v1478
    %v2405 = vpack.c.b16 %v1481, %v1479
    %v2406 = vpack.c.b16 %v1484, %v1482
    %v2407 = vpack.c.b16 %v1485, %v1483
    %v2408 = vpack.c.b16 %v1488, %v1486
    %v2409 = vpack.c.b16 %v1489, %v1487
    %v2410 = vpack.c.b16 %v1492, %v1490
    %v2411 = vpack.c.b16 %v1493, %v1491
    %v2412 = vpack.c.b16 %v1496, %v1494
    %v2413 = vpack.c.b16 %v1497, %v1495
    %v2414 = vpack.c.b16 %v1500, %v1498
    %v2415 = vpack.c.b16 %v1501, %v1499
    %v2416 = vpack.c.b16 %v1504, %v1502
    %v2417 = vpack.c.b16 %v1505, %v1503
    %v2418 = vpack.c.b16 %v1508, %v1506
    %v2419 = vpack.c.b16 %v1509, %v1507
    %v2420 = vpack.c.b16 %v1512, %v1510
    %v2421 = vpack.c.b16 %v1513, %v1511
    %v2422 = vpack.c.b16 %v1516, %v1514
    %v2423 = vpack.c.b16 %v1517, %v1515
    %v2424 = vpack.c.b16 %v1520, %v1518
    %v2425 = vpack.c.b16 %v1521, %v1519
    %v2426 = vpack.c.b16 %v1524, %v1522
    %v2427 = vpack.c.b16 %v1525, %v1523
    %v2428 = vpack.c.b16 %v1528, %v1526
    %v2429 = vpack.c.b16 %v1529, %v1527
    %v2430 = vpack.c.b16 %v1532, %v1530
    %v2431 = vpack.c.b16 %v1533, %v1531
    %v2432 = vpack.c.b16 %v1536, %v1534
    %v2433 = vpack.c.b16 %v1537, %v1535
    %v2434 = vpack.c.b16 %v1540, %v1538
    %v2435 = vpack.c.b16 %v1541, %v1539
    %v2436 = vpack.c.b16 %v1544, %v1542
    %v2437 = vpack.c.b16 %v1545, %v1543
    %v2438 = vpack.c.b16 %v1548, %v1546
    %v2439 = vpack.c.b16 %v1549, %v1547
    %v2440 = vpack.c.b16 %v1552, %v1550
    %v2441 = vpack.c.b16 %v1553, %v1551
    %v2442 = vpack.c.b16 %v1556, %v1554
    %v2443 = vpack.c.b16 %v1557, %v1555
    %v2444 = vpack.c.b16 %v1560, %v1558
    %v2445 = vpack.c.b16 %v1561, %v1559
    %v2446 = vpack.c.b16 %v1564, %v1562
    %v2447 = vpack.c.b16 %v1565, %v1563
    %v2448 = vpack.c.b16 %v1568, %v1566
    %v2449 = vpack.c.b16 %v1569, %v1567
    %v2450 = vpack.c.b16 %v1572, %v1570
    %v2451 = vpack.c.b16 %v1573, %v1571
    %v2452 = vpack.c.b16 %v1576, %v1574
    %v2453 = vpack.c.b16 %v1577, %v1575
    %v2454 = vpack.c.b16 %v1580, %v1578
    %v2455 = vpack.c.b16 %v1581, %v1579
    %v2456 = vpack.c.b16 %v1584, %v1582
    %v2457 = vpack.c.b16 %v1585, %v1583
    %v2458 = vpack.c.b16 %v1588, %v1586
    %v2459 = vpack.c.b16 %v1589, %v1587
    %v2460 = vpack.c.b16 %v1592, %v1590
    %v2461 = vpack.c.b16 %v1593, %v1591
    %v2462 = vpack.c.b16 %v1596, %v1594
    %v2463 = vpack.c.b16 %v1597, %v1595
    %v2464 = vpack.c.b16 %v1600, %v1598
    %v2465 = vpack.c.b16 %v1601, %v1599
    %v2466 = vpack.c.b16 %v1604, %v1602
    %v2467 = vpack.c.b16 %v1605, %v1603
    %v2468 = vpack.c.b16 %v1608, %v1606
    %v2469 = vpack.c.b16 %v1609, %v1607
    %v2470 = vpack.c.b16 %v1612, %v1610
    %v2471 = vpack.c.b16 %v1613, %v1611
    %v2472 = vpack.c.b16 %v1616, %v1614
    %v2473 = vpack.c.b16 %v1617, %v1615
    %v2474 = vpack.c.b16 %v1620, %v1618
    %v2475 = vpack.c.b16 %v1621, %v1619
    %v2476 = vpack.c.b16 %v1624, %v1622
    %v2477 = vpack.c.b16 %v1625, %v1623
    %v2478 = vpack.c.b16 %v1628, %v1626
    %v2479 = vpack.c.b16 %v1629, %v1627
    %v2480 = vpack.c.b16 %v1632, %v1630
    %v2481 = vpack.c.b16 %v1633, %v1631
    %v2482 = vpack.c.b16 %v1636, %v1634
    %v2483 = vpack.c.b16 %v1637, %v1635
    %v2484 = vpack.c.b16 %v1640, %v1638
    %v2485 = vpack.c.b16 %v1641, %v1639
    %v2486 = vpack.c.b16 %v1644, %v1642
    %v2487 = vpack.c.b16 %v1645, %v1643
    %v2488 = vpack.c.b16 %v1648, %v1646
    %v2489 = vpack.c.b16 %v1649, %v1647
    %v2490 = vpack.c.b16 %v1652, %v1650
    %v2491 = vpack.c.b16 %v1653, %v1651
    %v2492 = vpack.c.b16 %v1656, %v1654
    %v2493 = vpack.c.b16 %v1657, %v1655
    %v2494 = vpack.c.b16 %v1660, %v1658
    %v2495 = vpack.c.b16 %v1661, %v1659
    %v2496 = vpack.c.b16 %v1664, %v1662
    %v2497 = vpack.c.b16 %v1665, %v1663
    %v2498 = vpack.c.b16 %v1668, %v1666
    %v2499 = vpack.c.b16 %v1669, %v1667
    %v2500 = vpack.c.b16 %v1672, %v1670
    %v2501 = vpack.c.b16 %v1673, %v1671
    %v2502 = vpack.c.b16 %v1676, %v1674
    %v2503 = vpack.c.b16 %v1677, %v1675
    %v2504 = vpack.c.b16 %v1680, %v1678
    %v2505 = vpack.c.b16 %v1681, %v1679
    %v2506 = vpack.c.b16 %v1684, %v1682
    %v2507 = vpack.c.b16 %v1685, %v1683
    %v2508 = vpack.c.b16 %v1688, %v1686
    %v2509 = vpack.c.b16 %v1689, %v1687
    %v2510 = vpack.c.b16 %v1692, %v1690
    %v2511 = vpack.c.b16 %v1693, %v1691
    %v2512 = vpack.c.b16 %v1696, %v1694
    %v2513 = vpack.c.b16 %v1697, %v1695
    %v2514 = vpack.c.b16 %v1700, %v1698
    %v2515 = vpack.c.b16 %v1701, %v1699
    %v2516 = vpack.c.b16 %v1704, %v1702
    %v2517 = vpack.c.b16 %v1705, %v1703
    %v2518 = vpack.c.b16 %v1708, %v1706
    %v2519 = vpack.c.b16 %v1709, %v1707
    %v2520 = vpack.c.b16 %v1712, %v1710
    %v2521 = vpack.c.b16 %v1713, %v1711
    %v2522 = vpack.c.b16 %v1716, %v1714
    %v2523 = vpack.c.b16 %v1717, %v1715
    %v2524 = vpack.c.b16 %v1720, %v1718
    %v2525 = vpack.c.b16 %v1721, %v1719
    %v2526 = vpack.c.b16 %v1724, %v1722
    %v2527 = vpack.c.b16 %v1725, %v1723
    %v2528 = vpack.c.b16 %v1728, %v1726
    %v2529 = vpack.c.b16 %v1729, %v1727
    %v2530 = vpack.c.b16 %v1732, %v1730
    %v2531 = vpack.c.b16 %v1733, %v1731
    %v2532 = vpack.c.b16 %v1736, %v1734
    %v2533 = vpack.c.b16 %v1737, %v1735
    %v2534 = vpack.c.b16 %v1740, %v1738
    %v2535 = vpack.c.b16 %v1741, %v1739
    %v2536 = vpack.c.b16 %v1744, %v1742
    %v2537 = vpack.c.b16 %v1745, %v1743
    %v2538 = vpack.c.b16 %v1748, %v1746
    %v2539 = vpack.c.b16 %v1749, %v1747
    %v2540 = vpack.c.b16 %v1752, %v1750
    %v2541 = vpack.c.b16 %v1753, %v1751
    %v2542 = vpack.c.b16 %v1756, %v1754
    %v2543 = vpack.c.b16 %v1757, %v1755
    %v2544 = vpack.c.b16 %v1760, %v1758
    %v2545 = vpack.c.b16 %v1761, %v1759
    %v2546 = vpack.c.b16 %v1764, %v1762
    %v2547 = vpack.c.b16 %v1765, %v1763
    %v2548 = vpack.c.b16 %v1768, %v1766
    %v2549 = vpack.c.b16 %v1769, %v1767
    %v2550 = vpack.c.b16 %v1772, %v1770
    %v2551 = vpack.c.b16 %v1773, %v1771
    %v2552 = vpack.c.b16 %v1776, %v1774
    %v2553 = vpack.c.b16 %v1777, %v1775
    %v2554 = vpack.c.b16 %v1780, %v1778
    %v2555 = vpack.c.b16 %v1781, %v1779
    %v2556 = vpack.c.b16 %v1784, %v1782
    %v2557 = vpack.c.b16 %v1785, %v1783
    %v2558 = vpack.c.b16 %v1788, %v1786
    %v2559 = vpack.c.b16 %v1789, %v1787
    %v2560 = vpack.c.b16 %v1792, %v1790
    %v2561 = vpack.c.b16 %v1793, %v1791
    %v2562 = vpack.c.b16 %v1796, %v1794
    %v2563 = vpack.c.b16 %v1797, %v1795
    %v2564 = vpack.c.b16 %v1800, %v1798
    %v2565 = vpack.c.b16 %v1801, %v1799
    %v2566 = vpack.c.b16 %v1804, %v1802
    %v2567 = vpack.c.b16 %v1805, %v1803
    %v2568 = vpack.c.b16 %v1808, %v1806
    %v2569 = vpack.c.b16 %v1809, %v1807
    %v2570 = vpack.c.b16 %v1812, %v1810
    %v2571 = vpack.c.b16 %v1813, %v1811
    %v2572 = vpack.c.b16 %v1816, %v1814
    %v2573 = vpack.c.b16 %v1817, %v1815
    %v2574 = vpack.c.b16 %v1820, %v1818
    %v2575 = vpack.c.b16 %v1821, %v1819
    %v2576 = vpack.c.b16 %v1824, %v1822
    %v2577 = vpack.c.b16 %v1825, %v1823
    %v2578 = vpack.c.b16 %v1828, %v1826
    %v2579 = vpack.c.b16 %v1829, %v1827
    %v2580 = vpack.c.b16 %v1832, %v1830
    %v2581 = vpack.c.b16 %v1833, %v1831
    %v2582 = vpack.c.b16 %v1836, %v1834
    %v2583 = vpack.c.b16 %v1837, %v1835
    %v2584 = vpack.c.b16 %v1840, %v1838
    %v2585 = vpack.c.b16 %v1841, %v1839
    %v2586 = vpack.c.b16 %v1844, %v1842
    %v2587 = vpack.c.b16 %v1845, %v1843
    %v2588 = vpack.c.b16 %v1848, %v1846
    %v2589 = vpack.c.b16 %v1849, %v1847
    %v2590 = vpack.c.b16 %v1852, %v1850
    %v2591 = vpack.c.b16 %v1853, %v1851
    %v2592 = vpack.c.b16 %v1856, %v1854
    %v2593 = vpack.c.b16 %v1857, %v1855
    %v2594 = vpack.c.b16 %v1860, %v1858
    %v2595 = vpack.c.b16 %v1861, %v1859
    %v2596 = vpack.c.b16 %v1864, %v1862
    %v2597 = vpack.c.b16 %v1865, %v1863
    %v2598 = vpack.c.b16 %v1868, %v1866
    %v2599 = vpack.c.b16 %v1869, %v1867
    %v2600 = vpack.c.b16 %v1872, %v1870
    %v2601 = vpack.c.b16 %v1873, %v1871
    %v2602 = vpack.c.b16 %v1876, %v1874
    %v2603 = vpack.c.b16 %v1877, %v1875
    %v2604 = vpack.c.b16 %v1880, %v1878
    %v2605 = vpack.c.b16 %v1881, %v1879
    %v2606 = vpack.c.b16 %v1884, %v1882
    %v2607 = vpack.c.b16 %v1885, %v1883
    %v2608 = vpack.c.b16 %v1888, %v1886
    %v2609 = vpack.c.b16 %v1889, %v1887
    %v2610 = vpack.c.b16 %v1892, %v1890
    %v2611 = vpack.c.b16 %v1893, %v1891
    %v2612 = vpack.c.b16 %v1896, %v1894
    %v2613 = vpack.c.b16 %v1897, %v1895
    %v2614 = vpack.c.b16 %v1900, %v1898
    %v2615 = vpack.c.b16 %v1901, %v1899
    %v2616 = vpack.c.b16 %v1904, %v1902
    %v2617 = vpack.c.b16 %v1905, %v1903
    %v2618 = vpack.c.b16 %v1908, %v1906
    %v2619 = vpack.c.b16 %v1909, %v1907
    %v2620 = vpack.c.b16 %v1912, %v1910
    %v2621 = vpack.c.b16 %v1913, %v1911
    %v2622 = vpack.c.b16 %v1916, %v1914
    %v2623 = vpack.c.b16 %v1917, %v1915
    %v2624 = vpack.c.b16 %v1920, %v1918
    %v2625 = vpack.c.b16 %v1921, %v1919
    %v2626 = vpack.c.b16 %v1924, %v1922
    %v2627 = vpack.c.b16 %v1925, %v1923
    %v2628 = vpack.c.b16 %v1928, %v1926
    %v2629 = vpack.c.b16 %v1929, %v1927
    %v2630 = vpack.c.b16 %v1932, %v1930
    %v2631 = vpack.c.b16 %v1933, %v1931
    %v2632 = vpack.c.b16 %v1936, %v1934
    %v2633 = vpack.c.b16 %v1937, %v1935
    %v2634 = vpack.c.b16 %v1940, %v1938
    %v2635 = vpack.c.b16 %v1941, %v1939
    %v2636 = vpack.c.b16 %v1944, %v1942
    %v2637 = vpack.c.b16 %v1945, %v1943
    %v2638 = vpack.c.b16 %v1948, %v1946
    %v2639 = vpack.c.b16 %v1949, %v1947
    %v2640 = vpack.c.b16 %v1952, %v1950
    %v2641 = vpack.c.b16 %v1953, %v1951
    %v2642 = vpack.c.b16 %v1956, %v1954
    %v2643 = vpack.c.b16 %v1957, %v1955
    %v2644 = vpack.c.b16 %v1960, %v1958
    %v2645 = vpack.c.b16 %v1961, %v1959
    %v2646 = vpack.c.b16 %v1964, %v1962
    %v2647 = vpack.c.b16 %v1965, %v1963
    %v2648 = vpack.c.b16 %v1968, %v1966
    %v2649 = vpack.c.b16 %v1969, %v1967
    %v2650 = vpack.c.b16 %v1972, %v1970
    %v2651 = vpack.c.b16 %v1973, %v1971
    %v2652 = vpack.c.b16 %v1976, %v1974
    %v2653 = vpack.c.b16 %v1977, %v1975
    %v2654 = vpack.c.b16 %v1980, %v1978
    %v2655 = vpack.c.b16 %v1981, %v1979
    %v2656 = vpack.c.b16 %v1984, %v1982
    %v2657 = vpack.c.b16 %v1985, %v1983
    %v2658 = vpack.c.b16 %v1988, %v1986
    %v2659 = vpack.c.b16 %v1989, %v1987
    %v2660 = vpack.c.b16 %v1992, %v1990
    %v2661 = vpack.c.b16 %v1993, %v1991
    %v2662 = vpack.c.b16 %v1996, %v1994
    %v2663 = vpack.c.b16 %v1997, %v1995
    %v2664 = vpack.c.b16 %v2000, %v1998
    %v2665 = vpack.c.b16 %v2001, %v1999
    %v2666 = vpack.c.b16 %v2004, %v2002
    %v2667 = vpack.c.b16 %v2005, %v2003
    %v2668 = vpack.c.b16 %v2008, %v2006
    %v2669 = vpack.c.b16 %v2009, %v2007
    %v2670 = vpack.c.b16 %v2012, %v2010
    %v2671 = vpack.c.b16 %v2013, %v2011
    %v2672 = vpack.c.b16 %v2016, %v2014
    %v2673 = vpack.c.b16 %v2017, %v2015
    %v2674 = vpack.c.b16 %v2020, %v2018
    %v2675 = vpack.c.b16 %v2021, %v2019
    %v2676 = vpack.c.b16 %v2024, %v2022
    %v2677 = vpack.c.b16 %v2025, %v2023
    %v2678 = vpack.c.b16 %v2028, %v2026
    %v2679 = vpack.c.b16 %v2029, %v2027
    %v2680 = vpack.c.b16 %v2032, %v2030
    %v2681 = vpack.c.b16 %v2033, %v2031
    %v2682 = vpack.c.b16 %v2036, %v2034
    %v2683 = vpack.c.b16 %v2037, %v2035
    %v2684 = vpack.c.b16 %v2040, %v2038
    %v2685 = vpack.c.b16 %v2041, %v2039
    %v2686 = vpack.c.b16 %v2044, %v2042
    %v2687 = vpack.c.b16 %v2045, %v2043
    %v2688 = vpack.c.b16 %v2048, %v2046
    %v2689 = vpack.c.b16 %v2049, %v2047
    %v2690 = vpack.c.b16 %v2052, %v2050
    %v2691 = vpack.c.b16 %v2053, %v2051
    %v2692 = vpack.c.b16 %v2056, %v2054
    %v2693 = vpack.c.b16 %v2057, %v2055
    %v2694 = vpack.c.b16 %v2060, %v2058
    %v2695 = vpack.c.b16 %v2061, %v2059
    %v2696 = vpack.c.b16 %v2064, %v2062
    %v2697 = vpack.c.b16 %v2065, %v2063
    %v2698 = vpack.c.b16 %v2068, %v2066
    %v2699 = vpack.c.b16 %v2069, %v2067
    %v2700 = vpack.c.b16 %v2072, %v2070
    %v2701 = vpack.c.b16 %v2073, %v2071
    %v2702 = vpack.c.b16 %v2076, %v2074
    %v2703 = vpack.c.b16 %v2077, %v2075
    %v2704 = vpack.c.b16 %v2080, %v2078
    %v2705 = vpack.c.b16 %v2081, %v2079
    %v2706 = vpack.c.b16 %v2084, %v2082
    %v2707 = vpack.c.b16 %v2085, %v2083
    %v2708 = vpack.c.b16 %v2088, %v2086
    %v2709 = vpack.c.b16 %v2089, %v2087
    %v2710 = vpack.c.b16 %v2092, %v2090
    %v2711 = vpack.c.b16 %v2093, %v2091
    %v2712 = vpack.c.b16 %v2096, %v2094
    %v2713 = vpack.c.b16 %v2097, %v2095
    %v2714 = vpack.c.b16 %v2100, %v2098
    %v2715 = vpack.c.b16 %v2101, %v2099
    %v2716 = vpack.c.b16 %v2104, %v2102
    %v2717 = vpack.c.b16 %v2105, %v2103
    %v2718 = vpack.c.b16 %v2108, %v2106
    %v2719 = vpack.c.b16 %v2109, %v2107
    %v2720 = vpack.c.b16 %v2112, %v2110
    %v2721 = vpack.c.b16 %v2113, %v2111
    %v2722 = vpack.c.b16 %v2116, %v2114
    %v2723 = vpack.c.b16 %v2117, %v2115
    %v2724 = vpack.c.b16 %v2120, %v2118
    %v2725 = vpack.c.b16 %v2121, %v2119
    %v2726 = vpack.c.b16 %v2124, %v2122
    %v2727 = vpack.c.b16 %v2125, %v2123
    %v2728 = vpack.c.b16 %v2128, %v2126
    %v2729 = vpack.c.b16 %v2129, %v2127
    %v2730 = vpack.c.b16 %v2132, %v2130
    %v2731 = vpack.c.b16 %v2133, %v2131
    %v2732 = vpack.c.b16 %v2136, %v2134
    %v2733 = vpack.c.b16 %v2137, %v2135
    %v2734 = vpack.c.b16 %v2140, %v2138
    %v2735 = vpack.c.b16 %v2141, %v2139
    %v2736 = vpack.c.b16 %v2144, %v2142
    %v2737 = vpack.c.b16 %v2145, %v2143
    %v2738 = vpack.c.b16 %v2148, %v2146
    %v2739 = vpack.c.b16 %v2149, %v2147
    %v2740 = vpack.c.b16 %v2152, %v2150
    %v2741 = vpack.c.b16 %v2153, %v2151
    %v2742 = vpack.c.b16 %v2156, %v2154
    %v2743 = vpack.c.b16 %v2157, %v2155
    %v2744 = vpack.c.b16 %v2160, %v2158
    %v2745 = vpack.c.b16 %v2161, %v2159
    %v2746 = vpack.c.b16 %v2164, %v2162
    %v2747 = vpack.c.b16 %v2165, %v2163
    %v2748 = vpack.c.b16 %v2168, %v2166
    %v2749 = vpack.c.b16 %v2169, %v2167
    %v2750 = vpack.c.b16 %v2172, %v2170
    %v2751 = vpack.c.b16 %v2173, %v2171
    %v2752 = vpack.c.b16 %v2176, %v2174
    %v2753 = vpack.c.b16 %v2177, %v2175
    %v2754 = vpack.c.b16 %v2180, %v2178
    %v2755 = vpack.c.b16 %v2181, %v2179
    %v2756 = vpack.c.b16 %v2184, %v2182
    %v2757 = vpack.c.b16 %v2185, %v2183
    %v2758 = vpack.c.b16 %v2188, %v2186
    %v2759 = vpack.c.b16 %v2189, %v2187
    %v2760 = vpack.c.b16 %v2192, %v2190
    %v2761 = vpack.c.b16 %v2193, %v2191
    %v2762 = vpack.c.b16 %v2196, %v2194
    %v2763 = vpack.c.b16 %v2197, %v2195
    %v2764 = vpack.c.b16 %v2200, %v2198
    %v2765 = vpack.c.b16 %v2201, %v2199
    %v2766 = vpack.c.b16 %v2204, %v2202
    %v2767 = vpack.c.b16 %v2205, %v2203
    %v2768 = vpack.c.b16 %v2208, %v2206
    %v2769 = vpack.c.b16 %v2209, %v2207
    %v2770 = vpack.c.b16 %v2212, %v2210
    %v2771 = vpack.c.b16 %v2213, %v2211
    %v2772 = vpack.c.b16 %v2216, %v2214
    %v2773 = vpack.c.b16 %v2217, %v2215
    %v2774 = vpack.c.b16 %v2220, %v2218
    %v2775 = vpack.c.b16 %v2221, %v2219
    %v2776 = vpack.c.b16 %v2224, %v2222
    %v2777 = vpack.c.b16 %v2225, %v2223
    %v2778 = vpack.c.b16 %v2228, %v2226
    %v2779 = vpack.c.b16 %v2229, %v2227
    %v2780 = vpack.c.b16 %v2232, %v2230
    %v2781 = vpack.c.b16 %v2233, %v2231
    %v2782 = vpack.c.b16 %v2236, %v2234
    %v2783 = vpack.c.b16 %v2237, %v2235
    %v2784 = vpack.c.b16 %v2240, %v2238
    %v2785 = vpack.c.b16 %v2241, %v2239
    %v2786 = vpack.c.b16 %v2244, %v2242
    %v2787 = vpack.c.b16 %v2245, %v2243
    %v2788 = vpack.c.b16 %v2248, %v2246
    %v2789 = vpack.c.b16 %v2249, %v2247
    %v2790 = vpack.c.b16 %v2252, %v2250
    %v2791 = vpack.c.b16 %v2253, %v2251
    %v2792 = vpack.c.b16 %v2256, %v2254
    %v2793 = vpack.c.b16 %v2257, %v2255
    %v2794 = vpack.c.b16 %v2260, %v2258
    %v2795 = vpack.c.b16 %v2261, %v2259
    %v2796 = vpack.c.b16 %v2264, %v2262
    %v2797 = vpack.c.b16 %v2265, %v2263
    %v2798 = vpack.c.b16 %v2268, %v2266
    %v2799 = vpack.c.b16 %v2269, %v2267
    %v2800 = vpack.c.b16 %v2272, %v2270
    %v2801 = vpack.c.b16 %v2273, %v2271
    %v2802 = vpack.c.b16 %v2276, %v2274
    %v2803 = vpack.c.b16 %v2277, %v2275
    %v2804 = vpack.c.b16 %v2280, %v2278
    %v2805 = vpack.c.b16 %v2281, %v2279
    %v2806 = vpack.c.b16 %v2284, %v2282
    %v2807 = vpack.c.b16 %v2285, %v2283
    %v2808 = vpack.c.b16 %v2288, %v2286
    %v2809 = vpack.c.b16 %v2289, %v2287
    %v2810 = vpack.c.b16 %v2292, %v2290
    %v2811 = vpack.c.b16 %v2293, %v2291
    %v2812 = vpack.c.b16 %v2296, %v2294
    %v2813 = vpack.c.b16 %v2297, %v2295
    %v2814 = vpack.c.b16 %v2300, %v2298
    %v2815 = vpack.c.b16 %v2301, %v2299
    %v2816 = vpack.c.b16 %v2304, %v2302
    %v2817 = vpack.c.b16 %v2305, %v2303
    %3330 = vmatpush.bf16.msra.mxu0 %v2320
    %3331 = vmatpush.bf16.msra.mxu0 %v2318
    %3332 = vmatpush.bf16.msra.mxu0 %v2316
    %3333 = vmatpush.bf16.msra.mxu0 %v2314
    %3334 = vmatpush.bf16.msra.mxu0 %v2312
    %3335 = vmatpush.bf16.msra.mxu0 %v2310
    %3336 = vmatpush.bf16.msra.mxu0 %v2308
    %3337 = vmatpush.bf16.msra.mxu0 %v2306
    %3338 = vmatmul.bf16.gmra.mxu0 %v706
    %v3339 = vpop.f32.mrf.mxu0
    %v3340 = vadd.f32 %v606, %v3339
    %v3341 = vpop.f32.mrf.mxu0
    %v3342 = vadd.f32 %v606, %v3341
    %3343 = vdwg.mxu0
    %3344 = vmatpush.bf16.msra.mxu0 %v2336
    %3345 = vmatpush.bf16.msra.mxu0 %v2334
    %3346 = vmatpush.bf16.msra.mxu0 %v2332
    %3347 = vmatpush.bf16.msra.mxu0 %v2330
    %3348 = vmatpush.bf16.msra.mxu0 %v2328
    %3349 = vmatpush.bf16.msra.mxu0 %v2326
    %3350 = vmatpush.bf16.msra.mxu0 %v2324
    %3351 = vmatpush.bf16.msra.mxu0 %v2322
    %3352 = vmatmul.bf16.gmra.mxu0 %v707
    %v3353 = vpop.f32.mrf.mxu0
    %v3354 = vadd.f32 %v3340, %v3353
    %v3355 = vpop.f32.mrf.mxu0
    %v3356 = vadd.f32 %v3342, %v3355
    %3357 = vdwg.mxu0
    %3358 = vmatpush.bf16.msra.mxu0 %v2352
    %3359 = vmatpush.bf16.msra.mxu0 %v2350
    %3360 = vmatpush.bf16.msra.mxu0 %v2348
    %3361 = vmatpush.bf16.msra.mxu0 %v2346
    %3362 = vmatpush.bf16.msra.mxu0 %v2344
    %3363 = vmatpush.bf16.msra.mxu0 %v2342
    %3364 = vmatpush.bf16.msra.mxu0 %v2340
    %3365 = vmatpush.bf16.msra.mxu0 %v2338
    %3366 = vmatmul.bf16.gmra.mxu0 %v708
    %v3367 = vpop.f32.mrf.mxu0
    %v3368 = vadd.f32 %v3354, %v3367
    %v3369 = vpop.f32.mrf.mxu0
    %v3370 = vadd.f32 %v3356, %v3369
    %3371 = vdwg.mxu0
    %3372 = vmatpush.bf16.msra.mxu0 %v2368
    %3373 = vmatpush.bf16.msra.mxu0 %v2366
    %3374 = vmatpush.bf16.msra.mxu0 %v2364
    %3375 = vmatpush.bf16.msra.mxu0 %v2362
    %3376 = vmatpush.bf16.msra.mxu0 %v2360
    %3377 = vmatpush.bf16.msra.mxu0 %v2358
    %3378 = vmatpush.bf16.msra.mxu0 %v2356
    %3379 = vmatpush.bf16.msra.mxu0 %v2354
    %3380 = vmatmul.bf16.gmra.mxu0 %v709
    %v3381 = vpop.f32.mrf.mxu0
    %v3382 = vadd.f32 %v3368, %v3381
    %v3383 = vpop.f32.mrf.mxu0
    %v3384 = vadd.f32 %v3370, %v3383
    %3385 = vdwg.mxu0
    %3386 = vmatpush.bf16.msra.mxu0 %v2384
    %3387 = vmatpush.bf16.msra.mxu0 %v2382
    %3388 = vmatpush.bf16.msra.mxu0 %v2380
    %3389 = vmatpush.bf16.msra.mxu0 %v2378
    %3390 = vmatpush.bf16.msra.mxu0 %v2376
    %3391 = vmatpush.bf16.msra.mxu0 %v2374
    %3392 = vmatpush.bf16.msra.mxu0 %v2372
    %3393 = vmatpush.bf16.msra.mxu0 %v2370
    %3394 = vmatmul.bf16.gmra.mxu0 %v710
    %v3395 = vpop.f32.mrf.mxu0
    %v3396 = vadd.f32 %v3382, %v3395
    %v3397 = vpop.f32.mrf.mxu0
    %v3398 = vadd.f32 %v3384, %v3397
    %3399 = vdwg.mxu0
    %3400 = vmatpush.bf16.msra.mxu0 %v2400
    %3401 = vmatpush.bf16.msra.mxu0 %v2398
    %3402 = vmatpush.bf16.msra.mxu0 %v2396
    %3403 = vmatpush.bf16.msra.mxu0 %v2394
    %3404 = vmatpush.bf16.msra.mxu0 %v2392
    %3405 = vmatpush.bf16.msra.mxu0 %v2390
    %3406 = vmatpush.bf16.msra.mxu0 %v2388
    %3407 = vmatpush.bf16.msra.mxu0 %v2386
    %3408 = vmatmul.bf16.gmra.mxu0 %v711
    %v3409 = vpop.f32.mrf.mxu0
    %v3410 = vadd.f32 %v3396, %v3409
    %v3411 = vpop.f32.mrf.mxu0
    %v3412 = vadd.f32 %v3398, %v3411
    %3413 = vdwg.mxu0
    %3414 = vmatpush.bf16.msra.mxu0 %v2416
    %3415 = vmatpush.bf16.msra.mxu0 %v2414
    %3416 = vmatpush.bf16.msra.mxu0 %v2412
    %3417 = vmatpush.bf16.msra.mxu0 %v2410
    %3418 = vmatpush.bf16.msra.mxu0 %v2408
    %3419 = vmatpush.bf16.msra.mxu0 %v2406
    %3420 = vmatpush.bf16.msra.mxu0 %v2404
    %3421 = vmatpush.bf16.msra.mxu0 %v2402
    %3422 = vmatmul.bf16.gmra.mxu0 %v712
    %v3423 = vpop.f32.mrf.mxu0
    %v3424 = vadd.f32 %v3410, %v3423
    %v3425 = vpop.f32.mrf.mxu0
    %v3426 = vadd.f32 %v3412, %v3425
    %3427 = vdwg.mxu0
    %3428 = vmatpush.bf16.msra.mxu0 %v2432
    %3429 = vmatpush.bf16.msra.mxu0 %v2430
    %3430 = vmatpush.bf16.msra.mxu0 %v2428
    %3431 = vmatpush.bf16.msra.mxu0 %v2426
    %3432 = vmatpush.bf16.msra.mxu0 %v2424
    %3433 = vmatpush.bf16.msra.mxu0 %v2422
    %3434 = vmatpush.bf16.msra.mxu0 %v2420
    %3435 = vmatpush.bf16.msra.mxu0 %v2418
    %3436 = vmatmul.bf16.gmra.mxu0 %v713
    %v3437 = vpop.f32.mrf.mxu0
    %v3438 = vadd.f32 %v3424, %v3437
    %v3439 = vpop.f32.mrf.mxu0
    %v3440 = vadd.f32 %v3426, %v3439
    %3441 = vdwg.mxu0
    %3442 = vmatpush.bf16.msra.mxu0 %v2448
    %3443 = vmatpush.bf16.msra.mxu0 %v2446
    %3444 = vmatpush.bf16.msra.mxu0 %v2444
    %3445 = vmatpush.bf16.msra.mxu0 %v2442
    %3446 = vmatpush.bf16.msra.mxu0 %v2440
    %3447 = vmatpush.bf16.msra.mxu0 %v2438
    %3448 = vmatpush.bf16.msra.mxu0 %v2436
    %3449 = vmatpush.bf16.msra.mxu0 %v2434
    %3450 = vmatmul.bf16.gmra.mxu0 %v714
    %v3451 = vpop.f32.mrf.mxu0
    %v3452 = vadd.f32 %v3438, %v3451
    %v3453 = vpop.f32.mrf.mxu0
    %v3454 = vadd.f32 %v3440, %v3453
    %3455 = vdwg.mxu0
    %3456 = vmatpush.bf16.msra.mxu0 %v2464
    %3457 = vmatpush.bf16.msra.mxu0 %v2462
    %3458 = vmatpush.bf16.msra.mxu0 %v2460
    %3459 = vmatpush.bf16.msra.mxu0 %v2458
    %3460 = vmatpush.bf16.msra.mxu0 %v2456
    %3461 = vmatpush.bf16.msra.mxu0 %v2454
    %3462 = vmatpush.bf16.msra.mxu0 %v2452
    %3463 = vmatpush.bf16.msra.mxu0 %v2450
    %3464 = vmatmul.bf16.gmra.mxu0 %v715
    %v3465 = vpop.f32.mrf.mxu0
    %v3466 = vadd.f32 %v3452, %v3465
    %v3467 = vpop.f32.mrf.mxu0
    %v3468 = vadd.f32 %v3454, %v3467
    %3469 = vdwg.mxu0
    %3470 = vmatpush.bf16.msra.mxu0 %v2480
    %3471 = vmatpush.bf16.msra.mxu0 %v2478
    %3472 = vmatpush.bf16.msra.mxu0 %v2476
    %3473 = vmatpush.bf16.msra.mxu0 %v2474
    %3474 = vmatpush.bf16.msra.mxu0 %v2472
    %3475 = vmatpush.bf16.msra.mxu0 %v2470
    %3476 = vmatpush.bf16.msra.mxu0 %v2468
    %3477 = vmatpush.bf16.msra.mxu0 %v2466
    %3478 = vmatmul.bf16.gmra.mxu0 %v716
    %v3479 = vpop.f32.mrf.mxu0
    %v3480 = vadd.f32 %v3466, %v3479
    %v3481 = vpop.f32.mrf.mxu0
    %v3482 = vadd.f32 %v3468, %v3481
    %3483 = vdwg.mxu0
    %3484 = vmatpush.bf16.msra.mxu0 %v2496
    %3485 = vmatpush.bf16.msra.mxu0 %v2494
    %3486 = vmatpush.bf16.msra.mxu0 %v2492
    %3487 = vmatpush.bf16.msra.mxu0 %v2490
    %3488 = vmatpush.bf16.msra.mxu0 %v2488
    %3489 = vmatpush.bf16.msra.mxu0 %v2486
    %3490 = vmatpush.bf16.msra.mxu0 %v2484
    %3491 = vmatpush.bf16.msra.mxu0 %v2482
    %3492 = vmatmul.bf16.gmra.mxu0 %v717
    %v3493 = vpop.f32.mrf.mxu0
    %v3494 = vadd.f32 %v3480, %v3493
    %v3495 = vpop.f32.mrf.mxu0
    %v3496 = vadd.f32 %v3482, %v3495
    %3497 = vdwg.mxu0
    %3498 = vmatpush.bf16.msra.mxu0 %v2512
    %3499 = vmatpush.bf16.msra.mxu0 %v2510
    %3500 = vmatpush.bf16.msra.mxu0 %v2508
    %3501 = vmatpush.bf16.msra.mxu0 %v2506
    %3502 = vmatpush.bf16.msra.mxu0 %v2504
    %3503 = vmatpush.bf16.msra.mxu0 %v2502
    %3504 = vmatpush.bf16.msra.mxu0 %v2500
    %3505 = vmatpush.bf16.msra.mxu0 %v2498
    %3506 = vmatmul.bf16.gmra.mxu0 %v718
    %v3507 = vpop.f32.mrf.mxu0
    %v3508 = vadd.f32 %v3494, %v3507
    %v3509 = vpop.f32.mrf.mxu0
    %v3510 = vadd.f32 %v3496, %v3509
    %3511 = vdwg.mxu0
    %3512 = vmatpush.bf16.msra.mxu0 %v2528
    %3513 = vmatpush.bf16.msra.mxu0 %v2526
    %3514 = vmatpush.bf16.msra.mxu0 %v2524
    %3515 = vmatpush.bf16.msra.mxu0 %v2522
    %3516 = vmatpush.bf16.msra.mxu0 %v2520
    %3517 = vmatpush.bf16.msra.mxu0 %v2518
    %3518 = vmatpush.bf16.msra.mxu0 %v2516
    %3519 = vmatpush.bf16.msra.mxu0 %v2514
    %3520 = vmatmul.bf16.gmra.mxu0 %v719
    %v3521 = vpop.f32.mrf.mxu0
    %v3522 = vadd.f32 %v3508, %v3521
    %v3523 = vpop.f32.mrf.mxu0
    %v3524 = vadd.f32 %v3510, %v3523
    %3525 = vdwg.mxu0
    %3526 = vmatpush.bf16.msra.mxu0 %v2544
    %3527 = vmatpush.bf16.msra.mxu0 %v2542
    %3528 = vmatpush.bf16.msra.mxu0 %v2540
    %3529 = vmatpush.bf16.msra.mxu0 %v2538
    %3530 = vmatpush.bf16.msra.mxu0 %v2536
    %3531 = vmatpush.bf16.msra.mxu0 %v2534
    %3532 = vmatpush.bf16.msra.mxu0 %v2532
    %3533 = vmatpush.bf16.msra.mxu0 %v2530
    %3534 = vmatmul.bf16.gmra.mxu0 %v720
    %v3535 = vpop.f32.mrf.mxu0
    %v3536 = vadd.f32 %v3522, %v3535
    %v3537 = vpop.f32.mrf.mxu0
    %v3538 = vadd.f32 %v3524, %v3537
    %3539 = vdwg.mxu0
    %3540 = vmatpush.bf16.msra.mxu0 %v2560
    %3541 = vmatpush.bf16.msra.mxu0 %v2558
    %3542 = vmatpush.bf16.msra.mxu0 %v2556
    %3543 = vmatpush.bf16.msra.mxu0 %v2554
    %3544 = vmatpush.bf16.msra.mxu0 %v2552
    %3545 = vmatpush.bf16.msra.mxu0 %v2550
    %3546 = vmatpush.bf16.msra.mxu0 %v2548
    %3547 = vmatpush.bf16.msra.mxu0 %v2546
    %3548 = vmatmul.bf16.gmra.mxu0 %v721
    %v3549 = vpop.f32.mrf.mxu0
    %v3550 = vadd.f32 %v3536, %v3549
    %v3551 = vpop.f32.mrf.mxu0
    %v3552 = vadd.f32 %v3538, %v3551
    %3553 = vdwg.mxu0
    %3554 = vmatpush.bf16.msra.mxu0 %v2576
    %3555 = vmatpush.bf16.msra.mxu0 %v2574
    %3556 = vmatpush.bf16.msra.mxu0 %v2572
    %3557 = vmatpush.bf16.msra.mxu0 %v2570
    %3558 = vmatpush.bf16.msra.mxu0 %v2568
    %3559 = vmatpush.bf16.msra.mxu0 %v2566
    %3560 = vmatpush.bf16.msra.mxu0 %v2564
    %3561 = vmatpush.bf16.msra.mxu0 %v2562
    %3562 = vmatmul.bf16.gmra.mxu0 %v722
    %v3563 = vpop.f32.mrf.mxu0
    %v3564 = vadd.f32 %v3550, %v3563
    %v3565 = vpop.f32.mrf.mxu0
    %v3566 = vadd.f32 %v3552, %v3565
    %3567 = vdwg.mxu0
    %3568 = vmatpush.bf16.msra.mxu0 %v2592
    %3569 = vmatpush.bf16.msra.mxu0 %v2590
    %3570 = vmatpush.bf16.msra.mxu0 %v2588
    %3571 = vmatpush.bf16.msra.mxu0 %v2586
    %3572 = vmatpush.bf16.msra.mxu0 %v2584
    %3573 = vmatpush.bf16.msra.mxu0 %v2582
    %3574 = vmatpush.bf16.msra.mxu0 %v2580
    %3575 = vmatpush.bf16.msra.mxu0 %v2578
    %3576 = vmatmul.bf16.gmra.mxu0 %v723
    %v3577 = vpop.f32.mrf.mxu0
    %v3578 = vadd.f32 %v3564, %v3577
    %v3579 = vpop.f32.mrf.mxu0
    %v3580 = vadd.f32 %v3566, %v3579
    %3581 = vdwg.mxu0
    %3582 = vmatpush.bf16.msra.mxu0 %v2608
    %3583 = vmatpush.bf16.msra.mxu0 %v2606
    %3584 = vmatpush.bf16.msra.mxu0 %v2604
    %3585 = vmatpush.bf16.msra.mxu0 %v2602
    %3586 = vmatpush.bf16.msra.mxu0 %v2600
    %3587 = vmatpush.bf16.msra.mxu0 %v2598
    %3588 = vmatpush.bf16.msra.mxu0 %v2596
    %3589 = vmatpush.bf16.msra.mxu0 %v2594
    %3590 = vmatmul.bf16.gmra.mxu0 %v724
    %v3591 = vpop.f32.mrf.mxu0
    %v3592 = vadd.f32 %v3578, %v3591
    %v3593 = vpop.f32.mrf.mxu0
    %v3594 = vadd.f32 %v3580, %v3593
    %3595 = vdwg.mxu0
    %3596 = vmatpush.bf16.msra.mxu0 %v2624
    %3597 = vmatpush.bf16.msra.mxu0 %v2622
    %3598 = vmatpush.bf16.msra.mxu0 %v2620
    %3599 = vmatpush.bf16.msra.mxu0 %v2618
    %3600 = vmatpush.bf16.msra.mxu0 %v2616
    %3601 = vmatpush.bf16.msra.mxu0 %v2614
    %3602 = vmatpush.bf16.msra.mxu0 %v2612
    %3603 = vmatpush.bf16.msra.mxu0 %v2610
    %3604 = vmatmul.bf16.gmra.mxu0 %v725
    %v3605 = vpop.f32.mrf.mxu0
    %v3606 = vadd.f32 %v3592, %v3605
    %v3607 = vpop.f32.mrf.mxu0
    %v3608 = vadd.f32 %v3594, %v3607
    %3609 = vdwg.mxu0
    %3610 = vmatpush.bf16.msra.mxu0 %v2640
    %3611 = vmatpush.bf16.msra.mxu0 %v2638
    %3612 = vmatpush.bf16.msra.mxu0 %v2636
    %3613 = vmatpush.bf16.msra.mxu0 %v2634
    %3614 = vmatpush.bf16.msra.mxu0 %v2632
    %3615 = vmatpush.bf16.msra.mxu0 %v2630
    %3616 = vmatpush.bf16.msra.mxu0 %v2628
    %3617 = vmatpush.bf16.msra.mxu0 %v2626
    %3618 = vmatmul.bf16.gmra.mxu0 %v726
    %v3619 = vpop.f32.mrf.mxu0
    %v3620 = vadd.f32 %v3606, %v3619
    %v3621 = vpop.f32.mrf.mxu0
    %v3622 = vadd.f32 %v3608, %v3621
    %3623 = vdwg.mxu0
    %3624 = vmatpush.bf16.msra.mxu0 %v2656
    %3625 = vmatpush.bf16.msra.mxu0 %v2654
    %3626 = vmatpush.bf16.msra.mxu0 %v2652
    %3627 = vmatpush.bf16.msra.mxu0 %v2650
    %3628 = vmatpush.bf16.msra.mxu0 %v2648
    %3629 = vmatpush.bf16.msra.mxu0 %v2646
    %3630 = vmatpush.bf16.msra.mxu0 %v2644
    %3631 = vmatpush.bf16.msra.mxu0 %v2642
    %3632 = vmatmul.bf16.gmra.mxu0 %v727
    %v3633 = vpop.f32.mrf.mxu0
    %v3634 = vadd.f32 %v3620, %v3633
    %v3635 = vpop.f32.mrf.mxu0
    %v3636 = vadd.f32 %v3622, %v3635
    %3637 = vdwg.mxu0
    %3638 = vmatpush.bf16.msra.mxu0 %v2672
    %3639 = vmatpush.bf16.msra.mxu0 %v2670
    %3640 = vmatpush.bf16.msra.mxu0 %v2668
    %3641 = vmatpush.bf16.msra.mxu0 %v2666
    %3642 = vmatpush.bf16.msra.mxu0 %v2664
    %3643 = vmatpush.bf16.msra.mxu0 %v2662
    %3644 = vmatpush.bf16.msra.mxu0 %v2660
    %3645 = vmatpush.bf16.msra.mxu0 %v2658
    %3646 = vmatmul.bf16.gmra.mxu0 %v728
    %v3647 = vpop.f32.mrf.mxu0
    %v3648 = vadd.f32 %v3634, %v3647
    %v3649 = vpop.f32.mrf.mxu0
    %v3650 = vadd.f32 %v3636, %v3649
    %3651 = vdwg.mxu0
    %3652 = vmatpush.bf16.msra.mxu0 %v2688
    %3653 = vmatpush.bf16.msra.mxu0 %v2686
    %3654 = vmatpush.bf16.msra.mxu0 %v2684
    %3655 = vmatpush.bf16.msra.mxu0 %v2682
    %3656 = vmatpush.bf16.msra.mxu0 %v2680
    %3657 = vmatpush.bf16.msra.mxu0 %v2678
    %3658 = vmatpush.bf16.msra.mxu0 %v2676
    %3659 = vmatpush.bf16.msra.mxu0 %v2674
    %3660 = vmatmul.bf16.gmra.mxu0 %v729
    %v3661 = vpop.f32.mrf.mxu0
    %v3662 = vadd.f32 %v3648, %v3661
    %v3663 = vpop.f32.mrf.mxu0
    %v3664 = vadd.f32 %v3650, %v3663
    %3665 = vdwg.mxu0
    %3666 = vmatpush.bf16.msra.mxu0 %v2704
    %3667 = vmatpush.bf16.msra.mxu0 %v2702
    %3668 = vmatpush.bf16.msra.mxu0 %v2700
    %3669 = vmatpush.bf16.msra.mxu0 %v2698
    %3670 = vmatpush.bf16.msra.mxu0 %v2696
    %3671 = vmatpush.bf16.msra.mxu0 %v2694
    %3672 = vmatpush.bf16.msra.mxu0 %v2692
    %3673 = vmatpush.bf16.msra.mxu0 %v2690
    %3674 = vmatmul.bf16.gmra.mxu0 %v730
    %v3675 = vpop.f32.mrf.mxu0
    %v3676 = vadd.f32 %v3662, %v3675
    %v3677 = vpop.f32.mrf.mxu0
    %v3678 = vadd.f32 %v3664, %v3677
    %3679 = vdwg.mxu0
    %3680 = vmatpush.bf16.msra.mxu0 %v2720
    %3681 = vmatpush.bf16.msra.mxu0 %v2718
    %3682 = vmatpush.bf16.msra.mxu0 %v2716
    %3683 = vmatpush.bf16.msra.mxu0 %v2714
    %3684 = vmatpush.bf16.msra.mxu0 %v2712
    %3685 = vmatpush.bf16.msra.mxu0 %v2710
    %3686 = vmatpush.bf16.msra.mxu0 %v2708
    %3687 = vmatpush.bf16.msra.mxu0 %v2706
    %3688 = vmatmul.bf16.gmra.mxu0 %v731
    %v3689 = vpop.f32.mrf.mxu0
    %v3690 = vadd.f32 %v3676, %v3689
    %v3691 = vpop.f32.mrf.mxu0
    %v3692 = vadd.f32 %v3678, %v3691
    %3693 = vdwg.mxu0
    %3694 = vmatpush.bf16.msra.mxu0 %v2736
    %3695 = vmatpush.bf16.msra.mxu0 %v2734
    %3696 = vmatpush.bf16.msra.mxu0 %v2732
    %3697 = vmatpush.bf16.msra.mxu0 %v2730
    %3698 = vmatpush.bf16.msra.mxu0 %v2728
    %3699 = vmatpush.bf16.msra.mxu0 %v2726
    %3700 = vmatpush.bf16.msra.mxu0 %v2724
    %3701 = vmatpush.bf16.msra.mxu0 %v2722
    %3702 = vmatmul.bf16.gmra.mxu0 %v732
    %v3703 = vpop.f32.mrf.mxu0
    %v3704 = vadd.f32 %v3690, %v3703
    %v3705 = vpop.f32.mrf.mxu0
    %v3706 = vadd.f32 %v3692, %v3705
    %3707 = vdwg.mxu0
    %3708 = vmatpush.bf16.msra.mxu0 %v2752
    %3709 = vmatpush.bf16.msra.mxu0 %v2750
    %3710 = vmatpush.bf16.msra.mxu0 %v2748
    %3711 = vmatpush.bf16.msra.mxu0 %v2746
    %3712 = vmatpush.bf16.msra.mxu0 %v2744
    %3713 = vmatpush.bf16.msra.mxu0 %v2742
    %3714 = vmatpush.bf16.msra.mxu0 %v2740
    %3715 = vmatpush.bf16.msra.mxu0 %v2738
    %3716 = vmatmul.bf16.gmra.mxu0 %v733
    %v3717 = vpop.f32.mrf.mxu0
    %v3718 = vadd.f32 %v3704, %v3717
    %v3719 = vpop.f32.mrf.mxu0
    %v3720 = vadd.f32 %v3706, %v3719
    %3721 = vdwg.mxu0
    %3722 = vmatpush.bf16.msra.mxu0 %v2768
    %3723 = vmatpush.bf16.msra.mxu0 %v2766
    %3724 = vmatpush.bf16.msra.mxu0 %v2764
    %3725 = vmatpush.bf16.msra.mxu0 %v2762
    %3726 = vmatpush.bf16.msra.mxu0 %v2760
    %3727 = vmatpush.bf16.msra.mxu0 %v2758
    %3728 = vmatpush.bf16.msra.mxu0 %v2756
    %3729 = vmatpush.bf16.msra.mxu0 %v2754
    %3730 = vmatmul.bf16.gmra.mxu0 %v734
    %v3731 = vpop.f32.mrf.mxu0
    %v3732 = vadd.f32 %v3718, %v3731
    %v3733 = vpop.f32.mrf.mxu0
    %v3734 = vadd.f32 %v3720, %v3733
    %3735 = vdwg.mxu0
    %3736 = vmatpush.bf16.msra.mxu0 %v2784
    %3737 = vmatpush.bf16.msra.mxu0 %v2782
    %3738 = vmatpush.bf16.msra.mxu0 %v2780
    %3739 = vmatpush.bf16.msra.mxu0 %v2778
    %3740 = vmatpush.bf16.msra.mxu0 %v2776
    %3741 = vmatpush.bf16.msra.mxu0 %v2774
    %3742 = vmatpush.bf16.msra.mxu0 %v2772
    %3743 = vmatpush.bf16.msra.mxu0 %v2770
    %3744 = vmatmul.bf16.gmra.mxu0 %v735
    %v3745 = vpop.f32.mrf.mxu0
    %v3746 = vadd.f32 %v3732, %v3745
    %v3747 = vpop.f32.mrf.mxu0
    %v3748 = vadd.f32 %v3734, %v3747
    %3749 = vdwg.mxu0
    %3750 = vmatpush.bf16.msra.mxu0 %v2800
    %3751 = vmatpush.bf16.msra.mxu0 %v2798
    %3752 = vmatpush.bf16.msra.mxu0 %v2796
    %3753 = vmatpush.bf16.msra.mxu0 %v2794
    %3754 = vmatpush.bf16.msra.mxu0 %v2792
    %3755 = vmatpush.bf16.msra.mxu0 %v2790
    %3756 = vmatpush.bf16.msra.mxu0 %v2788
    %3757 = vmatpush.bf16.msra.mxu0 %v2786
    %3758 = vmatmul.bf16.gmra.mxu0 %v736
    %v3759 = vpop.f32.mrf.mxu0
    %v3760 = vadd.f32 %v3746, %v3759
    %v3761 = vpop.f32.mrf.mxu0
    %v3762 = vadd.f32 %v3748, %v3761
    %3763 = vdwg.mxu0
    %3764 = vmatpush.bf16.msra.mxu0 %v2816
    %3765 = vmatpush.bf16.msra.mxu0 %v2814
    %3766 = vmatpush.bf16.msra.mxu0 %v2812
    %3767 = vmatpush.bf16.msra.mxu0 %v2810
    %3768 = vmatpush.bf16.msra.mxu0 %v2808
    %3769 = vmatpush.bf16.msra.mxu0 %v2806
    %3770 = vmatpush.bf16.msra.mxu0 %v2804
    %3771 = vmatpush.bf16.msra.mxu0 %v2802
    %3772 = vmatmul.bf16.gmra.mxu0 %v737
    %v3773 = vpop.f32.mrf.mxu0
    %v3774 = vadd.f32 %v3760, %v3773
    %v3775 = vpop.f32.mrf.mxu0
    %v3776 = vadd.f32 %v3762, %v3775
    %3777 = vdwg.mxu0
    %3778 = vmatpush.bf16.msra.mxu0 %v2321
    %3779 = vmatpush.bf16.msra.mxu0 %v2319
    %3780 = vmatpush.bf16.msra.mxu0 %v2317
    %3781 = vmatpush.bf16.msra.mxu0 %v2315
    %3782 = vmatpush.bf16.msra.mxu0 %v2313
    %3783 = vmatpush.bf16.msra.mxu0 %v2311
    %3784 = vmatpush.bf16.msra.mxu0 %v2309
    %3785 = vmatpush.bf16.msra.mxu0 %v2307
    %3786 = vmatmul.bf16.gmra.mxu0 %v706
    %v3787 = vpop.f32.mrf.mxu0
    %v3788 = vadd.f32 %v607, %v3787
    %v3789 = vpop.f32.mrf.mxu0
    %v3790 = vadd.f32 %v607, %v3789
    %3791 = vdwg.mxu0
    %3792 = vmatpush.bf16.msra.mxu0 %v2337
    %3793 = vmatpush.bf16.msra.mxu0 %v2335
    %3794 = vmatpush.bf16.msra.mxu0 %v2333
    %3795 = vmatpush.bf16.msra.mxu0 %v2331
    %3796 = vmatpush.bf16.msra.mxu0 %v2329
    %3797 = vmatpush.bf16.msra.mxu0 %v2327
    %3798 = vmatpush.bf16.msra.mxu0 %v2325
    %3799 = vmatpush.bf16.msra.mxu0 %v2323
    %3800 = vmatmul.bf16.gmra.mxu0 %v707
    %v3801 = vpop.f32.mrf.mxu0
    %v3802 = vadd.f32 %v3788, %v3801
    %v3803 = vpop.f32.mrf.mxu0
    %v3804 = vadd.f32 %v3790, %v3803
    %3805 = vdwg.mxu0
    %3806 = vmatpush.bf16.msra.mxu0 %v2353
    %3807 = vmatpush.bf16.msra.mxu0 %v2351
    %3808 = vmatpush.bf16.msra.mxu0 %v2349
    %3809 = vmatpush.bf16.msra.mxu0 %v2347
    %3810 = vmatpush.bf16.msra.mxu0 %v2345
    %3811 = vmatpush.bf16.msra.mxu0 %v2343
    %3812 = vmatpush.bf16.msra.mxu0 %v2341
    %3813 = vmatpush.bf16.msra.mxu0 %v2339
    %3814 = vmatmul.bf16.gmra.mxu0 %v708
    %v3815 = vpop.f32.mrf.mxu0
    %v3816 = vadd.f32 %v3802, %v3815
    %v3817 = vpop.f32.mrf.mxu0
    %v3818 = vadd.f32 %v3804, %v3817
    %3819 = vdwg.mxu0
    %3820 = vmatpush.bf16.msra.mxu0 %v2369
    %3821 = vmatpush.bf16.msra.mxu0 %v2367
    %3822 = vmatpush.bf16.msra.mxu0 %v2365
    %3823 = vmatpush.bf16.msra.mxu0 %v2363
    %3824 = vmatpush.bf16.msra.mxu0 %v2361
    %3825 = vmatpush.bf16.msra.mxu0 %v2359
    %3826 = vmatpush.bf16.msra.mxu0 %v2357
    %3827 = vmatpush.bf16.msra.mxu0 %v2355
    %3828 = vmatmul.bf16.gmra.mxu0 %v709
    %v3829 = vpop.f32.mrf.mxu0
    %v3830 = vadd.f32 %v3816, %v3829
    %v3831 = vpop.f32.mrf.mxu0
    %v3832 = vadd.f32 %v3818, %v3831
    %3833 = vdwg.mxu0
    %3834 = vmatpush.bf16.msra.mxu0 %v2385
    %3835 = vmatpush.bf16.msra.mxu0 %v2383
    %3836 = vmatpush.bf16.msra.mxu0 %v2381
    %3837 = vmatpush.bf16.msra.mxu0 %v2379
    %3838 = vmatpush.bf16.msra.mxu0 %v2377
    %3839 = vmatpush.bf16.msra.mxu0 %v2375
    %3840 = vmatpush.bf16.msra.mxu0 %v2373
    %3841 = vmatpush.bf16.msra.mxu0 %v2371
    %3842 = vmatmul.bf16.gmra.mxu0 %v710
    %v3843 = vpop.f32.mrf.mxu0
    %v3844 = vadd.f32 %v3830, %v3843
    %v3845 = vpop.f32.mrf.mxu0
    %v3846 = vadd.f32 %v3832, %v3845
    %3847 = vdwg.mxu0
    %3848 = vmatpush.bf16.msra.mxu0 %v2401
    %3849 = vmatpush.bf16.msra.mxu0 %v2399
    %3850 = vmatpush.bf16.msra.mxu0 %v2397
    %3851 = vmatpush.bf16.msra.mxu0 %v2395
    %3852 = vmatpush.bf16.msra.mxu0 %v2393
    %3853 = vmatpush.bf16.msra.mxu0 %v2391
    %3854 = vmatpush.bf16.msra.mxu0 %v2389
    %3855 = vmatpush.bf16.msra.mxu0 %v2387
    %3856 = vmatmul.bf16.gmra.mxu0 %v711
    %v3857 = vpop.f32.mrf.mxu0
    %v3858 = vadd.f32 %v3844, %v3857
    %v3859 = vpop.f32.mrf.mxu0
    %v3860 = vadd.f32 %v3846, %v3859
    %3861 = vdwg.mxu0
    %3862 = vmatpush.bf16.msra.mxu0 %v2417
    %3863 = vmatpush.bf16.msra.mxu0 %v2415
    %3864 = vmatpush.bf16.msra.mxu0 %v2413
    %3865 = vmatpush.bf16.msra.mxu0 %v2411
    %3866 = vmatpush.bf16.msra.mxu0 %v2409
    %3867 = vmatpush.bf16.msra.mxu0 %v2407
    %3868 = vmatpush.bf16.msra.mxu0 %v2405
    %3869 = vmatpush.bf16.msra.mxu0 %v2403
    %3870 = vmatmul.bf16.gmra.mxu0 %v712
    %v3871 = vpop.f32.mrf.mxu0
    %v3872 = vadd.f32 %v3858, %v3871
    %v3873 = vpop.f32.mrf.mxu0
    %v3874 = vadd.f32 %v3860, %v3873
    %3875 = vdwg.mxu0
    %3876 = vmatpush.bf16.msra.mxu0 %v2433
    %3877 = vmatpush.bf16.msra.mxu0 %v2431
    %3878 = vmatpush.bf16.msra.mxu0 %v2429
    %3879 = vmatpush.bf16.msra.mxu0 %v2427
    %3880 = vmatpush.bf16.msra.mxu0 %v2425
    %3881 = vmatpush.bf16.msra.mxu0 %v2423
    %3882 = vmatpush.bf16.msra.mxu0 %v2421
    %3883 = vmatpush.bf16.msra.mxu0 %v2419
    %3884 = vmatmul.bf16.gmra.mxu0 %v713
    %v3885 = vpop.f32.mrf.mxu0
    %v3886 = vadd.f32 %v3872, %v3885
    %v3887 = vpop.f32.mrf.mxu0
    %v3888 = vadd.f32 %v3874, %v3887
    %3889 = vdwg.mxu0
    %3890 = vmatpush.bf16.msra.mxu0 %v2449
    %3891 = vmatpush.bf16.msra.mxu0 %v2447
    %3892 = vmatpush.bf16.msra.mxu0 %v2445
    %3893 = vmatpush.bf16.msra.mxu0 %v2443
    %3894 = vmatpush.bf16.msra.mxu0 %v2441
    %3895 = vmatpush.bf16.msra.mxu0 %v2439
    %3896 = vmatpush.bf16.msra.mxu0 %v2437
    %3897 = vmatpush.bf16.msra.mxu0 %v2435
    %3898 = vmatmul.bf16.gmra.mxu0 %v714
    %v3899 = vpop.f32.mrf.mxu0
    %v3900 = vadd.f32 %v3886, %v3899
    %v3901 = vpop.f32.mrf.mxu0
    %v3902 = vadd.f32 %v3888, %v3901
    %3903 = vdwg.mxu0
    %3904 = vmatpush.bf16.msra.mxu0 %v2465
    %3905 = vmatpush.bf16.msra.mxu0 %v2463
    %3906 = vmatpush.bf16.msra.mxu0 %v2461
    %3907 = vmatpush.bf16.msra.mxu0 %v2459
    %3908 = vmatpush.bf16.msra.mxu0 %v2457
    %3909 = vmatpush.bf16.msra.mxu0 %v2455
    %3910 = vmatpush.bf16.msra.mxu0 %v2453
    %3911 = vmatpush.bf16.msra.mxu0 %v2451
    %3912 = vmatmul.bf16.gmra.mxu0 %v715
    %v3913 = vpop.f32.mrf.mxu0
    %v3914 = vadd.f32 %v3900, %v3913
    %v3915 = vpop.f32.mrf.mxu0
    %v3916 = vadd.f32 %v3902, %v3915
    %3917 = vdwg.mxu0
    %3918 = vmatpush.bf16.msra.mxu0 %v2481
    %3919 = vmatpush.bf16.msra.mxu0 %v2479
    %3920 = vmatpush.bf16.msra.mxu0 %v2477
    %3921 = vmatpush.bf16.msra.mxu0 %v2475
    %3922 = vmatpush.bf16.msra.mxu0 %v2473
    %3923 = vmatpush.bf16.msra.mxu0 %v2471
    %3924 = vmatpush.bf16.msra.mxu0 %v2469
    %3925 = vmatpush.bf16.msra.mxu0 %v2467
    %3926 = vmatmul.bf16.gmra.mxu0 %v716
    %v3927 = vpop.f32.mrf.mxu0
    %v3928 = vadd.f32 %v3914, %v3927
    %v3929 = vpop.f32.mrf.mxu0
    %v3930 = vadd.f32 %v3916, %v3929
    %3931 = vdwg.mxu0
    %3932 = vmatpush.bf16.msra.mxu0 %v2497
    %3933 = vmatpush.bf16.msra.mxu0 %v2495
    %3934 = vmatpush.bf16.msra.mxu0 %v2493
    %3935 = vmatpush.bf16.msra.mxu0 %v2491
    %3936 = vmatpush.bf16.msra.mxu0 %v2489
    %3937 = vmatpush.bf16.msra.mxu0 %v2487
    %3938 = vmatpush.bf16.msra.mxu0 %v2485
    %3939 = vmatpush.bf16.msra.mxu0 %v2483
    %3940 = vmatmul.bf16.gmra.mxu0 %v717
    %v3941 = vpop.f32.mrf.mxu0
    %v3942 = vadd.f32 %v3928, %v3941
    %v3943 = vpop.f32.mrf.mxu0
    %v3944 = vadd.f32 %v3930, %v3943
    %3945 = vdwg.mxu0
    %3946 = vmatpush.bf16.msra.mxu0 %v2513
    %3947 = vmatpush.bf16.msra.mxu0 %v2511
    %3948 = vmatpush.bf16.msra.mxu0 %v2509
    %3949 = vmatpush.bf16.msra.mxu0 %v2507
    %3950 = vmatpush.bf16.msra.mxu0 %v2505
    %3951 = vmatpush.bf16.msra.mxu0 %v2503
    %3952 = vmatpush.bf16.msra.mxu0 %v2501
    %3953 = vmatpush.bf16.msra.mxu0 %v2499
    %3954 = vmatmul.bf16.gmra.mxu0 %v718
    %v3955 = vpop.f32.mrf.mxu0
    %v3956 = vadd.f32 %v3942, %v3955
    %v3957 = vpop.f32.mrf.mxu0
    %v3958 = vadd.f32 %v3944, %v3957
    %3959 = vdwg.mxu0
    %3960 = vmatpush.bf16.msra.mxu0 %v2529
    %3961 = vmatpush.bf16.msra.mxu0 %v2527
    %3962 = vmatpush.bf16.msra.mxu0 %v2525
    %3963 = vmatpush.bf16.msra.mxu0 %v2523
    %3964 = vmatpush.bf16.msra.mxu0 %v2521
    %3965 = vmatpush.bf16.msra.mxu0 %v2519
    %3966 = vmatpush.bf16.msra.mxu0 %v2517
    %3967 = vmatpush.bf16.msra.mxu0 %v2515
    %3968 = vmatmul.bf16.gmra.mxu0 %v719
    %v3969 = vpop.f32.mrf.mxu0
    %v3970 = vadd.f32 %v3956, %v3969
    %v3971 = vpop.f32.mrf.mxu0
    %v3972 = vadd.f32 %v3958, %v3971
    %3973 = vdwg.mxu0
    %3974 = vmatpush.bf16.msra.mxu0 %v2545
    %3975 = vmatpush.bf16.msra.mxu0 %v2543
    %3976 = vmatpush.bf16.msra.mxu0 %v2541
    %3977 = vmatpush.bf16.msra.mxu0 %v2539
    %3978 = vmatpush.bf16.msra.mxu0 %v2537
    %3979 = vmatpush.bf16.msra.mxu0 %v2535
    %3980 = vmatpush.bf16.msra.mxu0 %v2533
    %3981 = vmatpush.bf16.msra.mxu0 %v2531
    %3982 = vmatmul.bf16.gmra.mxu0 %v720
    %v3983 = vpop.f32.mrf.mxu0
    %v3984 = vadd.f32 %v3970, %v3983
    %v3985 = vpop.f32.mrf.mxu0
    %v3986 = vadd.f32 %v3972, %v3985
    %3987 = vdwg.mxu0
    %3988 = vmatpush.bf16.msra.mxu0 %v2561
    %3989 = vmatpush.bf16.msra.mxu0 %v2559
    %3990 = vmatpush.bf16.msra.mxu0 %v2557
    %3991 = vmatpush.bf16.msra.mxu0 %v2555
    %3992 = vmatpush.bf16.msra.mxu0 %v2553
    %3993 = vmatpush.bf16.msra.mxu0 %v2551
    %3994 = vmatpush.bf16.msra.mxu0 %v2549
    %3995 = vmatpush.bf16.msra.mxu0 %v2547
    %3996 = vmatmul.bf16.gmra.mxu0 %v721
    %v3997 = vpop.f32.mrf.mxu0
    %v3998 = vadd.f32 %v3984, %v3997
    %v3999 = vpop.f32.mrf.mxu0
    %v4000 = vadd.f32 %v3986, %v3999
    %4001 = vdwg.mxu0
    %4002 = vmatpush.bf16.msra.mxu0 %v2577
    %4003 = vmatpush.bf16.msra.mxu0 %v2575
    %4004 = vmatpush.bf16.msra.mxu0 %v2573
    %4005 = vmatpush.bf16.msra.mxu0 %v2571
    %4006 = vmatpush.bf16.msra.mxu0 %v2569
    %4007 = vmatpush.bf16.msra.mxu0 %v2567
    %4008 = vmatpush.bf16.msra.mxu0 %v2565
    %4009 = vmatpush.bf16.msra.mxu0 %v2563
    %4010 = vmatmul.bf16.gmra.mxu0 %v722
    %v4011 = vpop.f32.mrf.mxu0
    %v4012 = vadd.f32 %v3998, %v4011
    %v4013 = vpop.f32.mrf.mxu0
    %v4014 = vadd.f32 %v4000, %v4013
    %4015 = vdwg.mxu0
    %4016 = vmatpush.bf16.msra.mxu0 %v2593
    %4017 = vmatpush.bf16.msra.mxu0 %v2591
    %4018 = vmatpush.bf16.msra.mxu0 %v2589
    %4019 = vmatpush.bf16.msra.mxu0 %v2587
    %4020 = vmatpush.bf16.msra.mxu0 %v2585
    %4021 = vmatpush.bf16.msra.mxu0 %v2583
    %4022 = vmatpush.bf16.msra.mxu0 %v2581
    %4023 = vmatpush.bf16.msra.mxu0 %v2579
    %4024 = vmatmul.bf16.gmra.mxu0 %v723
    %v4025 = vpop.f32.mrf.mxu0
    %v4026 = vadd.f32 %v4012, %v4025
    %v4027 = vpop.f32.mrf.mxu0
    %v4028 = vadd.f32 %v4014, %v4027
    %4029 = vdwg.mxu0
    %4030 = vmatpush.bf16.msra.mxu0 %v2609
    %4031 = vmatpush.bf16.msra.mxu0 %v2607
    %4032 = vmatpush.bf16.msra.mxu0 %v2605
    %4033 = vmatpush.bf16.msra.mxu0 %v2603
    %4034 = vmatpush.bf16.msra.mxu0 %v2601
    %4035 = vmatpush.bf16.msra.mxu0 %v2599
    %4036 = vmatpush.bf16.msra.mxu0 %v2597
    %4037 = vmatpush.bf16.msra.mxu0 %v2595
    %4038 = vmatmul.bf16.gmra.mxu0 %v724
    %v4039 = vpop.f32.mrf.mxu0
    %v4040 = vadd.f32 %v4026, %v4039
    %v4041 = vpop.f32.mrf.mxu0
    %v4042 = vadd.f32 %v4028, %v4041
    %4043 = vdwg.mxu0
    %4044 = vmatpush.bf16.msra.mxu0 %v2625
    %4045 = vmatpush.bf16.msra.mxu0 %v2623
    %4046 = vmatpush.bf16.msra.mxu0 %v2621
    %4047 = vmatpush.bf16.msra.mxu0 %v2619
    %4048 = vmatpush.bf16.msra.mxu0 %v2617
    %4049 = vmatpush.bf16.msra.mxu0 %v2615
    %4050 = vmatpush.bf16.msra.mxu0 %v2613
    %4051 = vmatpush.bf16.msra.mxu0 %v2611
    %4052 = vmatmul.bf16.gmra.mxu0 %v725
    %v4053 = vpop.f32.mrf.mxu0
    %v4054 = vadd.f32 %v4040, %v4053
    %v4055 = vpop.f32.mrf.mxu0
    %v4056 = vadd.f32 %v4042, %v4055
    %4057 = vdwg.mxu0
    %4058 = vmatpush.bf16.msra.mxu0 %v2641
    %4059 = vmatpush.bf16.msra.mxu0 %v2639
    %4060 = vmatpush.bf16.msra.mxu0 %v2637
    %4061 = vmatpush.bf16.msra.mxu0 %v2635
    %4062 = vmatpush.bf16.msra.mxu0 %v2633
    %4063 = vmatpush.bf16.msra.mxu0 %v2631
    %4064 = vmatpush.bf16.msra.mxu0 %v2629
    %4065 = vmatpush.bf16.msra.mxu0 %v2627
    %4066 = vmatmul.bf16.gmra.mxu0 %v726
    %v4067 = vpop.f32.mrf.mxu0
    %v4068 = vadd.f32 %v4054, %v4067
    %v4069 = vpop.f32.mrf.mxu0
    %v4070 = vadd.f32 %v4056, %v4069
    %4071 = vdwg.mxu0
    %4072 = vmatpush.bf16.msra.mxu0 %v2657
    %4073 = vmatpush.bf16.msra.mxu0 %v2655
    %4074 = vmatpush.bf16.msra.mxu0 %v2653
    %4075 = vmatpush.bf16.msra.mxu0 %v2651
    %4076 = vmatpush.bf16.msra.mxu0 %v2649
    %4077 = vmatpush.bf16.msra.mxu0 %v2647
    %4078 = vmatpush.bf16.msra.mxu0 %v2645
    %4079 = vmatpush.bf16.msra.mxu0 %v2643
    %4080 = vmatmul.bf16.gmra.mxu0 %v727
    %v4081 = vpop.f32.mrf.mxu0
    %v4082 = vadd.f32 %v4068, %v4081
    %v4083 = vpop.f32.mrf.mxu0
    %v4084 = vadd.f32 %v4070, %v4083
    %4085 = vdwg.mxu0
    %4086 = vmatpush.bf16.msra.mxu0 %v2673
    %4087 = vmatpush.bf16.msra.mxu0 %v2671
    %4088 = vmatpush.bf16.msra.mxu0 %v2669
    %4089 = vmatpush.bf16.msra.mxu0 %v2667
    %4090 = vmatpush.bf16.msra.mxu0 %v2665
    %4091 = vmatpush.bf16.msra.mxu0 %v2663
    %4092 = vmatpush.bf16.msra.mxu0 %v2661
    %4093 = vmatpush.bf16.msra.mxu0 %v2659
    %4094 = vmatmul.bf16.gmra.mxu0 %v728
    %v4095 = vpop.f32.mrf.mxu0
    %v4096 = vadd.f32 %v4082, %v4095
    %v4097 = vpop.f32.mrf.mxu0
    %v4098 = vadd.f32 %v4084, %v4097
    %4099 = vdwg.mxu0
    %4100 = vmatpush.bf16.msra.mxu0 %v2689
    %4101 = vmatpush.bf16.msra.mxu0 %v2687
    %4102 = vmatpush.bf16.msra.mxu0 %v2685
    %4103 = vmatpush.bf16.msra.mxu0 %v2683
    %4104 = vmatpush.bf16.msra.mxu0 %v2681
    %4105 = vmatpush.bf16.msra.mxu0 %v2679
    %4106 = vmatpush.bf16.msra.mxu0 %v2677
    %4107 = vmatpush.bf16.msra.mxu0 %v2675
    %4108 = vmatmul.bf16.gmra.mxu0 %v729
    %v4109 = vpop.f32.mrf.mxu0
    %v4110 = vadd.f32 %v4096, %v4109
    %v4111 = vpop.f32.mrf.mxu0
    %v4112 = vadd.f32 %v4098, %v4111
    %4113 = vdwg.mxu0
    %4114 = vmatpush.bf16.msra.mxu0 %v2705
    %4115 = vmatpush.bf16.msra.mxu0 %v2703
    %4116 = vmatpush.bf16.msra.mxu0 %v2701
    %4117 = vmatpush.bf16.msra.mxu0 %v2699
    %4118 = vmatpush.bf16.msra.mxu0 %v2697
    %4119 = vmatpush.bf16.msra.mxu0 %v2695
    %4120 = vmatpush.bf16.msra.mxu0 %v2693
    %4121 = vmatpush.bf16.msra.mxu0 %v2691
    %4122 = vmatmul.bf16.gmra.mxu0 %v730
    %v4123 = vpop.f32.mrf.mxu0
    %v4124 = vadd.f32 %v4110, %v4123
    %v4125 = vpop.f32.mrf.mxu0
    %v4126 = vadd.f32 %v4112, %v4125
    %4127 = vdwg.mxu0
    %4128 = vmatpush.bf16.msra.mxu0 %v2721
    %4129 = vmatpush.bf16.msra.mxu0 %v2719
    %4130 = vmatpush.bf16.msra.mxu0 %v2717
    %4131 = vmatpush.bf16.msra.mxu0 %v2715
    %4132 = vmatpush.bf16.msra.mxu0 %v2713
    %4133 = vmatpush.bf16.msra.mxu0 %v2711
    %4134 = vmatpush.bf16.msra.mxu0 %v2709
    %4135 = vmatpush.bf16.msra.mxu0 %v2707
    %4136 = vmatmul.bf16.gmra.mxu0 %v731
    %v4137 = vpop.f32.mrf.mxu0
    %v4138 = vadd.f32 %v4124, %v4137
    %v4139 = vpop.f32.mrf.mxu0
    %v4140 = vadd.f32 %v4126, %v4139
    %4141 = vdwg.mxu0
    %4142 = vmatpush.bf16.msra.mxu0 %v2737
    %4143 = vmatpush.bf16.msra.mxu0 %v2735
    %4144 = vmatpush.bf16.msra.mxu0 %v2733
    %4145 = vmatpush.bf16.msra.mxu0 %v2731
    %4146 = vmatpush.bf16.msra.mxu0 %v2729
    %4147 = vmatpush.bf16.msra.mxu0 %v2727
    %4148 = vmatpush.bf16.msra.mxu0 %v2725
    %4149 = vmatpush.bf16.msra.mxu0 %v2723
    %4150 = vmatmul.bf16.gmra.mxu0 %v732
    %v4151 = vpop.f32.mrf.mxu0
    %v4152 = vadd.f32 %v4138, %v4151
    %v4153 = vpop.f32.mrf.mxu0
    %v4154 = vadd.f32 %v4140, %v4153
    %4155 = vdwg.mxu0
    %4156 = vmatpush.bf16.msra.mxu0 %v2753
    %4157 = vmatpush.bf16.msra.mxu0 %v2751
    %4158 = vmatpush.bf16.msra.mxu0 %v2749
    %4159 = vmatpush.bf16.msra.mxu0 %v2747
    %4160 = vmatpush.bf16.msra.mxu0 %v2745
    %4161 = vmatpush.bf16.msra.mxu0 %v2743
    %4162 = vmatpush.bf16.msra.mxu0 %v2741
    %4163 = vmatpush.bf16.msra.mxu0 %v2739
    %4164 = vmatmul.bf16.gmra.mxu0 %v733
    %v4165 = vpop.f32.mrf.mxu0
    %v4166 = vadd.f32 %v4152, %v4165
    %v4167 = vpop.f32.mrf.mxu0
    %v4168 = vadd.f32 %v4154, %v4167
    %4169 = vdwg.mxu0
    %4170 = vmatpush.bf16.msra.mxu0 %v2769
    %4171 = vmatpush.bf16.msra.mxu0 %v2767
    %4172 = vmatpush.bf16.msra.mxu0 %v2765
    %4173 = vmatpush.bf16.msra.mxu0 %v2763
    %4174 = vmatpush.bf16.msra.mxu0 %v2761
    %4175 = vmatpush.bf16.msra.mxu0 %v2759
    %4176 = vmatpush.bf16.msra.mxu0 %v2757
    %4177 = vmatpush.bf16.msra.mxu0 %v2755
    %4178 = vmatmul.bf16.gmra.mxu0 %v734
    %v4179 = vpop.f32.mrf.mxu0
    %v4180 = vadd.f32 %v4166, %v4179
    %v4181 = vpop.f32.mrf.mxu0
    %v4182 = vadd.f32 %v4168, %v4181
    %4183 = vdwg.mxu0
    %4184 = vmatpush.bf16.msra.mxu0 %v2785
    %4185 = vmatpush.bf16.msra.mxu0 %v2783
    %4186 = vmatpush.bf16.msra.mxu0 %v2781
    %4187 = vmatpush.bf16.msra.mxu0 %v2779
    %4188 = vmatpush.bf16.msra.mxu0 %v2777
    %4189 = vmatpush.bf16.msra.mxu0 %v2775
    %4190 = vmatpush.bf16.msra.mxu0 %v2773
    %4191 = vmatpush.bf16.msra.mxu0 %v2771
    %4192 = vmatmul.bf16.gmra.mxu0 %v735
    %v4193 = vpop.f32.mrf.mxu0
    %v4194 = vadd.f32 %v4180, %v4193
    %v4195 = vpop.f32.mrf.mxu0
    %v4196 = vadd.f32 %v4182, %v4195
    %4197 = vdwg.mxu0
    %4198 = vmatpush.bf16.msra.mxu0 %v2801
    %4199 = vmatpush.bf16.msra.mxu0 %v2799
    %4200 = vmatpush.bf16.msra.mxu0 %v2797
    %4201 = vmatpush.bf16.msra.mxu0 %v2795
    %4202 = vmatpush.bf16.msra.mxu0 %v2793
    %4203 = vmatpush.bf16.msra.mxu0 %v2791
    %4204 = vmatpush.bf16.msra.mxu0 %v2789
    %4205 = vmatpush.bf16.msra.mxu0 %v2787
    %4206 = vmatmul.bf16.gmra.mxu0 %v736
    %v4207 = vpop.f32.mrf.mxu0
    %v4208 = vadd.f32 %v4194, %v4207
    %v4209 = vpop.f32.mrf.mxu0
    %v4210 = vadd.f32 %v4196, %v4209
    %4211 = vdwg.mxu0
    %4212 = vmatpush.bf16.msra.mxu0 %v2817
    %4213 = vmatpush.bf16.msra.mxu0 %v2815
    %4214 = vmatpush.bf16.msra.mxu0 %v2813
    %4215 = vmatpush.bf16.msra.mxu0 %v2811
    %4216 = vmatpush.bf16.msra.mxu0 %v2809
    %4217 = vmatpush.bf16.msra.mxu0 %v2807
    %4218 = vmatpush.bf16.msra.mxu0 %v2805
    %4219 = vmatpush.bf16.msra.mxu0 %v2803
    %4220 = vmatmul.bf16.gmra.mxu0 %v737
    %v4221 = vpop.f32.mrf.mxu0
    %v4222 = vadd.f32 %v4208, %v4221
    %v4223 = vpop.f32.mrf.mxu0
    %v4224 = vadd.f32 %v4210, %v4223
    %4225 = vdwg.mxu0
    %vm4226 = vcmp.gt.f32.partialorder %v3774, 0.0
    %vm4227 = vcmp.gt.f32.partialorder %v4222, 0.0
    %vm4228 = vcmp.gt.f32.partialorder %v3776, 0.0
    %vm4229 = vcmp.gt.f32.partialorder %v4224, 0.0
    %v4230 = vmul.f32 %v3774, 0.2
    %v4231 = vmul.f32 %v4222, 0.2
    %v4232 = vmul.f32 %v3776, 0.2
    %v4233 = vmul.f32 %v4224, 0.2
    %v4234 = vsel %vm4226, %v3774, %v4230
    %v4235 = vsel %vm4227, %v4222, %v4231
    %v4236 = vsel %vm4228, %v3776, %v4232
    %v4237 = vsel %vm4229, %v4224, %v4233
    %4238 = vst [vmem:[#allocation8] sm:$0xff] %v4234
    %4239 = vst [vmem:[#allocation8 + $0x8] sm:$0xff] %v4235
    %4240 = vst [vmem:[#allocation8 + $0x10] sm:$0xff] %v4236
    %4241 = vst [vmem:[#allocation8 + $0x18] sm:$0xff] %v4237
    // Predicated region
    $region26: #{tpu_custom_call.1} parent=1 // pred_check
      _
    $region27: #{tpu_custom_call.1} parent=1 // pred_check_branch
      %4243 = sbr.rel (0) target = $region29
    $region28: #{tpu_custom_call.1} parent=1 // pred_region
      %4245 = vsyncadd [#allocation4], 0
      %s4246 = sshll.u32 [#allocation8], 4
      %s4247 = int_to_ptr.vmem [resolvable:$true] %s4246
      %s4248 = sshll.u32 %s3, 4
      %s4249 = int_to_ptr.hbm [resolvable:$true] %s4248
      %4254 = dma.vmem_to_hbm [thread:$0]  %s4247, 512, %s4249, [#allocation4], 256, 256, 16
    $region29: #{tpu_custom_call.1} parent=1 // pred_fallthru
      _
    // Predicated region
    $region30: #{tpu_custom_call.1} parent=1 // pred_check
      _
    $region31: #{tpu_custom_call.1} parent=1 // pred_check_branch
      %4256 = sbr.rel (0) target = $region33
    $region32: #{tpu_custom_call.1} parent=1 // pred_region
      %4258 = dma.done [#allocation4], 512
    $region33: #{tpu_custom_call.1} parent=1 // pred_fallthru
      _
    %4259 = vsyncpa [#allocation3], 1
    %4260 = vsyncpa [#allocation6], 1
    %4261 = vsyncpa [#allocation4], 1

</llo_original>
